<compile_context>
chip_gen: v6e
topology: v6e:2x2x1
jax: 0.10.0
libtpu: 0.0.40
codegen_flags: <defaults>
</compile_context>

<pallas_src>
import jax
import jax.numpy as jnp
from jax.experimental import pallas as pl
from jax.experimental.pallas import tpu as pltpu

# ----------------------------- configuration ------------------------------ #
N_LEADS = 12        # ECG_SEQ_LAB_NET hardcodes n_leads = 12
SEQ_LEN = 64
BATCH = 2
N_CLASSES = 3
CLF_HIDDEN = 16
BN_EPS = 1e-5

# Two multi-scopic branches, two basic blocks each (small synthetic config).
BRANCH_CONFIGS = [
    dict(scopes=[[1, 1], [1, 1]],
         num_filters=[[8, 8], [16, 16]],
         filter_lengths=[[3, 3], [3, 3]],
         subsample_lengths=[2, 2]),
    dict(scopes=[[2, 2], [4, 4]],
         num_filters=[[8, 8], [16, 16]],
         filter_lengths=[[3, 3], [3, 3]],
         subsample_lengths=[2, 2]),
]
CNN_OUT_CHANNELS = sum(cfg["num_filters"][-1][-1] for cfg in BRANCH_CONFIGS)   # 32
N_CONV_LAYERS = sum(len(s) for cfg in BRANCH_CONFIGS for s in cfg["scopes"])   # 8
N_BLOCKS = sum(len(cfg["scopes"]) for cfg in BRANCH_CONFIGS)                   # 4
KMAX = 48    # max im2col contraction size (klen * c_in)
CMAX = 16    # max conv out-channels
VEC_W = 32   # packed row-vector width (>= max channel count anywhere)

# Row layout of the packed parameter-vector buffer (N_VEC_ROWS, VEC_W).
ROW_CONV_BIAS = 0                        # rows 0..7   conv biases (global layer index)
ROW_BN_SCALE = N_CONV_LAYERS             # rows 8..11  folded BN scale per block
ROW_BN_SHIFT = ROW_BN_SCALE + N_BLOCKS   # rows 12..15 folded BN shift per block
ROW_BA1 = ROW_BN_SHIFT + N_BLOCKS        # 16
ROW_BA2 = ROW_BA1 + 1                    # 17
ROW_BC1 = ROW_BA2 + 1                    # 18
ROW_BC2 = ROW_BC1 + 1                    # 19
N_VEC_ROWS = ROW_BC2 + 1                 # 20


# ------------------------------ Pallas kernel ------------------------------ #
def _fused_forward_kernel(x_ref, wconv_ref, whead_ref, vec_ref, out_ref):
    """Whole forward pass for one batch element (time-major activations).

    x_ref:     (SEQ_LEN, N_LEADS)                 input, time-major
    wconv_ref: (N_CONV_LAYERS, KMAX, CMAX)        packed im2col conv weights (K, C_out)
    whead_ref: (4, 32, 32)                        packed head matrices (pre-transposed)
    vec_ref:   (N_VEC_ROWS, VEC_W)                packed per-channel row vectors
    out_ref:   (SEQ_LEN // 4, N_CLASSES)          logits, already (seq_len, n_classes)
    """
    V = vec_ref[...]                                 # (20, 32), stays resident
    x_t = x_ref[...]                                 # (64, 12)

    def max_pool(y, length, sub):
        # MaxPool1d(kernel=stride=sub) on time-major y (length, C) via 0/1 selection
        # matmuls -> keeps everything lane-dense, no strided slices / reshapes.
        lo = length // sub
        r = jax.lax.broadcasted_iota(jnp.int32, (lo, length), 0)
        c = jax.lax.broadcasted_iota(jnp.int32, (lo, length), 1)
        out = None
        for j in range(sub):
            sel = jnp.where(c == sub * r + j, 1.0, 0.0).astype(jnp.float32)
            p = jnp.dot(sel, y, preferred_element_type=jnp.float32)
            out = p if out is None else jnp.maximum(out, p)
        return out

    branch_outs = []
    layer = 0
    blk_i = 0
    for cfg in BRANCH_CONFIGS:
        y = x_t                                       # (L, C_in) time-major
        c_in = N_LEADS
        length = SEQ_LEN
        for blk in range(len(cfg["scopes"])):
            for dil, c_out, klen in zip(cfg["scopes"][blk],
                                        cfg["num_filters"][blk],
                                        cfg["filter_lengths"][blk]):
                # dilated conv1d ("same" padding) as ONE im2col matmul, then ReLU
                pad = dil * (klen - 1) // 2
                if pad > 0:
                    z = jnp.zeros((pad, c_in), jnp.float32)
                    y_pad = jnp.concatenate([z, y, z], axis=0)       # (L + 2*pad, c_in)
                else:
                    y_pad = y
                xcol = jnp.concatenate(
                    [y_pad[j * dil: j * dil + length, :] for j in range(klen)],
                    axis=1)                                          # (L, klen*c_in)
                k = klen * c_in
                w = wconv_ref[layer][:k, :c_out]                     # (K, c_out)
                b = V[ROW_CONV_BIAS + layer: ROW_CONV_BIAS + layer + 1, :c_out]
                y = jnp.dot(xcol, w, preferred_element_type=jnp.float32) + b
                y = jnp.maximum(y, 0.0)                              # conv -> ReLU
                c_in = c_out
                layer += 1
            # eval-mode BatchNorm1d folded to a per-channel affine, then MaxPool1d
            scale = V[ROW_BN_SCALE + blk_i: ROW_BN_SCALE + blk_i + 1, :c_in]
            shift = V[ROW_BN_SHIFT + blk_i: ROW_BN_SHIFT + blk_i + 1, :c_in]
            y = y * scale + shift
            sub = cfg["subsample_lengths"][blk]
            y = max_pool(y, length, sub)
            length //= sub
            blk_i += 1
        branch_outs.append(y)

    cnn = jnp.concatenate(branch_outs, axis=1)        # (L_out, 32)  channel concat

    # ------------------------------- head -------------------------------- #
    C = CNN_OUT_CHANNELS
    pooled = jnp.mean(cnn, axis=0, keepdims=True)     # AdaptiveAvgPool1d(1) -> (1, C)

    # attn SeqLin: Linear + ReLU, Linear + ReLU, Softmax over channels.
    a = jnp.dot(pooled, whead_ref[0], preferred_element_type=jnp.float32) \
        + V[ROW_BA1:ROW_BA1 + 1, :C]
    a = jnp.maximum(a, 0.0)
    a = jnp.dot(a, whead_ref[1], preferred_element_type=jnp.float32) \
        + V[ROW_BA2:ROW_BA2 + 1, :C]
    a = jnp.maximum(a, 0.0)
    a = a - jnp.max(a, axis=1, keepdims=True)
    e = jnp.exp(a)
    attn = e / jnp.sum(e, axis=1, keepdims=True)      # (1, C), softmax over channels

    w_feat = cnn * attn                               # channel-wise reweighting (L_out, C)

    # clf SeqLin over channel dim: Linear + ReLU, Linear (skip last activation).
    wc1 = whead_ref[2][:C, :CLF_HIDDEN]               # (C, H)
    h = jnp.dot(w_feat, wc1, preferred_element_type=jnp.float32) \
        + V[ROW_BC1:ROW_BC1 + 1, :CLF_HIDDEN]
    h = jnp.maximum(h, 0.0)                           # (L_out, H)
    wc2 = whead_ref[3][:CLF_HIDDEN, :N_CLASSES]       # (H, NC)
    logits = jnp.dot(h, wc2, preferred_element_type=jnp.float32) \
        + V[ROW_BC2:ROW_BC2 + 1, :N_CLASSES]          # (L_out, NC)
    out_ref[...] = logits                             # already (seq_len_out, n_classes)


# -------------------------------- wrapper ---------------------------------- #
@jax.jit
def ecg_seq_lab_net_forward(x, params):
    """x: (B, 12, L) -> (B, L // 4, n_classes) in one fused pallas_call."""
    B, c_in, L = x.shape
    l_out = L // 4
    x_t = jnp.transpose(x, (0, 2, 1)).astype(jnp.float32)   # (B, L, C) time-major
    return pl.pallas_call(
        _fused_forward_kernel,
        out_shape=jax.ShapeDtypeStruct((B, l_out, N_CLASSES), jnp.float32),
        grid=(B,),
        in_specs=[
            pl.BlockSpec((None, L, N_LEADS), lambda b: (b, 0, 0)),
            pl.BlockSpec((N_CONV_LAYERS, KMAX, CMAX), lambda b: (0, 0, 0)),
            pl.BlockSpec((4, CNN_OUT_CHANNELS, CNN_OUT_CHANNELS), lambda b: (0, 0, 0)),
            pl.BlockSpec((N_VEC_ROWS, VEC_W), lambda b: (0, 0)),
        ],
        out_specs=pl.BlockSpec((None, l_out, N_CLASSES), lambda b: (b, 0, 0)),
        compiler_params=pltpu.CompilerParams(dimension_semantics=("parallel",)),
    )(x_t, params["wconv"], params["whead"], params["vec"])


# --------------------------- deterministic params -------------------------- #
def init_params(key):
    wconv = jnp.zeros((N_CONV_LAYERS, KMAX, CMAX), jnp.float32)
    whead = jnp.zeros((4, CNN_OUT_CHANNELS, CNN_OUT_CHANNELS), jnp.float32)
    vec = jnp.zeros((N_VEC_ROWS, VEC_W), jnp.float32)

    layer = 0
    blk_i = 0
    for cfg in BRANCH_CONFIGS:
        c_in = N_LEADS
        for blk in range(len(cfg["scopes"])):
            for dil, c_out, klen in zip(cfg["scopes"][blk],
                                        cfg["num_filters"][blk],
                                        cfg["filter_lengths"][blk]):
                key, kw, kb = jax.random.split(key, 3)
                # PyTorch Conv1d weight layout (C_out, C_in, K) -> im2col layout (K*C_in, C_out)
                w = (0.1 * jax.random.normal(kw, (c_out, c_in, klen))).astype(jnp.float32)
                b = (0.05 * jax.random.normal(kb, (c_out,))).astype(jnp.float32)
                wt = jnp.transpose(w, (2, 1, 0)).reshape(klen * c_in, c_out)
                wconv = wconv.at[layer, :klen * c_in, :c_out].set(wt)
                vec = vec.at[ROW_CONV_BIAS + layer, :c_out].set(b)
                c_in = c_out
                layer += 1
            key, k1, k2, k3, k4 = jax.random.split(key, 5)
            gamma = (1.0 + 0.1 * jax.random.normal(k1, (c_in,))).astype(jnp.float32)
            beta = (0.05 * jax.random.normal(k2, (c_in,))).astype(jnp.float32)
            mean = (0.1 * jax.random.normal(k3, (c_in,))).astype(jnp.float32)
            var = (1.0 + 0.1 * jnp.abs(jax.random.normal(k4, (c_in,)))).astype(jnp.float32)
            scale = gamma * jax.lax.rsqrt(var + BN_EPS)    # eval-mode BN folded to affine
            shift = beta - mean * scale
            vec = vec.at[ROW_BN_SCALE + blk_i, :c_in].set(scale)
            vec = vec.at[ROW_BN_SHIFT + blk_i, :c_in].set(shift)
            blk_i += 1

    C = CNN_OUT_CHANNELS
    key, ka1, kb1, ka2, kb2, kc1, kd1, kc2, kd2 = jax.random.split(key, 9)
    wa1 = (0.1 * jax.random.normal(ka1, (C, C))).astype(jnp.float32)
    ba1 = (0.05 * jax.random.normal(kb1, (C,))).astype(jnp.float32)
    wa2 = (0.1 * jax.random.normal(ka2, (C, C))).astype(jnp.float32)
    ba2 = (0.05 * jax.random.normal(kb2, (C,))).astype(jnp.float32)
    wc1 = (0.1 * jax.random.normal(kc1, (CLF_HIDDEN, C))).astype(jnp.float32)
    bc1 = (0.05 * jax.random.normal(kd1, (CLF_HIDDEN,))).astype(jnp.float32)
    wc2 = (0.1 * jax.random.normal(kc2, (N_CLASSES, CLF_HIDDEN))).astype(jnp.float32)
    bc2 = (0.05 * jax.random.normal(kd2, (N_CLASSES,))).astype(jnp.float32)
    # store pre-transposed so the kernel can use right-multiplication (time-major activations)
    whead = whead.at[0, :C, :C].set(wa1.T)
    whead = whead.at[1, :C, :C].set(wa2.T)
    whead = whead.at[2, :C, :CLF_HIDDEN].set(wc1.T)
    whead = whead.at[3, :CLF_HIDDEN, :N_CLASSES].set(wc2.T)
    vec = vec.at[ROW_BA1, :C].set(ba1)
    vec = vec.at[ROW_BA2, :C].set(ba2)
    vec = vec.at[ROW_BC1, :CLF_HIDDEN].set(bc1)
    vec = vec.at[ROW_BC2, :N_CLASSES].set(bc2)
    return {"wconv": wconv, "whead": whead, "vec": vec}


if __name__ == "__main__":
    key = jax.random.PRNGKey(0)
    key, xkey = jax.random.split(key)
    x = jax.random.normal(xkey, (BATCH, N_LEADS, SEQ_LEN), dtype=jnp.float32)
    params = init_params(key)

    out = ecg_seq_lab_net_forward(x, params)
    out = jax.block_until_ready(out)

    expected = (BATCH, SEQ_LEN // 4, N_CLASSES)   # (batch, seq_len_out, n_classes)
    assert out.shape == expected, (out.shape, expected)
    assert bool(jnp.all(jnp.isfinite(out)))
    print("KERNEL_OK")
</pallas_src>

<mosaic_0001>
module attributes {stable_mosaic.version = 11 : i64} {
  func.func @_fused_forward_kernel(%arg0: i32, %arg1: memref<1x64x12xf32, #tpu.memory_space<vmem>>, %arg2: memref<8x48x16xf32, #tpu.memory_space<vmem>>, %arg3: memref<4x32x32xf32, #tpu.memory_space<vmem>>, %arg4: memref<20x32xf32, #tpu.memory_space<vmem>>, %arg5: memref<1x16x3xf32, #tpu.memory_space<vmem>>) attributes {dimension_semantics = [#tpu.dimension_semantics<parallel>], iteration_bounds = array<i64: 2>, scalar_prefetch = 0 : i64, scratch_operands = 0 : i64, tpu.core_type = #tpu.core_type<tc>, window_params = [{transform_indices = @transform_0, window_bounds = array<i64: 1, 64, 12>}, {pipeline_mode = #tpu.pipeline_mode<synchronous>, transform_indices = @transform_1, window_bounds = array<i64: 8, 48, 16>}, {pipeline_mode = #tpu.pipeline_mode<synchronous>, transform_indices = @transform_2, window_bounds = array<i64: 4, 32, 32>}, {pipeline_mode = #tpu.pipeline_mode<synchronous>, transform_indices = @transform_3, window_bounds = array<i64: 20, 32>}, {transform_indices = @transform_4, window_bounds = array<i64: 1, 16, 3>}]} {
    %c0 = arith.constant 0 : index
    %c0_0 = arith.constant 0 : index
    %0 = vector.load %arg4[%c0, %c0_0] : memref<20x32xf32, #tpu.memory_space<vmem>>, vector<20x32xf32>
    %c0_1 = arith.constant 0 : index
    %c0_2 = arith.constant 0 : index
    %c0_3 = arith.constant 0 : index
    %1 = vector.load %arg1[%c0_1, %c0_2, %c0_3] : memref<1x64x12xf32, #tpu.memory_space<vmem>>, vector<1x64x12xf32>
    %2 = vector.shape_cast %1 : vector<1x64x12xf32> to vector<64x12xf32>
    %cst = arith.constant 0.000000e+00 : f32
    %3 = vector.broadcast %cst : f32 to vector<1x12xf32>
    %4 = tpu.concatenate %3, %2, %3 in 0 : vector<1x12xf32>, vector<64x12xf32>, vector<1x12xf32> -> vector<66x12xf32>
    %5 = vector.extract_strided_slice %4 {offsets = [0, 0], sizes = [64, 12], strides = [1, 1]} : vector<66x12xf32> to vector<64x12xf32>
    %6 = vector.extract_strided_slice %4 {offsets = [1, 0], sizes = [64, 12], strides = [1, 1]} : vector<66x12xf32> to vector<64x12xf32>
    %7 = vector.extract_strided_slice %4 {offsets = [2, 0], sizes = [64, 12], strides = [1, 1]} : vector<66x12xf32> to vector<64x12xf32>
    %8 = tpu.concatenate %5, %6, %7 in 1 : vector<64x12xf32>, vector<64x12xf32>, vector<64x12xf32> -> vector<64x36xf32>
    %c0_4 = arith.constant 0 : index
    %c0_5 = arith.constant 0 : index
    %c0_6 = arith.constant 0 : index
    %9 = vector.load %arg2[%c0_4, %c0_5, %c0_6] : memref<8x48x16xf32, #tpu.memory_space<vmem>>, vector<1x48x16xf32>
    %10 = vector.shape_cast %9 : vector<1x48x16xf32> to vector<48x16xf32>
    %11 = vector.extract_strided_slice %10 {offsets = [0, 0], sizes = [36, 8], strides = [1, 1]} : vector<48x16xf32> to vector<36x8xf32>
    %12 = vector.extract_strided_slice %0 {offsets = [0, 0], sizes = [1, 8], strides = [1, 1]} : vector<20x32xf32> to vector<1x8xf32>
    %cst_7 = arith.constant dense<0.000000e+00> : vector<64x8xf32>
    %13 = tpu.matmul %8, %11, %cst_7 {dimension_numbers = #tpu.dot_dimension_numbers<[1], [0], [0], [1], [0, 0, 1, 1], [], []>} : vector<64x36xf32>, vector<36x8xf32>, vector<64x8xf32> -> vector<64x8xf32>
    %14 = vector.broadcast %12 : vector<1x8xf32> to vector<64x8xf32>
    %15 = arith.addf %13, %14 : vector<64x8xf32>
    %cst_8 = arith.constant 0.000000e+00 : f32
    %16 = vector.broadcast %cst_8 : f32 to vector<64x8xf32>
    %17 = arith.maximumf %15, %16 : vector<64x8xf32>
    %cst_9 = arith.constant 0.000000e+00 : f32
    %18 = vector.broadcast %cst_9 : f32 to vector<1x8xf32>
    %19 = tpu.concatenate %18, %17, %18 in 0 : vector<1x8xf32>, vector<64x8xf32>, vector<1x8xf32> -> vector<66x8xf32>
    %20 = vector.extract_strided_slice %19 {offsets = [0, 0], sizes = [64, 8], strides = [1, 1]} : vector<66x8xf32> to vector<64x8xf32>
    %21 = vector.extract_strided_slice %19 {offsets = [1, 0], sizes = [64, 8], strides = [1, 1]} : vector<66x8xf32> to vector<64x8xf32>
    %22 = vector.extract_strided_slice %19 {offsets = [2, 0], sizes = [64, 8], strides = [1, 1]} : vector<66x8xf32> to vector<64x8xf32>
    %23 = tpu.concatenate %20, %21, %22 in 1 : vector<64x8xf32>, vector<64x8xf32>, vector<64x8xf32> -> vector<64x24xf32>
    %c1 = arith.constant 1 : index
    %c0_10 = arith.constant 0 : index
    %c0_11 = arith.constant 0 : index
    %24 = vector.load %arg2[%c1, %c0_10, %c0_11] : memref<8x48x16xf32, #tpu.memory_space<vmem>>, vector<1x48x16xf32>
    %25 = vector.shape_cast %24 : vector<1x48x16xf32> to vector<48x16xf32>
    %26 = vector.extract_strided_slice %25 {offsets = [0, 0], sizes = [24, 8], strides = [1, 1]} : vector<48x16xf32> to vector<24x8xf32>
    %27 = vector.extract_strided_slice %0 {offsets = [1, 0], sizes = [1, 8], strides = [1, 1]} : vector<20x32xf32> to vector<1x8xf32>
    %cst_12 = arith.constant dense<0.000000e+00> : vector<64x8xf32>
    %28 = tpu.matmul %23, %26, %cst_12 {dimension_numbers = #tpu.dot_dimension_numbers<[1], [0], [0], [1], [0, 0, 1, 1], [], []>} : vector<64x24xf32>, vector<24x8xf32>, vector<64x8xf32> -> vector<64x8xf32>
    %29 = vector.broadcast %27 : vector<1x8xf32> to vector<64x8xf32>
    %30 = arith.addf %28, %29 : vector<64x8xf32>
    %cst_13 = arith.constant 0.000000e+00 : f32
    %31 = vector.broadcast %cst_13 : f32 to vector<64x8xf32>
    %32 = arith.maximumf %30, %31 : vector<64x8xf32>
    %33 = vector.extract_strided_slice %0 {offsets = [8, 0], sizes = [1, 8], strides = [1, 1]} : vector<20x32xf32> to vector<1x8xf32>
    %34 = vector.extract_strided_slice %0 {offsets = [12, 0], sizes = [1, 8], strides = [1, 1]} : vector<20x32xf32> to vector<1x8xf32>
    %35 = vector.broadcast %33 : vector<1x8xf32> to vector<64x8xf32>
    %36 = arith.mulf %32, %35 : vector<64x8xf32>
    %37 = vector.broadcast %34 : vector<1x8xf32> to vector<64x8xf32>
    %38 = arith.addf %36, %37 : vector<64x8xf32>
    %39 = tpu.iota {dimensions = array<i32: 0>} : vector<32x64xi32>
    %40 = tpu.iota {dimensions = array<i32: 1>} : vector<32x64xi32>
    %c2_i32 = arith.constant 2 : i32
    %41 = vector.broadcast %c2_i32 : i32 to vector<32x64xi32>
    %42 = arith.muli %41, %39 : vector<32x64xi32>
    %c0_i32 = arith.constant 0 : i32
    %43 = vector.broadcast %c0_i32 : i32 to vector<32x64xi32>
    %44 = arith.addi %42, %43 : vector<32x64xi32>
    %45 = arith.cmpi eq, %40, %44 : vector<32x64xi32>
    %cst_14 = arith.constant 1.000000e+00 : f32
    %cst_15 = arith.constant 0.000000e+00 : f32
    %46 = vector.broadcast %cst_14 : f32 to vector<32x64xf32>
    %47 = vector.broadcast %cst_15 : f32 to vector<32x64xf32>
    %48 = arith.select %45, %46, %47 : vector<32x64xi1>, vector<32x64xf32>
    %cst_16 = arith.constant dense<0.000000e+00> : vector<32x8xf32>
    %49 = tpu.matmul %48, %38, %cst_16 {dimension_numbers = #tpu.dot_dimension_numbers<[1], [0], [0], [1], [0, 0, 1, 1], [], []>} : vector<32x64xf32>, vector<64x8xf32>, vector<32x8xf32> -> vector<32x8xf32>
    %c2_i32_17 = arith.constant 2 : i32
    %50 = vector.broadcast %c2_i32_17 : i32 to vector<32x64xi32>
    %51 = arith.muli %50, %39 : vector<32x64xi32>
    %c1_i32 = arith.constant 1 : i32
    %52 = vector.broadcast %c1_i32 : i32 to vector<32x64xi32>
    %53 = arith.addi %51, %52 : vector<32x64xi32>
    %54 = arith.cmpi eq, %40, %53 : vector<32x64xi32>
    %cst_18 = arith.constant 1.000000e+00 : f32
    %cst_19 = arith.constant 0.000000e+00 : f32
    %55 = vector.broadcast %cst_18 : f32 to vector<32x64xf32>
    %56 = vector.broadcast %cst_19 : f32 to vector<32x64xf32>
    %57 = arith.select %54, %55, %56 : vector<32x64xi1>, vector<32x64xf32>
    %cst_20 = arith.constant dense<0.000000e+00> : vector<32x8xf32>
    %58 = tpu.matmul %57, %38, %cst_20 {dimension_numbers = #tpu.dot_dimension_numbers<[1], [0], [0], [1], [0, 0, 1, 1], [], []>} : vector<32x64xf32>, vector<64x8xf32>, vector<32x8xf32> -> vector<32x8xf32>
    %59 = arith.maximumf %49, %58 : vector<32x8xf32>
    %cst_21 = arith.constant 0.000000e+00 : f32
    %60 = vector.broadcast %cst_21 : f32 to vector<1x8xf32>
    %61 = tpu.concatenate %60, %59, %60 in 0 : vector<1x8xf32>, vector<32x8xf32>, vector<1x8xf32> -> vector<34x8xf32>
    %62 = vector.extract_strided_slice %61 {offsets = [0, 0], sizes = [32, 8], strides = [1, 1]} : vector<34x8xf32> to vector<32x8xf32>
    %63 = vector.extract_strided_slice %61 {offsets = [1, 0], sizes = [32, 8], strides = [1, 1]} : vector<34x8xf32> to vector<32x8xf32>
    %64 = vector.extract_strided_slice %61 {offsets = [2, 0], sizes = [32, 8], strides = [1, 1]} : vector<34x8xf32> to vector<32x8xf32>
    %65 = tpu.concatenate %62, %63, %64 in 1 : vector<32x8xf32>, vector<32x8xf32>, vector<32x8xf32> -> vector<32x24xf32>
    %c2 = arith.constant 2 : index
    %c0_22 = arith.constant 0 : index
    %c0_23 = arith.constant 0 : index
    %66 = vector.load %arg2[%c2, %c0_22, %c0_23] : memref<8x48x16xf32, #tpu.memory_space<vmem>>, vector<1x48x16xf32>
    %67 = vector.shape_cast %66 : vector<1x48x16xf32> to vector<48x16xf32>
    %68 = vector.extract_strided_slice %67 {offsets = [0, 0], sizes = [24, 16], strides = [1, 1]} : vector<48x16xf32> to vector<24x16xf32>
    %69 = vector.extract_strided_slice %0 {offsets = [2, 0], sizes = [1, 16], strides = [1, 1]} : vector<20x32xf32> to vector<1x16xf32>
    %cst_24 = arith.constant dense<0.000000e+00> : vector<32x16xf32>
    %70 = tpu.matmul %65, %68, %cst_24 {dimension_numbers = #tpu.dot_dimension_numbers<[1], [0], [0], [1], [0, 0, 1, 1], [], []>} : vector<32x24xf32>, vector<24x16xf32>, vector<32x16xf32> -> vector<32x16xf32>
    %71 = vector.broadcast %69 : vector<1x16xf32> to vector<32x16xf32>
    %72 = arith.addf %70, %71 : vector<32x16xf32>
    %cst_25 = arith.constant 0.000000e+00 : f32
    %73 = vector.broadcast %cst_25 : f32 to vector<32x16xf32>
    %74 = arith.maximumf %72, %73 : vector<32x16xf32>
    %cst_26 = arith.constant 0.000000e+00 : f32
    %75 = vector.broadcast %cst_26 : f32 to vector<1x16xf32>
    %76 = tpu.concatenate %75, %74, %75 in 0 : vector<1x16xf32>, vector<32x16xf32>, vector<1x16xf32> -> vector<34x16xf32>
    %77 = vector.extract_strided_slice %76 {offsets = [0, 0], sizes = [32, 16], strides = [1, 1]} : vector<34x16xf32> to vector<32x16xf32>
    %78 = vector.extract_strided_slice %76 {offsets = [1, 0], sizes = [32, 16], strides = [1, 1]} : vector<34x16xf32> to vector<32x16xf32>
    %79 = vector.extract_strided_slice %76 {offsets = [2, 0], sizes = [32, 16], strides = [1, 1]} : vector<34x16xf32> to vector<32x16xf32>
    %80 = tpu.concatenate %77, %78, %79 in 1 : vector<32x16xf32>, vector<32x16xf32>, vector<32x16xf32> -> vector<32x48xf32>
    %c3 = arith.constant 3 : index
    %c0_27 = arith.constant 0 : index
    %c0_28 = arith.constant 0 : index
    %81 = vector.load %arg2[%c3, %c0_27, %c0_28] : memref<8x48x16xf32, #tpu.memory_space<vmem>>, vector<1x48x16xf32>
    %82 = vector.shape_cast %81 : vector<1x48x16xf32> to vector<48x16xf32>
    %83 = vector.extract_strided_slice %0 {offsets = [3, 0], sizes = [1, 16], strides = [1, 1]} : vector<20x32xf32> to vector<1x16xf32>
    %cst_29 = arith.constant dense<0.000000e+00> : vector<32x16xf32>
    %84 = tpu.matmul %80, %82, %cst_29 {dimension_numbers = #tpu.dot_dimension_numbers<[1], [0], [0], [1], [0, 0, 1, 1], [], []>} : vector<32x48xf32>, vector<48x16xf32>, vector<32x16xf32> -> vector<32x16xf32>
    %85 = vector.broadcast %83 : vector<1x16xf32> to vector<32x16xf32>
    %86 = arith.addf %84, %85 : vector<32x16xf32>
    %cst_30 = arith.constant 0.000000e+00 : f32
    %87 = vector.broadcast %cst_30 : f32 to vector<32x16xf32>
    %88 = arith.maximumf %86, %87 : vector<32x16xf32>
    %89 = vector.extract_strided_slice %0 {offsets = [9, 0], sizes = [1, 16], strides = [1, 1]} : vector<20x32xf32> to vector<1x16xf32>
    %90 = vector.extract_strided_slice %0 {offsets = [13, 0], sizes = [1, 16], strides = [1, 1]} : vector<20x32xf32> to vector<1x16xf32>
    %91 = vector.broadcast %89 : vector<1x16xf32> to vector<32x16xf32>
    %92 = arith.mulf %88, %91 : vector<32x16xf32>
    %93 = vector.broadcast %90 : vector<1x16xf32> to vector<32x16xf32>
    %94 = arith.addf %92, %93 : vector<32x16xf32>
    %95 = tpu.iota {dimensions = array<i32: 0>} : vector<16x32xi32>
    %96 = tpu.iota {dimensions = array<i32: 1>} : vector<16x32xi32>
    %c2_i32_31 = arith.constant 2 : i32
    %97 = vector.broadcast %c2_i32_31 : i32 to vector<16x32xi32>
    %98 = arith.muli %97, %95 : vector<16x32xi32>
    %c0_i32_32 = arith.constant 0 : i32
    %99 = vector.broadcast %c0_i32_32 : i32 to vector<16x32xi32>
    %100 = arith.addi %98, %99 : vector<16x32xi32>
    %101 = arith.cmpi eq, %96, %100 : vector<16x32xi32>
    %cst_33 = arith.constant 1.000000e+00 : f32
    %cst_34 = arith.constant 0.000000e+00 : f32
    %102 = vector.broadcast %cst_33 : f32 to vector<16x32xf32>
    %103 = vector.broadcast %cst_34 : f32 to vector<16x32xf32>
    %104 = arith.select %101, %102, %103 : vector<16x32xi1>, vector<16x32xf32>
    %cst_35 = arith.constant dense<0.000000e+00> : vector<16x16xf32>
    %105 = tpu.matmul %104, %94, %cst_35 {dimension_numbers = #tpu.dot_dimension_numbers<[1], [0], [0], [1], [0, 0, 1, 1], [], []>} : vector<16x32xf32>, vector<32x16xf32>, vector<16x16xf32> -> vector<16x16xf32>
    %c2_i32_36 = arith.constant 2 : i32
    %106 = vector.broadcast %c2_i32_36 : i32 to vector<16x32xi32>
    %107 = arith.muli %106, %95 : vector<16x32xi32>
    %c1_i32_37 = arith.constant 1 : i32
    %108 = vector.broadcast %c1_i32_37 : i32 to vector<16x32xi32>
    %109 = arith.addi %107, %108 : vector<16x32xi32>
    %110 = arith.cmpi eq, %96, %109 : vector<16x32xi32>
    %cst_38 = arith.constant 1.000000e+00 : f32
    %cst_39 = arith.constant 0.000000e+00 : f32
    %111 = vector.broadcast %cst_38 : f32 to vector<16x32xf32>
    %112 = vector.broadcast %cst_39 : f32 to vector<16x32xf32>
    %113 = arith.select %110, %111, %112 : vector<16x32xi1>, vector<16x32xf32>
    %cst_40 = arith.constant dense<0.000000e+00> : vector<16x16xf32>
    %114 = tpu.matmul %113, %94, %cst_40 {dimension_numbers = #tpu.dot_dimension_numbers<[1], [0], [0], [1], [0, 0, 1, 1], [], []>} : vector<16x32xf32>, vector<32x16xf32>, vector<16x16xf32> -> vector<16x16xf32>
    %115 = arith.maximumf %105, %114 : vector<16x16xf32>
    %cst_41 = arith.constant 0.000000e+00 : f32
    %116 = vector.broadcast %cst_41 : f32 to vector<2x12xf32>
    %117 = tpu.concatenate %116, %2, %116 in 0 : vector<2x12xf32>, vector<64x12xf32>, vector<2x12xf32> -> vector<68x12xf32>
    %118 = vector.extract_strided_slice %117 {offsets = [0, 0], sizes = [64, 12], strides = [1, 1]} : vector<68x12xf32> to vector<64x12xf32>
    %119 = vector.extract_strided_slice %117 {offsets = [2, 0], sizes = [64, 12], strides = [1, 1]} : vector<68x12xf32> to vector<64x12xf32>
    %120 = vector.extract_strided_slice %117 {offsets = [4, 0], sizes = [64, 12], strides = [1, 1]} : vector<68x12xf32> to vector<64x12xf32>
    %121 = tpu.concatenate %118, %119, %120 in 1 : vector<64x12xf32>, vector<64x12xf32>, vector<64x12xf32> -> vector<64x36xf32>
    %c4 = arith.constant 4 : index
    %c0_42 = arith.constant 0 : index
    %c0_43 = arith.constant 0 : index
    %122 = vector.load %arg2[%c4, %c0_42, %c0_43] : memref<8x48x16xf32, #tpu.memory_space<vmem>>, vector<1x48x16xf32>
    %123 = vector.shape_cast %122 : vector<1x48x16xf32> to vector<48x16xf32>
    %124 = vector.extract_strided_slice %123 {offsets = [0, 0], sizes = [36, 8], strides = [1, 1]} : vector<48x16xf32> to vector<36x8xf32>
    %125 = vector.extract_strided_slice %0 {offsets = [4, 0], sizes = [1, 8], strides = [1, 1]} : vector<20x32xf32> to vector<1x8xf32>
    %cst_44 = arith.constant dense<0.000000e+00> : vector<64x8xf32>
    %126 = tpu.matmul %121, %124, %cst_44 {dimension_numbers = #tpu.dot_dimension_numbers<[1], [0], [0], [1], [0, 0, 1, 1], [], []>} : vector<64x36xf32>, vector<36x8xf32>, vector<64x8xf32> -> vector<64x8xf32>
    %127 = vector.broadcast %125 : vector<1x8xf32> to vector<64x8xf32>
    %128 = arith.addf %126, %127 : vector<64x8xf32>
    %cst_45 = arith.constant 0.000000e+00 : f32
    %129 = vector.broadcast %cst_45 : f32 to vector<64x8xf32>
    %130 = arith.maximumf %128, %129 : vector<64x8xf32>
    %cst_46 = arith.constant 0.000000e+00 : f32
    %131 = vector.broadcast %cst_46 : f32 to vector<2x8xf32>
    %132 = tpu.concatenate %131, %130, %131 in 0 : vector<2x8xf32>, vector<64x8xf32>, vector<2x8xf32> -> vector<68x8xf32>
    %133 = vector.extract_strided_slice %132 {offsets = [0, 0], sizes = [64, 8], strides = [1, 1]} : vector<68x8xf32> to vector<64x8xf32>
    %134 = vector.extract_strided_slice %132 {offsets = [2, 0], sizes = [64, 8], strides = [1, 1]} : vector<68x8xf32> to vector<64x8xf32>
    %135 = vector.extract_strided_slice %132 {offsets = [4, 0], sizes = [64, 8], strides = [1, 1]} : vector<68x8xf32> to vector<64x8xf32>
    %136 = tpu.concatenate %133, %134, %135 in 1 : vector<64x8xf32>, vector<64x8xf32>, vector<64x8xf32> -> vector<64x24xf32>
    %c5 = arith.constant 5 : index
    %c0_47 = arith.constant 0 : index
    %c0_48 = arith.constant 0 : index
    %137 = vector.load %arg2[%c5, %c0_47, %c0_48] : memref<8x48x16xf32, #tpu.memory_space<vmem>>, vector<1x48x16xf32>
    %138 = vector.shape_cast %137 : vector<1x48x16xf32> to vector<48x16xf32>
    %139 = vector.extract_strided_slice %138 {offsets = [0, 0], sizes = [24, 8], strides = [1, 1]} : vector<48x16xf32> to vector<24x8xf32>
    %140 = vector.extract_strided_slice %0 {offsets = [5, 0], sizes = [1, 8], strides = [1, 1]} : vector<20x32xf32> to vector<1x8xf32>
    %cst_49 = arith.constant dense<0.000000e+00> : vector<64x8xf32>
    %141 = tpu.matmul %136, %139, %cst_49 {dimension_numbers = #tpu.dot_dimension_numbers<[1], [0], [0], [1], [0, 0, 1, 1], [], []>} : vector<64x24xf32>, vector<24x8xf32>, vector<64x8xf32> -> vector<64x8xf32>
    %142 = vector.broadcast %140 : vector<1x8xf32> to vector<64x8xf32>
    %143 = arith.addf %141, %142 : vector<64x8xf32>
    %cst_50 = arith.constant 0.000000e+00 : f32
    %144 = vector.broadcast %cst_50 : f32 to vector<64x8xf32>
    %145 = arith.maximumf %143, %144 : vector<64x8xf32>
    %146 = vector.extract_strided_slice %0 {offsets = [10, 0], sizes = [1, 8], strides = [1, 1]} : vector<20x32xf32> to vector<1x8xf32>
    %147 = vector.extract_strided_slice %0 {offsets = [14, 0], sizes = [1, 8], strides = [1, 1]} : vector<20x32xf32> to vector<1x8xf32>
    %148 = vector.broadcast %146 : vector<1x8xf32> to vector<64x8xf32>
    %149 = arith.mulf %145, %148 : vector<64x8xf32>
    %150 = vector.broadcast %147 : vector<1x8xf32> to vector<64x8xf32>
    %151 = arith.addf %149, %150 : vector<64x8xf32>
    %152 = tpu.iota {dimensions = array<i32: 0>} : vector<32x64xi32>
    %153 = tpu.iota {dimensions = array<i32: 1>} : vector<32x64xi32>
    %c2_i32_51 = arith.constant 2 : i32
    %154 = vector.broadcast %c2_i32_51 : i32 to vector<32x64xi32>
    %155 = arith.muli %154, %152 : vector<32x64xi32>
    %c0_i32_52 = arith.constant 0 : i32
    %156 = vector.broadcast %c0_i32_52 : i32 to vector<32x64xi32>
    %157 = arith.addi %155, %156 : vector<32x64xi32>
    %158 = arith.cmpi eq, %153, %157 : vector<32x64xi32>
    %cst_53 = arith.constant 1.000000e+00 : f32
    %cst_54 = arith.constant 0.000000e+00 : f32
    %159 = vector.broadcast %cst_53 : f32 to vector<32x64xf32>
    %160 = vector.broadcast %cst_54 : f32 to vector<32x64xf32>
    %161 = arith.select %158, %159, %160 : vector<32x64xi1>, vector<32x64xf32>
    %cst_55 = arith.constant dense<0.000000e+00> : vector<32x8xf32>
    %162 = tpu.matmul %161, %151, %cst_55 {dimension_numbers = #tpu.dot_dimension_numbers<[1], [0], [0], [1], [0, 0, 1, 1], [], []>} : vector<32x64xf32>, vector<64x8xf32>, vector<32x8xf32> -> vector<32x8xf32>
    %c2_i32_56 = arith.constant 2 : i32
    %163 = vector.broadcast %c2_i32_56 : i32 to vector<32x64xi32>
    %164 = arith.muli %163, %152 : vector<32x64xi32>
    %c1_i32_57 = arith.constant 1 : i32
    %165 = vector.broadcast %c1_i32_57 : i32 to vector<32x64xi32>
    %166 = arith.addi %164, %165 : vector<32x64xi32>
    %167 = arith.cmpi eq, %153, %166 : vector<32x64xi32>
    %cst_58 = arith.constant 1.000000e+00 : f32
    %cst_59 = arith.constant 0.000000e+00 : f32
    %168 = vector.broadcast %cst_58 : f32 to vector<32x64xf32>
    %169 = vector.broadcast %cst_59 : f32 to vector<32x64xf32>
    %170 = arith.select %167, %168, %169 : vector<32x64xi1>, vector<32x64xf32>
    %cst_60 = arith.constant dense<0.000000e+00> : vector<32x8xf32>
    %171 = tpu.matmul %170, %151, %cst_60 {dimension_numbers = #tpu.dot_dimension_numbers<[1], [0], [0], [1], [0, 0, 1, 1], [], []>} : vector<32x64xf32>, vector<64x8xf32>, vector<32x8xf32> -> vector<32x8xf32>
    %172 = arith.maximumf %162, %171 : vector<32x8xf32>
    %cst_61 = arith.constant 0.000000e+00 : f32
    %173 = vector.broadcast %cst_61 : f32 to vector<4x8xf32>
    %174 = tpu.concatenate %173, %172, %173 in 0 : vector<4x8xf32>, vector<32x8xf32>, vector<4x8xf32> -> vector<40x8xf32>
    %175 = vector.extract_strided_slice %174 {offsets = [0, 0], sizes = [32, 8], strides = [1, 1]} : vector<40x8xf32> to vector<32x8xf32>
    %176 = vector.extract_strided_slice %174 {offsets = [4, 0], sizes = [32, 8], strides = [1, 1]} : vector<40x8xf32> to vector<32x8xf32>
    %177 = vector.extract_strided_slice %174 {offsets = [8, 0], sizes = [32, 8], strides = [1, 1]} : vector<40x8xf32> to vector<32x8xf32>
    %178 = tpu.concatenate %175, %176, %177 in 1 : vector<32x8xf32>, vector<32x8xf32>, vector<32x8xf32> -> vector<32x24xf32>
    %c6 = arith.constant 6 : index
    %c0_62 = arith.constant 0 : index
    %c0_63 = arith.constant 0 : index
    %179 = vector.load %arg2[%c6, %c0_62, %c0_63] : memref<8x48x16xf32, #tpu.memory_space<vmem>>, vector<1x48x16xf32>
    %180 = vector.shape_cast %179 : vector<1x48x16xf32> to vector<48x16xf32>
    %181 = vector.extract_strided_slice %180 {offsets = [0, 0], sizes = [24, 16], strides = [1, 1]} : vector<48x16xf32> to vector<24x16xf32>
    %182 = vector.extract_strided_slice %0 {offsets = [6, 0], sizes = [1, 16], strides = [1, 1]} : vector<20x32xf32> to vector<1x16xf32>
    %cst_64 = arith.constant dense<0.000000e+00> : vector<32x16xf32>
    %183 = tpu.matmul %178, %181, %cst_64 {dimension_numbers = #tpu.dot_dimension_numbers<[1], [0], [0], [1], [0, 0, 1, 1], [], []>} : vector<32x24xf32>, vector<24x16xf32>, vector<32x16xf32> -> vector<32x16xf32>
    %184 = vector.broadcast %182 : vector<1x16xf32> to vector<32x16xf32>
    %185 = arith.addf %183, %184 : vector<32x16xf32>
    %cst_65 = arith.constant 0.000000e+00 : f32
    %186 = vector.broadcast %cst_65 : f32 to vector<32x16xf32>
    %187 = arith.maximumf %185, %186 : vector<32x16xf32>
    %cst_66 = arith.constant 0.000000e+00 : f32
    %188 = vector.broadcast %cst_66 : f32 to vector<4x16xf32>
    %189 = tpu.concatenate %188, %187, %188 in 0 : vector<4x16xf32>, vector<32x16xf32>, vector<4x16xf32> -> vector<40x16xf32>
    %190 = vector.extract_strided_slice %189 {offsets = [0, 0], sizes = [32, 16], strides = [1, 1]} : vector<40x16xf32> to vector<32x16xf32>
    %191 = vector.extract_strided_slice %189 {offsets = [4, 0], sizes = [32, 16], strides = [1, 1]} : vector<40x16xf32> to vector<32x16xf32>
    %192 = vector.extract_strided_slice %189 {offsets = [8, 0], sizes = [32, 16], strides = [1, 1]} : vector<40x16xf32> to vector<32x16xf32>
    %193 = tpu.concatenate %190, %191, %192 in 1 : vector<32x16xf32>, vector<32x16xf32>, vector<32x16xf32> -> vector<32x48xf32>
    %c7 = arith.constant 7 : index
    %c0_67 = arith.constant 0 : index
    %c0_68 = arith.constant 0 : index
    %194 = vector.load %arg2[%c7, %c0_67, %c0_68] : memref<8x48x16xf32, #tpu.memory_space<vmem>>, vector<1x48x16xf32>
    %195 = vector.shape_cast %194 : vector<1x48x16xf32> to vector<48x16xf32>
    %196 = vector.extract_strided_slice %0 {offsets = [7, 0], sizes = [1, 16], strides = [1, 1]} : vector<20x32xf32> to vector<1x16xf32>
    %cst_69 = arith.constant dense<0.000000e+00> : vector<32x16xf32>
    %197 = tpu.matmul %193, %195, %cst_69 {dimension_numbers = #tpu.dot_dimension_numbers<[1], [0], [0], [1], [0, 0, 1, 1], [], []>} : vector<32x48xf32>, vector<48x16xf32>, vector<32x16xf32> -> vector<32x16xf32>
    %198 = vector.broadcast %196 : vector<1x16xf32> to vector<32x16xf32>
    %199 = arith.addf %197, %198 : vector<32x16xf32>
    %cst_70 = arith.constant 0.000000e+00 : f32
    %200 = vector.broadcast %cst_70 : f32 to vector<32x16xf32>
    %201 = arith.maximumf %199, %200 : vector<32x16xf32>
    %202 = vector.extract_strided_slice %0 {offsets = [11, 0], sizes = [1, 16], strides = [1, 1]} : vector<20x32xf32> to vector<1x16xf32>
    %203 = vector.extract_strided_slice %0 {offsets = [15, 0], sizes = [1, 16], strides = [1, 1]} : vector<20x32xf32> to vector<1x16xf32>
    %204 = vector.broadcast %202 : vector<1x16xf32> to vector<32x16xf32>
    %205 = arith.mulf %201, %204 : vector<32x16xf32>
    %206 = vector.broadcast %203 : vector<1x16xf32> to vector<32x16xf32>
    %207 = arith.addf %205, %206 : vector<32x16xf32>
    %208 = tpu.iota {dimensions = array<i32: 0>} : vector<16x32xi32>
    %209 = tpu.iota {dimensions = array<i32: 1>} : vector<16x32xi32>
    %c2_i32_71 = arith.constant 2 : i32
    %210 = vector.broadcast %c2_i32_71 : i32 to vector<16x32xi32>
    %211 = arith.muli %210, %208 : vector<16x32xi32>
    %c0_i32_72 = arith.constant 0 : i32
    %212 = vector.broadcast %c0_i32_72 : i32 to vector<16x32xi32>
    %213 = arith.addi %211, %212 : vector<16x32xi32>
    %214 = arith.cmpi eq, %209, %213 : vector<16x32xi32>
    %cst_73 = arith.constant 1.000000e+00 : f32
    %cst_74 = arith.constant 0.000000e+00 : f32
    %215 = vector.broadcast %cst_73 : f32 to vector<16x32xf32>
    %216 = vector.broadcast %cst_74 : f32 to vector<16x32xf32>
    %217 = arith.select %214, %215, %216 : vector<16x32xi1>, vector<16x32xf32>
    %cst_75 = arith.constant dense<0.000000e+00> : vector<16x16xf32>
    %218 = tpu.matmul %217, %207, %cst_75 {dimension_numbers = #tpu.dot_dimension_numbers<[1], [0], [0], [1], [0, 0, 1, 1], [], []>} : vector<16x32xf32>, vector<32x16xf32>, vector<16x16xf32> -> vector<16x16xf32>
    %c2_i32_76 = arith.constant 2 : i32
    %219 = vector.broadcast %c2_i32_76 : i32 to vector<16x32xi32>
    %220 = arith.muli %219, %208 : vector<16x32xi32>
    %c1_i32_77 = arith.constant 1 : i32
    %221 = vector.broadcast %c1_i32_77 : i32 to vector<16x32xi32>
    %222 = arith.addi %220, %221 : vector<16x32xi32>
    %223 = arith.cmpi eq, %209, %222 : vector<16x32xi32>
    %cst_78 = arith.constant 1.000000e+00 : f32
    %cst_79 = arith.constant 0.000000e+00 : f32
    %224 = vector.broadcast %cst_78 : f32 to vector<16x32xf32>
    %225 = vector.broadcast %cst_79 : f32 to vector<16x32xf32>
    %226 = arith.select %223, %224, %225 : vector<16x32xi1>, vector<16x32xf32>
    %cst_80 = arith.constant dense<0.000000e+00> : vector<16x16xf32>
    %227 = tpu.matmul %226, %207, %cst_80 {dimension_numbers = #tpu.dot_dimension_numbers<[1], [0], [0], [1], [0, 0, 1, 1], [], []>} : vector<16x32xf32>, vector<32x16xf32>, vector<16x16xf32> -> vector<16x16xf32>
    %228 = arith.maximumf %218, %227 : vector<16x16xf32>
    %229 = tpu.concatenate %115, %228 in 1 : vector<16x16xf32>, vector<16x16xf32> -> vector<16x32xf32>
    %cst_81 = arith.constant dense<0.000000e+00> : vector<32xf32>
    %230 = vector.multi_reduction <add>, %229, %cst_81 [0] : vector<16x32xf32> to vector<32xf32>
    %231 = vector.shape_cast %230 : vector<32xf32> to vector<1x32xf32>
    %cst_82 = arith.constant 1.600000e+01 : f32
    %232 = vector.broadcast %cst_82 : f32 to vector<1x32xf32>
    %233 = arith.divf %231, %232 : vector<1x32xf32>
    %c0_83 = arith.constant 0 : index
    %c0_84 = arith.constant 0 : index
    %c0_85 = arith.constant 0 : index
    %234 = vector.load %arg3[%c0_83, %c0_84, %c0_85] : memref<4x32x32xf32, #tpu.memory_space<vmem>>, vector<1x32x32xf32>
    %235 = vector.shape_cast %234 : vector<1x32x32xf32> to vector<32x32xf32>
    %cst_86 = arith.constant dense<0.000000e+00> : vector<1x32xf32>
    %236 = tpu.matmul %233, %235, %cst_86 {dimension_numbers = #tpu.dot_dimension_numbers<[1], [0], [0], [1], [0, 0, 1, 1], [], []>} : vector<1x32xf32>, vector<32x32xf32>, vector<1x32xf32> -> vector<1x32xf32>
    %237 = vector.extract_strided_slice %0 {offsets = [16, 0], sizes = [1, 32], strides = [1, 1]} : vector<20x32xf32> to vector<1x32xf32>
    %238 = arith.addf %236, %237 : vector<1x32xf32>
    %cst_87 = arith.constant 0.000000e+00 : f32
    %239 = vector.broadcast %cst_87 : f32 to vector<1x32xf32>
    %240 = arith.maximumf %238, %239 : vector<1x32xf32>
    %c1_88 = arith.constant 1 : index
    %c0_89 = arith.constant 0 : index
    %c0_90 = arith.constant 0 : index
    %241 = vector.load %arg3[%c1_88, %c0_89, %c0_90] : memref<4x32x32xf32, #tpu.memory_space<vmem>>, vector<1x32x32xf32>
    %242 = vector.shape_cast %241 : vector<1x32x32xf32> to vector<32x32xf32>
    %cst_91 = arith.constant dense<0.000000e+00> : vector<1x32xf32>
    %243 = tpu.matmul %240, %242, %cst_91 {dimension_numbers = #tpu.dot_dimension_numbers<[1], [0], [0], [1], [0, 0, 1, 1], [], []>} : vector<1x32xf32>, vector<32x32xf32>, vector<1x32xf32> -> vector<1x32xf32>
    %244 = vector.extract_strided_slice %0 {offsets = [17, 0], sizes = [1, 32], strides = [1, 1]} : vector<20x32xf32> to vector<1x32xf32>
    %245 = arith.addf %243, %244 : vector<1x32xf32>
    %cst_92 = arith.constant 0.000000e+00 : f32
    %246 = vector.broadcast %cst_92 : f32 to vector<1x32xf32>
    %247 = arith.maximumf %245, %246 : vector<1x32xf32>
    %cst_93 = arith.constant dense<0xFF800000> : vector<1xf32>
    %248 = vector.multi_reduction <maximumf>, %247, %cst_93 [1] : vector<1x32xf32> to vector<1xf32>
    %249 = vector.shape_cast %248 : vector<1xf32> to vector<1x1xf32>
    %250 = vector.broadcast %249 : vector<1x1xf32> to vector<1x32xf32>
    %251 = arith.subf %247, %250 : vector<1x32xf32>
    %252 = math.exp %251 : vector<1x32xf32>
    %cst_94 = arith.constant dense<0.000000e+00> : vector<1xf32>
    %253 = vector.multi_reduction <add>, %252, %cst_94 [1] : vector<1x32xf32> to vector<1xf32>
    %254 = vector.shape_cast %253 : vector<1xf32> to vector<1x1xf32>
    %255 = vector.broadcast %254 : vector<1x1xf32> to vector<1x32xf32>
    %256 = arith.divf %252, %255 : vector<1x32xf32>
    %257 = vector.broadcast %256 : vector<1x32xf32> to vector<16x32xf32>
    %258 = arith.mulf %229, %257 : vector<16x32xf32>
    %c2_95 = arith.constant 2 : index
    %c0_96 = arith.constant 0 : index
    %c0_97 = arith.constant 0 : index
    %259 = vector.load %arg3[%c2_95, %c0_96, %c0_97] : memref<4x32x32xf32, #tpu.memory_space<vmem>>, vector<1x32x32xf32>
    %260 = vector.shape_cast %259 : vector<1x32x32xf32> to vector<32x32xf32>
    %261 = vector.extract_strided_slice %260 {offsets = [0, 0], sizes = [32, 16], strides = [1, 1]} : vector<32x32xf32> to vector<32x16xf32>
    %cst_98 = arith.constant dense<0.000000e+00> : vector<16x16xf32>
    %262 = tpu.matmul %258, %261, %cst_98 {dimension_numbers = #tpu.dot_dimension_numbers<[1], [0], [0], [1], [0, 0, 1, 1], [], []>} : vector<16x32xf32>, vector<32x16xf32>, vector<16x16xf32> -> vector<16x16xf32>
    %263 = vector.extract_strided_slice %0 {offsets = [18, 0], sizes = [1, 16], strides = [1, 1]} : vector<20x32xf32> to vector<1x16xf32>
    %264 = vector.broadcast %263 : vector<1x16xf32> to vector<16x16xf32>
    %265 = arith.addf %262, %264 : vector<16x16xf32>
    %cst_99 = arith.constant 0.000000e+00 : f32
    %266 = vector.broadcast %cst_99 : f32 to vector<16x16xf32>
    %267 = arith.maximumf %265, %266 : vector<16x16xf32>
    %c3_100 = arith.constant 3 : index
    %c0_101 = arith.constant 0 : index
    %c0_102 = arith.constant 0 : index
    %268 = vector.load %arg3[%c3_100, %c0_101, %c0_102] : memref<4x32x32xf32, #tpu.memory_space<vmem>>, vector<1x32x32xf32>
    %269 = vector.shape_cast %268 : vector<1x32x32xf32> to vector<32x32xf32>
    %270 = vector.extract_strided_slice %269 {offsets = [0, 0], sizes = [16, 3], strides = [1, 1]} : vector<32x32xf32> to vector<16x3xf32>
    %cst_103 = arith.constant dense<0.000000e+00> : vector<16x3xf32>
    %271 = tpu.matmul %267, %270, %cst_103 {dimension_numbers = #tpu.dot_dimension_numbers<[1], [0], [0], [1], [0, 0, 1, 1], [], []>} : vector<16x16xf32>, vector<16x3xf32>, vector<16x3xf32> -> vector<16x3xf32>
    %272 = vector.extract_strided_slice %0 {offsets = [19, 0], sizes = [1, 3], strides = [1, 1]} : vector<20x32xf32> to vector<1x3xf32>
    %273 = vector.broadcast %272 : vector<1x3xf32> to vector<16x3xf32>
    %274 = arith.addf %271, %273 : vector<16x3xf32>
    %c0_104 = arith.constant 0 : index
    %c0_105 = arith.constant 0 : index
    %c0_106 = arith.constant 0 : index
    %275 = vector.load %arg5[%c0_104, %c0_105, %c0_106] : memref<1x16x3xf32, #tpu.memory_space<vmem>>, vector<1x16x3xf32>
    %276 = vector.shape_cast %275 : vector<1x16x3xf32> to vector<16x3xf32>
    %277 = vector.shape_cast %274 : vector<16x3xf32> to vector<1x16x3xf32>
    tpu.vector_store %arg5[%c0_104, %c0_105, %c0_106], %277 {strides = array<i32>} : memref<1x16x3xf32, #tpu.memory_space<vmem>>, vector<1x16x3xf32>,
    return
  }
  func.func @transform_0(%arg0: i32) -> (i32, i32, i32) {
    %c0_i32 = arith.constant 0 : i32
    %c0_i32_0 = arith.constant 0 : i32
    %c0_i32_1 = arith.constant 0 : i32
    return %arg0, %c0_i32, %c0_i32_0 : i32, i32, i32
  }
  func.func @transform_1(%arg0: i32) -> (i32, i32, i32) {
    %c0_i32 = arith.constant 0 : i32
    %c0_i32_0 = arith.constant 0 : i32
    %c0_i32_1 = arith.constant 0 : i32
    %c0_i32_2 = arith.constant 0 : i32
    return %c0_i32, %c0_i32_0, %c0_i32_1 : i32, i32, i32
  }
  func.func @transform_2(%arg0: i32) -> (i32, i32, i32) {
    %c0_i32 = arith.constant 0 : i32
    %c0_i32_0 = arith.constant 0 : i32
    %c0_i32_1 = arith.constant 0 : i32
    %c0_i32_2 = arith.constant 0 : i32
    return %c0_i32, %c0_i32_0, %c0_i32_1 : i32, i32, i32
  }
  func.func @transform_3(%arg0: i32) -> (i32, i32) {
    %c0_i32 = arith.constant 0 : i32
    %c0_i32_0 = arith.constant 0 : i32
    %c0_i32_1 = arith.constant 0 : i32
    return %c0_i32, %c0_i32_0 : i32, i32
  }
  func.func @transform_4(%arg0: i32) -> (i32, i32, i32) {
    %c0_i32 = arith.constant 0 : i32
    %c0_i32_0 = arith.constant 0 : i32
    %c0_i32_1 = arith.constant 0 : i32
    return %arg0, %c0_i32, %c0_i32_0 : i32, i32, i32
  }
}

</mosaic_0001>

<llo_original>
// kernel: ecg_seq_lab_net_forward.1
$region0: #{ecg_seq_lab_net_forward.1}
  #allocation0 [shape = 'u32[]', space=smem, size = 0x4, offset = 0x4, fixed_abs, tag = 'smem constant byte address 0x4 - core index']
  #allocation1 [shape = 'u32[144,128]{1,0:T(1,128)}', space=vmem, size = 0x12000, scoped, tag = 'internal scratch']
  %s0 = inlined_call_operand.vmem [shape: f32[2,64,12], index: 0, kind: input, shape index: {}]
  %s1 = inlined_call_operand.vmem [shape: f32[8,48,16], index: 1, kind: input, shape index: {}]
  %s2 = inlined_call_operand.vmem [shape: f32[4,32,32], index: 2, kind: input, shape index: {}]
  %s3 = inlined_call_operand.vmem [shape: f32[20,32], index: 3, kind: input, shape index: {}]
  %s4 = inlined_call_operand.vmem [shape: f32[2,16,3], index: 4, kind: output, shape index: {}]
  %s5 = sld [smem:[#allocation0]]
  $region49: #{ecg_seq_lab_net_forward.1} parent=0
    _
  %s7 = ssub.s32 1, %s5
  %s8 = scalar_select 0, %s7, %s5
  loop: start=0, step=1, limit=4
  $region2: #{ecg_seq_lab_net_forward.1} parent=0 // loop_pre_header
    _
  $region3: #{ecg_seq_lab_net_forward.1} parent=0 // loop_header
    %s10 = sphi 0, %s14
    %p11 = scmp.ge.s32.totalorder %s10, 4
    %s20 = sphi 0, %s22
    %s23 = sphi 0, %s20
    %s24 = sphi 0, %s23
    %s40 = sphi 0, %s24
    %s44 = sphi 0, %s44
    %s46 = sphi 0, %s44
    %s47 = sphi 0, %s46
    %s61 = sphi 0, %s47
    %s65 = sphi 0, %s65
    %s67 = sphi 0, %s65
    %s68 = sphi 0, %s67
    %s82 = sphi 0, %s68
    %s86 = sphi 0, %s86
    %s88 = sphi 0, %s86
    %s89 = sphi 0, %s88
    %s103 = sphi 0, %s89
    %s109 = sphi 0, %s111
    %s112 = sphi 0, %s109
    %s113 = sphi 0, %s112
    %s129 = sphi 0, %s113
  $region4: #{ecg_seq_lab_net_forward.1} parent=0 // loop_header_branch
    %13 = sbr.rel (%p11) target = $region8
  $region5: #{ecg_seq_lab_net_forward.1} parent=0 // loop_body
    %s15 = ssub.s32 %s10, 1
    %s16 = ssub.s32 %s10, 2
    %s17 = sadd.s32 %s10, 1
    %s18 = ssub.s32 %s10, %s17
    %p19 = scmp.eq.s32.totalorder %s18, 0
    %s21 = sadd.s32 %s20, 1
    %s22 = scalar_select %p19, %s20, %s21
    %p25 = pneg %p19
    %p26 = scmp.eq.s32.totalorder %s10, 1
    %p27 = por %p25, %p26
    %p28 = scmp.ne.s32.totalorder %s20, %s23
    %p29 = scmp.eq.s32.totalorder %s10, 0
    %p30 = por %p28, %p29
    %p31 = scmp.ne.s32.totalorder %s20, %s23
    %p32 = scmp.eq.s32.totalorder %s15, 1
    %p33 = por %p31, %p32
    %p34 = scmp.ne.s32.totalorder %s23, %s24
    %p35 = scmp.eq.s32.totalorder %s15, 0
    %p36 = por %p34, %p35
    %p37 = scmp.ne.s32.totalorder %s23, %s24
    %p38 = scmp.eq.s32.totalorder %s16, 1
    %p39 = por %p37, %p38
    %p41 = scmp.ne.s32.totalorder %s24, %s40
    %p42 = scmp.eq.s32.totalorder %s16, 0
    %p43 = por %p41, %p42
    %s45 = sadd.s32 %s44, 1
    %p48 = scmp.eq.s32.totalorder %s10, 1
    %p49 = scmp.ne.s32.totalorder %s44, %s46
    %p50 = scmp.eq.s32.totalorder %s10, 0
    %p51 = por %p49, %p50
    %p52 = scmp.ne.s32.totalorder %s44, %s46
    %p53 = scmp.eq.s32.totalorder %s15, 1
    %p54 = por %p52, %p53
    %p55 = scmp.ne.s32.totalorder %s46, %s47
    %p56 = scmp.eq.s32.totalorder %s15, 0
    %p57 = por %p55, %p56
    %p58 = scmp.ne.s32.totalorder %s46, %s47
    %p59 = scmp.eq.s32.totalorder %s16, 1
    %p60 = por %p58, %p59
    %p62 = scmp.ne.s32.totalorder %s47, %s61
    %p63 = scmp.eq.s32.totalorder %s16, 0
    %p64 = por %p62, %p63
    %s66 = sadd.s32 %s65, 1
    %p69 = scmp.eq.s32.totalorder %s10, 1
    %p70 = scmp.ne.s32.totalorder %s65, %s67
    %p71 = scmp.eq.s32.totalorder %s10, 0
    %p72 = por %p70, %p71
    %p73 = scmp.ne.s32.totalorder %s65, %s67
    %p74 = scmp.eq.s32.totalorder %s15, 1
    %p75 = por %p73, %p74
    %p76 = scmp.ne.s32.totalorder %s67, %s68
    %p77 = scmp.eq.s32.totalorder %s15, 0
    %p78 = por %p76, %p77
    %p79 = scmp.ne.s32.totalorder %s67, %s68
    %p80 = scmp.eq.s32.totalorder %s16, 1
    %p81 = por %p79, %p80
    %p83 = scmp.ne.s32.totalorder %s68, %s82
    %p84 = scmp.eq.s32.totalorder %s16, 0
    %p85 = por %p83, %p84
    %s87 = sadd.s32 %s86, 1
    %p90 = scmp.eq.s32.totalorder %s10, 1
    %p91 = scmp.ne.s32.totalorder %s86, %s88
    %p92 = scmp.eq.s32.totalorder %s10, 0
    %p93 = por %p91, %p92
    %p94 = scmp.ne.s32.totalorder %s86, %s88
    %p95 = scmp.eq.s32.totalorder %s15, 1
    %p96 = por %p94, %p95
    %p97 = scmp.ne.s32.totalorder %s88, %s89
    %p98 = scmp.eq.s32.totalorder %s15, 0
    %p99 = por %p97, %p98
    %p100 = scmp.ne.s32.totalorder %s88, %s89
    %p101 = scmp.eq.s32.totalorder %s16, 1
    %p102 = por %p100, %p101
    %p104 = scmp.ne.s32.totalorder %s89, %s103
    %p105 = scmp.eq.s32.totalorder %s16, 0
    %p106 = por %p104, %p105
    %s107 = ssub.s32 %s10, %s17
    %p108 = scmp.eq.s32.totalorder %s107, 0
    %s110 = sadd.s32 %s109, 1
    %s111 = scalar_select %p108, %s109, %s110
    %p114 = pneg %p108
    %p115 = scmp.eq.s32.totalorder %s10, 1
    %p116 = por %p114, %p115
    %p117 = scmp.ne.s32.totalorder %s109, %s112
    %p118 = scmp.eq.s32.totalorder %s10, 0
    %p119 = por %p117, %p118
    %p120 = scmp.ne.s32.totalorder %s109, %s112
    %p121 = scmp.eq.s32.totalorder %s15, 1
    %p122 = por %p120, %p121
    %p123 = scmp.ne.s32.totalorder %s112, %s113
    %p124 = scmp.eq.s32.totalorder %s15, 0
    %p125 = por %p123, %p124
    %p126 = scmp.ne.s32.totalorder %s112, %s113
    %p127 = scmp.eq.s32.totalorder %s16, 1
    %p128 = por %p126, %p127
    %p130 = scmp.ne.s32.totalorder %s113, %s129
    %p131 = scmp.eq.s32.totalorder %s16, 0
    %p132 = por %p130, %p131
    %p133 = scmp.le.s32.totalorder 1, %s10
    %p134 = scmp.lt.s32.totalorder %s10, 3
    %p135 = pnand %p133, %p134
    %p136 = pneg %p135
    // Predicated region
    $region9: #{ecg_seq_lab_net_forward.1} parent=5 // pred_check
      _
    $region10: #{ecg_seq_lab_net_forward.1} parent=5 // pred_check_branch
      %138 = sbr.rel (%p135) target = $region12
    $region11: #{ecg_seq_lab_net_forward.1} parent=5 // pred_region
      %s139 = ssub.s32 %s10, 1
      // Predicated region
      $region13: #{ecg_seq_lab_net_forward.1} parent=11 // pred_check
        %p140 = pneg %p57
      $region14: #{ecg_seq_lab_net_forward.1} parent=11 // pred_check_branch
        %142 = sbr.rel (%p140) target = $region16
      $region15: #{ecg_seq_lab_net_forward.1} parent=11 // pred_region
        _
      $region16: #{ecg_seq_lab_net_forward.1} parent=11 // pred_fallthru
        _
      // Predicated region
      $region17: #{ecg_seq_lab_net_forward.1} parent=11 // pred_check
        %p143 = pneg %p78
      $region18: #{ecg_seq_lab_net_forward.1} parent=11 // pred_check_branch
        %145 = sbr.rel (%p143) target = $region20
      $region19: #{ecg_seq_lab_net_forward.1} parent=11 // pred_region
        _
      $region20: #{ecg_seq_lab_net_forward.1} parent=11 // pred_fallthru
        _
      // Predicated region
      $region21: #{ecg_seq_lab_net_forward.1} parent=11 // pred_check
        %p146 = pneg %p99
      $region22: #{ecg_seq_lab_net_forward.1} parent=11 // pred_check_branch
        %148 = sbr.rel (%p146) target = $region24
      $region23: #{ecg_seq_lab_net_forward.1} parent=11 // pred_region
        _
      $region24: #{ecg_seq_lab_net_forward.1} parent=11 // pred_fallthru
        _
    $region12: #{ecg_seq_lab_net_forward.1} parent=5 // pred_fallthru
      _
    %p149 = scmp.lt.s32.totalorder %s10, 2
    // Predicated region
    $region25: #{ecg_seq_lab_net_forward.1} parent=5 // pred_check
      %p150 = pneg %p149
    $region26: #{ecg_seq_lab_net_forward.1} parent=5 // pred_check_branch
      %152 = sbr.rel (%p150) target = $region28
    $region27: #{ecg_seq_lab_net_forward.1} parent=5 // pred_region
      // Predicated region
      $region29: #{ecg_seq_lab_net_forward.1} parent=27 // pred_check
        %p153 = pneg %p30
      $region30: #{ecg_seq_lab_net_forward.1} parent=27 // pred_check_branch
        %155 = sbr.rel (%p153) target = $region32
      $region31: #{ecg_seq_lab_net_forward.1} parent=27 // pred_region
        %p156 = scmp.lt.s32.totalorder %s10, 1
        %s157 = scalar_select %p156, %s10, 1
        %s158 = smul.addr %s157, 8
        %s159 = smul.addr %s158, 8
        %s160 = scalar_lea.vmem %s0, %s159
      $region32: #{ecg_seq_lab_net_forward.1} parent=27 // pred_fallthru
        _
    $region28: #{ecg_seq_lab_net_forward.1} parent=5 // pred_fallthru
      _
    %p161 = scmp.le.s32.totalorder 1, %s10
    %p162 = scmp.lt.s32.totalorder %s10, 3
    %p163 = pnand %p161, %p162
    %p164 = pneg %p163
    // Predicated region
    $region33: #{ecg_seq_lab_net_forward.1} parent=5 // pred_check
      _
    $region34: #{ecg_seq_lab_net_forward.1} parent=5 // pred_check_branch
      %166 = sbr.rel (%p163) target = $region36
    $region35: #{ecg_seq_lab_net_forward.1} parent=5 // pred_region
      %s167 = ssub.s32 %s10, 1
      %p168 = scmp.lt.s32.totalorder %s15, 1
      %s169 = scalar_select %p168, %s15, 1
      %s170 = smul.addr %s169, 8
      %s171 = smul.addr %s170, 8
      %s172 = scalar_lea.vmem %s0, %s171
      %p173 = pneg %p36
      %p174 = pneg %p33
      %p175 = pneg %p57
      %p176 = pneg %p54
      %p177 = pneg %p78
      %p178 = pneg %p75
      %p179 = pneg %p99
      %p180 = pneg %p96
      %p181 = pneg %p125
      %p182 = pneg %p122
      %p183 = scmp.lt.s32.totalorder %s15, 1
      %s184 = scalar_select %p183, %s15, 1
      %s185 = smul.addr %s184, 2
      %s186 = smul.addr %s185, 8
      %s187 = scalar_lea.vmem %s4, %s186
      %p188 = scmp.lt.s32.totalorder %s15, 1
      %s189 = scalar_select %p188, %s15, 1
      %s190 = smul.addr %s189, 8
      %s191 = smul.addr %s190, 8
      %s192 = scalar_lea.vmem %s0, %s191
      %p193 = scmp.lt.s32.totalorder %s15, 1
      %s194 = scalar_select %p193, %s15, 1
      %s195 = smul.addr %s194, 2
      %s196 = smul.addr %s195, 8
      %s197 = scalar_lea.vmem %s4, %s196
      %v198 = vld [vmem:[%s3] sm:$0xff]
      %v199 = vld [vmem:[%s3 + $0x8] sm:$0xff]
      %v200 = vld [vmem:[%s3 + $0x10] sm:$0xf]
      %v201 = vld [vmem:[%s192] sm:$0xff]
      %v202 = vld [vmem:[%s192 + $0x8] sm:$0xff]
      %v203 = vld [vmem:[%s192 + $0x10] sm:$0xff]
      %v204 = vld [vmem:[%s192 + $0x18] sm:$0xff]
      %v205 = vld [vmem:[%s192 + $0x20] sm:$0xff]
      %v206 = vld [vmem:[%s192 + $0x28] sm:$0xff]
      %v207 = vld [vmem:[%s192 + $0x30] sm:$0xff]
      %v208 = vld [vmem:[%s192 + $0x38] sm:$0xff]
      %vm217 = vcmask 1040384
      %v218 = vrot.slane %v201, 7
      %v219 = vrot.slane %v202, 7
      %v220 = vsel %vm217, %v218, %v219
      %v221 = vrot.slane %v203, 7
      %v222 = vsel %vm217, %v219, %v221
      %v223 = vrot.slane %v204, 7
      %v224 = vsel %vm217, %v221, %v223
      %v225 = vrot.slane %v205, 7
      %v226 = vsel %vm217, %v223, %v225
      %v227 = vrot.slane %v206, 7
      %v228 = vsel %vm217, %v225, %v227
      %v229 = vrot.slane %v207, 7
      %v230 = vsel %vm217, %v227, %v229
      %v231 = vrot.slane %v208, 7
      %v232 = vsel %vm217, %v229, %v231
      %v242 = vsel %vm217, 0.0, %v218
      %v243 = vsel %vm217, %v231, 0.0
      %vm246 = vcmask 1046528
      %v247 = vrot.slane %v242, 1
      %v248 = vrot.slane %v220, 1
      %v249 = vsel %vm246, %v247, %v248
      %v250 = vrot.slane %v222, 1
      %v251 = vsel %vm246, %v248, %v250
      %v252 = vrot.slane %v224, 1
      %v253 = vsel %vm246, %v250, %v252
      %v254 = vrot.slane %v226, 1
      %v255 = vsel %vm246, %v252, %v254
      %v256 = vrot.slane %v228, 1
      %v257 = vsel %vm246, %v254, %v256
      %v258 = vrot.slane %v230, 1
      %v259 = vsel %vm246, %v256, %v258
      %v260 = vrot.slane %v232, 1
      %v261 = vsel %vm246, %v258, %v260
      %v262 = vrot.slane %v243, 1
      %v263 = vsel %vm246, %v260, %v262
      %264 = vrot.lane.b32.xlu0 %v249, 12
      %v265 = vpop.permute.xlu0 %264
      %266 = vrot.lane.b32.xlu0 %v251, 12
      %v267 = vpop.permute.xlu0 %266
      %268 = vrot.lane.b32.xlu0 %v253, 12
      %v269 = vpop.permute.xlu0 %268
      %270 = vrot.lane.b32.xlu0 %v255, 12
      %v271 = vpop.permute.xlu0 %270
      %272 = vrot.lane.b32.xlu0 %v257, 12
      %v273 = vpop.permute.xlu0 %272
      %274 = vrot.lane.b32.xlu0 %v259, 12
      %v275 = vpop.permute.xlu0 %274
      %276 = vrot.lane.b32.xlu0 %v261, 12
      %v277 = vpop.permute.xlu0 %276
      %278 = vrot.lane.b32.xlu0 %v263, 12
      %v279 = vpop.permute.xlu0 %278
      %vm288 = vcmask 1045504
      %v289 = vrot.slane %v242, 2
      %v290 = vrot.slane %v220, 2
      %v291 = vsel %vm288, %v289, %v290
      %v292 = vrot.slane %v222, 2
      %v293 = vsel %vm288, %v290, %v292
      %v294 = vrot.slane %v224, 2
      %v295 = vsel %vm288, %v292, %v294
      %v296 = vrot.slane %v226, 2
      %v297 = vsel %vm288, %v294, %v296
      %v298 = vrot.slane %v228, 2
      %v299 = vsel %vm288, %v296, %v298
      %v300 = vrot.slane %v230, 2
      %v301 = vsel %vm288, %v298, %v300
      %v302 = vrot.slane %v232, 2
      %v303 = vsel %vm288, %v300, %v302
      %v304 = vrot.slane %v243, 2
      %v305 = vsel %vm288, %v302, %v304
      %306 = vrot.lane.b32.xlu0 %v291, 24
      %v307 = vpop.permute.xlu0 %306
      %308 = vrot.lane.b32.xlu0 %v293, 24
      %v309 = vpop.permute.xlu0 %308
      %310 = vrot.lane.b32.xlu0 %v295, 24
      %v311 = vpop.permute.xlu0 %310
      %312 = vrot.lane.b32.xlu0 %v297, 24
      %v313 = vpop.permute.xlu0 %312
      %314 = vrot.lane.b32.xlu0 %v299, 24
      %v315 = vpop.permute.xlu0 %314
      %316 = vrot.lane.b32.xlu0 %v301, 24
      %v317 = vpop.permute.xlu0 %316
      %318 = vrot.lane.b32.xlu0 %v303, 24
      %v319 = vpop.permute.xlu0 %318
      %320 = vrot.lane.b32.xlu0 %v305, 24
      %v321 = vpop.permute.xlu0 %320
      %vm330 = vcmask 97280
      %v331 = vsel %vm330, %v242, %v265
      %v332 = vsel %vm330, %v220, %v267
      %v333 = vsel %vm330, %v222, %v269
      %v334 = vsel %vm330, %v224, %v271
      %v335 = vsel %vm330, %v226, %v273
      %v336 = vsel %vm330, %v228, %v275
      %v337 = vsel %vm330, %v230, %v277
      %v338 = vsel %vm330, %v232, %v279
      %vm339 = vcmask 195584
      %v340 = vsel %vm339, %v331, %v307
      %v341 = vsel %vm339, %v332, %v309
      %v342 = vsel %vm339, %v333, %v311
      %v343 = vsel %vm339, %v334, %v313
      %v344 = vsel %vm339, %v335, %v315
      %v345 = vsel %vm339, %v336, %v317
      %v346 = vsel %vm339, %v337, %v319
      %v347 = vsel %vm339, %v338, %v321
      %v348 = vld [vmem:[%s1] sm:$0xff]
      %v349 = vld [vmem:[%s1 + $0x8] sm:$0xff]
      %v350 = vld [vmem:[%s1 + $0x10] sm:$0xff]
      %v351 = vld [vmem:[%s1 + $0x18] sm:$0xff]
      %v352 = vld [vmem:[%s1 + $0x20] sm:$0xff]
      %v353 = vlaneseq
      %v354 = vshrl.u32 %v353, 7
      %v355 = vsub.s32 0, %v354
      %v356 = vrot.slane %v198, %v355
      %vm357 = vcmask 293888
      %v359 = vsel %vm357, %v340, 0
      %v362 = vsel %vm357, %v341, 0
      %v365 = vsel %vm357, %v342, 0
      %v368 = vsel %vm357, %v343, 0
      %v371 = vsel %vm357, %v344, 0
      %v374 = vsel %vm357, %v345, 0
      %v377 = vsel %vm357, %v346, 0
      %v380 = vsel %vm357, %v347, 0
      %vm382 = vcmask 1043456
      %v384 = vsel %vm382, %v352, 0
      %386 = vmatprep.subr.mxu0 0.0
      %387 = vmatpush1.msra.mxu0 0.0
      %388 = vmatprep.subr.mxu0 0.0
      %389 = vmatpush1.msra.mxu0 0.0
      %390 = vmatprep.subr.mxu0 0.0
      %391 = vmatpush1.msra.mxu0 0.0
      %392 = vmatprep.subr.mxu0 0.0
      %393 = vmatpush1.msra.mxu0 0.0
      %394 = vmatprep.subr.mxu0 0.0
      %395 = vmatpush1.msra.mxu0 0.0
      %396 = vmatprep.subr.mxu0 0.0
      %397 = vmatpush1.msra.mxu0 0.0
      %398 = vmatprep.subr.mxu0 0.0
      %399 = vmatpush1.msra.mxu0 0.0
      %400 = vmatprep.subr.mxu0 0.0
      %401 = vmatpush1.msra.mxu0 0.0
      %402 = vmatprep.subr.mxu0 0.0
      %403 = vmatpush1.msra.mxu0 0.0
      %404 = vmatprep.subr.mxu0 0.0
      %405 = vmatpush1.msra.mxu0 0.0
      %406 = vmatprep.subr.mxu0 0.0
      %407 = vmatpush1.msra.mxu0 0.0
      %408 = vmatprep.subr.mxu0 0.0
      %409 = vmatpush1.msra.mxu0 %v384
      %410 = vmatprep.subr.mxu0 0.0
      %411 = vmatpush1.msra.mxu0 %v351
      %412 = vmatprep.subr.mxu0 0.0
      %413 = vmatpush1.msra.mxu0 %v350
      %414 = vmatprep.subr.mxu0 0.0
      %415 = vmatpush1.msra.mxu0 %v349
      %416 = vmatprep.subr.mxu0 0.0
      %417 = vmatpush1.msra.mxu0 %v348
      %418 = vmatprep.subr.mxu0 0.0
      %419 = vmatpush2.msra.mxu0 0.0
      %420 = vmatprep.subr.mxu0 0.0
      %421 = vmatpush2.msra.mxu0 0.0
      %422 = vmatprep.subr.mxu0 0.0
      %423 = vmatpush2.msra.mxu0 0.0
      %424 = vmatprep.subr.mxu0 0.0
      %425 = vmatpush2.msra.mxu0 0.0
      %426 = vmatprep.subr.mxu0 0.0
      %427 = vmatpush2.msra.mxu0 0.0
      %428 = vmatprep.subr.mxu0 0.0
      %429 = vmatpush2.msra.mxu0 0.0
      %430 = vmatprep.subr.mxu0 0.0
      %431 = vmatpush2.msra.mxu0 0.0
      %432 = vmatprep.subr.mxu0 0.0
      %433 = vmatpush2.msra.mxu0 0.0
      %434 = vmatprep.subr.mxu0 0.0
      %435 = vmatpush2.msra.mxu0 0.0
      %436 = vmatprep.subr.mxu0 0.0
      %437 = vmatpush2.msra.mxu0 0.0
      %438 = vmatprep.subr.mxu0 0.0
      %439 = vmatpush2.msra.mxu0 0.0
      %440 = vmatprep.subr.mxu0 0.0
      %441 = vmatpush2.msra.mxu0 0.0
      %442 = vmatprep.subr.mxu0 0.0
      %443 = vmatpush2.msra.mxu0 0.0
      %444 = vmatprep.subr.mxu0 0.0
      %445 = vmatpush2.msra.mxu0 0.0
      %446 = vmatprep.subr.mxu0 0.0
      %447 = vmatpush2.msra.mxu0 0.0
      %448 = vmatprep.subr.mxu0 0.0
      %449 = vmatpush2.msra.mxu0 0.0
      %450 = vmatprep.mubr.f32.mxu0 0.0
      %451 = vmatmul.mubr.f32.gmra.mxu0 %v359
      %v452 = vpop.f32.mrf.mxu0
      %v453 = vadd.f32 %v356, %v452
      %v454 = vpop.f32.mrf.mxu0
      %455 = vmatprep.mubr.f32.mxu0 0.0
      %456 = vmatmul.mubr.f32.gmra.mxu0 %v362
      %v457 = vpop.f32.mrf.mxu0
      %v458 = vadd.f32 %v356, %v457
      %v459 = vpop.f32.mrf.mxu0
      %460 = vmatprep.mubr.f32.mxu0 0.0
      %461 = vmatmul.mubr.f32.gmra.mxu0 %v365
      %v462 = vpop.f32.mrf.mxu0
      %v463 = vadd.f32 %v356, %v462
      %v464 = vpop.f32.mrf.mxu0
      %465 = vmatprep.mubr.f32.mxu0 0.0
      %466 = vmatmul.mubr.f32.gmra.mxu0 %v368
      %v467 = vpop.f32.mrf.mxu0
      %v468 = vadd.f32 %v356, %v467
      %v469 = vpop.f32.mrf.mxu0
      %470 = vmatprep.mubr.f32.mxu0 0.0
      %471 = vmatmul.mubr.f32.gmra.mxu0 %v371
      %v472 = vpop.f32.mrf.mxu0
      %v473 = vadd.f32 %v356, %v472
      %v474 = vpop.f32.mrf.mxu0
      %475 = vmatprep.mubr.f32.mxu0 0.0
      %476 = vmatmul.mubr.f32.gmra.mxu0 %v374
      %v477 = vpop.f32.mrf.mxu0
      %v478 = vadd.f32 %v356, %v477
      %v479 = vpop.f32.mrf.mxu0
      %480 = vmatprep.mubr.f32.mxu0 0.0
      %481 = vmatmul.mubr.f32.gmra.mxu0 %v377
      %v482 = vpop.f32.mrf.mxu0
      %v483 = vadd.f32 %v356, %v482
      %v484 = vpop.f32.mrf.mxu0
      %485 = vmatprep.mubr.f32.mxu0 0.0
      %486 = vmatmul.mubr.f32.gmra.mxu0 %v380
      %v487 = vpop.f32.mrf.mxu0
      %v488 = vadd.f32 %v356, %v487
      %v489 = vpop.f32.mrf.mxu0
      %490 = vdwg.mxu0
      %v491 = vmax.f32 %v453, 0.0
      %v492 = vmax.f32 %v458, 0.0
      %v493 = vmax.f32 %v463, 0.0
      %v494 = vmax.f32 %v468, 0.0
      %v495 = vmax.f32 %v473, 0.0
      %v496 = vmax.f32 %v478, 0.0
      %v497 = vmax.f32 %v483, 0.0
      %v498 = vmax.f32 %v488, 0.0
      %v507 = vrot.slane %v491, 7
      %v508 = vrot.slane %v492, 7
      %v509 = vsel %vm217, %v507, %v508
      %v510 = vrot.slane %v493, 7
      %v511 = vsel %vm217, %v508, %v510
      %v512 = vrot.slane %v494, 7
      %v513 = vsel %vm217, %v510, %v512
      %v514 = vrot.slane %v495, 7
      %v515 = vsel %vm217, %v512, %v514
      %v516 = vrot.slane %v496, 7
      %v517 = vsel %vm217, %v514, %v516
      %v518 = vrot.slane %v497, 7
      %v519 = vsel %vm217, %v516, %v518
      %v520 = vrot.slane %v498, 7
      %v521 = vsel %vm217, %v518, %v520
      %v531 = vsel %vm217, 0.0, %v507
      %v532 = vsel %vm217, %v520, 0.0
      %v535 = vrot.slane %v531, 1
      %v536 = vrot.slane %v509, 1
      %v537 = vsel %vm246, %v535, %v536
      %v538 = vrot.slane %v511, 1
      %v539 = vsel %vm246, %v536, %v538
      %v540 = vrot.slane %v513, 1
      %v541 = vsel %vm246, %v538, %v540
      %v542 = vrot.slane %v515, 1
      %v543 = vsel %vm246, %v540, %v542
      %v544 = vrot.slane %v517, 1
      %v545 = vsel %vm246, %v542, %v544
      %v546 = vrot.slane %v519, 1
      %v547 = vsel %vm246, %v544, %v546
      %v548 = vrot.slane %v521, 1
      %v549 = vsel %vm246, %v546, %v548
      %v550 = vrot.slane %v532, 1
      %v551 = vsel %vm246, %v548, %v550
      %552 = vrot.lane.b32.xlu0 %v537, 8
      %v553 = vpop.permute.xlu0 %552
      %554 = vrot.lane.b32.xlu0 %v539, 8
      %v555 = vpop.permute.xlu0 %554
      %556 = vrot.lane.b32.xlu0 %v541, 8
      %v557 = vpop.permute.xlu0 %556
      %558 = vrot.lane.b32.xlu0 %v543, 8
      %v559 = vpop.permute.xlu0 %558
      %560 = vrot.lane.b32.xlu0 %v545, 8
      %v561 = vpop.permute.xlu0 %560
      %562 = vrot.lane.b32.xlu0 %v547, 8
      %v563 = vpop.permute.xlu0 %562
      %564 = vrot.lane.b32.xlu0 %v549, 8
      %v565 = vpop.permute.xlu0 %564
      %566 = vrot.lane.b32.xlu0 %v551, 8
      %v567 = vpop.permute.xlu0 %566
      %v576 = vrot.slane %v531, 2
      %v577 = vrot.slane %v509, 2
      %v578 = vsel %vm288, %v576, %v577
      %v579 = vrot.slane %v511, 2
      %v580 = vsel %vm288, %v577, %v579
      %v581 = vrot.slane %v513, 2
      %v582 = vsel %vm288, %v579, %v581
      %v583 = vrot.slane %v515, 2
      %v584 = vsel %vm288, %v581, %v583
      %v585 = vrot.slane %v517, 2
      %v586 = vsel %vm288, %v583, %v585
      %v587 = vrot.slane %v519, 2
      %v588 = vsel %vm288, %v585, %v587
      %v589 = vrot.slane %v521, 2
      %v590 = vsel %vm288, %v587, %v589
      %v591 = vrot.slane %v532, 2
      %v592 = vsel %vm288, %v589, %v591
      %593 = vrot.lane.b32.xlu0 %v578, 16
      %v594 = vpop.permute.xlu0 %593
      %595 = vrot.lane.b32.xlu0 %v580, 16
      %v596 = vpop.permute.xlu0 %595
      %597 = vrot.lane.b32.xlu0 %v582, 16
      %v598 = vpop.permute.xlu0 %597
      %599 = vrot.lane.b32.xlu0 %v584, 16
      %v600 = vpop.permute.xlu0 %599
      %601 = vrot.lane.b32.xlu0 %v586, 16
      %v602 = vpop.permute.xlu0 %601
      %603 = vrot.lane.b32.xlu0 %v588, 16
      %v604 = vpop.permute.xlu0 %603
      %605 = vrot.lane.b32.xlu0 %v590, 16
      %v606 = vpop.permute.xlu0 %605
      %607 = vrot.lane.b32.xlu0 %v592, 16
      %v608 = vpop.permute.xlu0 %607
      %vm617 = vcmask 64512
      %v618 = vsel %vm617, %v531, %v553
      %v619 = vsel %vm617, %v509, %v555
      %v620 = vsel %vm617, %v511, %v557
      %v621 = vsel %vm617, %v513, %v559
      %v622 = vsel %vm617, %v515, %v561
      %v623 = vsel %vm617, %v517, %v563
      %v624 = vsel %vm617, %v519, %v565
      %v625 = vsel %vm617, %v521, %v567
      %vm626 = vcmask 130048
      %v627 = vsel %vm626, %v618, %v594
      %v628 = vsel %vm626, %v619, %v596
      %v629 = vsel %vm626, %v620, %v598
      %v630 = vsel %vm626, %v621, %v600
      %v631 = vsel %vm626, %v622, %v602
      %v632 = vsel %vm626, %v623, %v604
      %v633 = vsel %vm626, %v624, %v606
      %v634 = vsel %vm626, %v625, %v608
      %s635 = scalar_lea.vmem %s1, 48
      %v636 = vld [vmem:[%s635] sm:$0xff]
      %v637 = vld [vmem:[%s635 + $0x8] sm:$0xff]
      %v638 = vld [vmem:[%s635 + $0x10] sm:$0xff]
      %v639 = vlaneseq
      %v640 = vshrl.u32 %v639, 7
      %v641 = vsub.s32 1, %v640
      %v642 = vrot.slane %v198, %v641
      %v644 = vsel %vm339, %v627, 0
      %v647 = vsel %vm339, %v628, 0
      %v650 = vsel %vm339, %v629, 0
      %v653 = vsel %vm339, %v630, 0
      %v656 = vsel %vm339, %v631, 0
      %v659 = vsel %vm339, %v632, 0
      %v662 = vsel %vm339, %v633, 0
      %v665 = vsel %vm339, %v634, 0
      %667 = vmatprep.subr.mxu0 0.0
      %668 = vmatpush1.msra.mxu0 0.0
      %669 = vmatprep.subr.mxu0 0.0
      %670 = vmatpush1.msra.mxu0 0.0
      %671 = vmatprep.subr.mxu0 0.0
      %672 = vmatpush1.msra.mxu0 0.0
      %673 = vmatprep.subr.mxu0 0.0
      %674 = vmatpush1.msra.mxu0 0.0
      %675 = vmatprep.subr.mxu0 0.0
      %676 = vmatpush1.msra.mxu0 0.0
      %677 = vmatprep.subr.mxu0 0.0
      %678 = vmatpush1.msra.mxu0 0.0
      %679 = vmatprep.subr.mxu0 0.0
      %680 = vmatpush1.msra.mxu0 0.0
      %681 = vmatprep.subr.mxu0 0.0
      %682 = vmatpush1.msra.mxu0 0.0
      %683 = vmatprep.subr.mxu0 0.0
      %684 = vmatpush1.msra.mxu0 0.0
      %685 = vmatprep.subr.mxu0 0.0
      %686 = vmatpush1.msra.mxu0 0.0
      %687 = vmatprep.subr.mxu0 0.0
      %688 = vmatpush1.msra.mxu0 0.0
      %689 = vmatprep.subr.mxu0 0.0
      %690 = vmatpush1.msra.mxu0 0.0
      %691 = vmatprep.subr.mxu0 0.0
      %692 = vmatpush1.msra.mxu0 0.0
      %693 = vmatprep.subr.mxu0 0.0
      %694 = vmatpush1.msra.mxu0 %v638
      %695 = vmatprep.subr.mxu0 0.0
      %696 = vmatpush1.msra.mxu0 %v637
      %697 = vmatprep.subr.mxu0 0.0
      %698 = vmatpush1.msra.mxu0 %v636
      %699 = vmatprep.subr.mxu0 0.0
      %700 = vmatpush2.msra.mxu0 0.0
      %701 = vmatprep.subr.mxu0 0.0
      %702 = vmatpush2.msra.mxu0 0.0
      %703 = vmatprep.subr.mxu0 0.0
      %704 = vmatpush2.msra.mxu0 0.0
      %705 = vmatprep.subr.mxu0 0.0
      %706 = vmatpush2.msra.mxu0 0.0
      %707 = vmatprep.subr.mxu0 0.0
      %708 = vmatpush2.msra.mxu0 0.0
      %709 = vmatprep.subr.mxu0 0.0
      %710 = vmatpush2.msra.mxu0 0.0
      %711 = vmatprep.subr.mxu0 0.0
      %712 = vmatpush2.msra.mxu0 0.0
      %713 = vmatprep.subr.mxu0 0.0
      %714 = vmatpush2.msra.mxu0 0.0
      %715 = vmatprep.subr.mxu0 0.0
      %716 = vmatpush2.msra.mxu0 0.0
      %717 = vmatprep.subr.mxu0 0.0
      %718 = vmatpush2.msra.mxu0 0.0
      %719 = vmatprep.subr.mxu0 0.0
      %720 = vmatpush2.msra.mxu0 0.0
      %721 = vmatprep.subr.mxu0 0.0
      %722 = vmatpush2.msra.mxu0 0.0
      %723 = vmatprep.subr.mxu0 0.0
      %724 = vmatpush2.msra.mxu0 0.0
      %725 = vmatprep.subr.mxu0 0.0
      %726 = vmatpush2.msra.mxu0 0.0
      %727 = vmatprep.subr.mxu0 0.0
      %728 = vmatpush2.msra.mxu0 0.0
      %729 = vmatprep.subr.mxu0 0.0
      %730 = vmatpush2.msra.mxu0 0.0
      %731 = vmatprep.mubr.f32.mxu0 0.0
      %732 = vmatmul.mubr.f32.gmra.mxu0 %v644
      %v733 = vpop.f32.mrf.mxu0
      %v734 = vadd.f32 %v642, %v733
      %v735 = vpop.f32.mrf.mxu0
      %736 = vmatprep.mubr.f32.mxu0 0.0
      %737 = vmatmul.mubr.f32.gmra.mxu0 %v647
      %v738 = vpop.f32.mrf.mxu0
      %v739 = vadd.f32 %v642, %v738
      %v740 = vpop.f32.mrf.mxu0
      %741 = vmatprep.mubr.f32.mxu0 0.0
      %742 = vmatmul.mubr.f32.gmra.mxu0 %v650
      %v743 = vpop.f32.mrf.mxu0
      %v744 = vadd.f32 %v642, %v743
      %v745 = vpop.f32.mrf.mxu0
      %746 = vmatprep.mubr.f32.mxu0 0.0
      %747 = vmatmul.mubr.f32.gmra.mxu0 %v653
      %v748 = vpop.f32.mrf.mxu0
      %v749 = vadd.f32 %v642, %v748
      %v750 = vpop.f32.mrf.mxu0
      %751 = vmatprep.mubr.f32.mxu0 0.0
      %752 = vmatmul.mubr.f32.gmra.mxu0 %v656
      %v753 = vpop.f32.mrf.mxu0
      %v754 = vadd.f32 %v642, %v753
      %v755 = vpop.f32.mrf.mxu0
      %756 = vmatprep.mubr.f32.mxu0 0.0
      %757 = vmatmul.mubr.f32.gmra.mxu0 %v659
      %v758 = vpop.f32.mrf.mxu0
      %v759 = vadd.f32 %v642, %v758
      %v760 = vpop.f32.mrf.mxu0
      %761 = vmatprep.mubr.f32.mxu0 0.0
      %762 = vmatmul.mubr.f32.gmra.mxu0 %v662
      %v763 = vpop.f32.mrf.mxu0
      %v764 = vadd.f32 %v642, %v763
      %v765 = vpop.f32.mrf.mxu0
      %766 = vmatprep.mubr.f32.mxu0 0.0
      %767 = vmatmul.mubr.f32.gmra.mxu0 %v665
      %v768 = vpop.f32.mrf.mxu0
      %v769 = vadd.f32 %v642, %v768
      %v770 = vpop.f32.mrf.mxu0
      %771 = vdwg.mxu0
      %v772 = vmax.f32 %v734, 0.0
      %v773 = vmax.f32 %v739, 0.0
      %v774 = vmax.f32 %v744, 0.0
      %v775 = vmax.f32 %v749, 0.0
      %v776 = vmax.f32 %v754, 0.0
      %v777 = vmax.f32 %v759, 0.0
      %v778 = vmax.f32 %v764, 0.0
      %v779 = vmax.f32 %v769, 0.0
      %v780 = vlaneseq
      %v781 = vshrl.u32 %v780, 7
      %v782 = vsub.s32 0, %v781
      %v783 = vrot.slane %v199, %v782
      %v784 = vmul.f32 %v772, %v783
      %v785 = vmul.f32 %v773, %v783
      %v786 = vmul.f32 %v774, %v783
      %v787 = vmul.f32 %v775, %v783
      %v788 = vmul.f32 %v776, %v783
      %v789 = vmul.f32 %v777, %v783
      %v790 = vmul.f32 %v778, %v783
      %v791 = vmul.f32 %v779, %v783
      %v792 = vlaneseq
      %v793 = vshrl.u32 %v792, 7
      %v794 = vsub.s32 4, %v793
      %v795 = vrot.slane %v199, %v794
      %v796 = vadd.f32 %v784, %v795
      %v797 = vadd.f32 %v785, %v795
      %v798 = vadd.f32 %v786, %v795
      %v799 = vadd.f32 %v787, %v795
      %v800 = vadd.f32 %v788, %v795
      %v801 = vadd.f32 %v789, %v795
      %v802 = vadd.f32 %v790, %v795
      %v803 = vadd.f32 %v791, %v795
      %v804 = vlaneseq
      %v805 = vshrl.u32 %v804, 7
      %v806 = vadd.s32 %v805, 8
      %v807 = vadd.s32 %v805, 16
      %v808 = vadd.s32 %v805, 24
      %v809 = vlaneseq
      %v810 = vand.u32 %v809, 127
      %v811 = vmul.u32 %v805, 2
      %v812 = vmul.u32 %v806, 2
      %v813 = vmul.u32 %v807, 2
      %v814 = vmul.u32 %v808, 2
      %vm815 = vcmp.eq.s32.totalorder %v810, %v811
      %vm816 = vcmp.eq.s32.totalorder %v810, %v812
      %vm817 = vcmp.eq.s32.totalorder %v810, %v813
      %vm818 = vcmp.eq.s32.totalorder %v810, %v814
      %v819 = vsel %vm815, 1.0, 0.0
      %v820 = vsel %vm816, 1.0, 0.0
      %v821 = vsel %vm817, 1.0, 0.0
      %v822 = vsel %vm818, 1.0, 0.0
      %vm823 = vcmask 523264
      %v825 = vsel %vm823, %v819, 0
      %v828 = vsel %vm823, %v820, 0
      %v831 = vsel %vm823, %v821, 0
      %v834 = vsel %vm823, %v822, 0
      %836 = vmatprep.subr.mxu0 0.0
      %837 = vmatpush1.msra.mxu0 0.0
      %838 = vmatprep.subr.mxu0 0.0
      %839 = vmatpush1.msra.mxu0 0.0
      %840 = vmatprep.subr.mxu0 0.0
      %841 = vmatpush1.msra.mxu0 0.0
      %842 = vmatprep.subr.mxu0 0.0
      %843 = vmatpush1.msra.mxu0 0.0
      %844 = vmatprep.subr.mxu0 0.0
      %845 = vmatpush1.msra.mxu0 0.0
      %846 = vmatprep.subr.mxu0 0.0
      %847 = vmatpush1.msra.mxu0 0.0
      %848 = vmatprep.subr.mxu0 0.0
      %849 = vmatpush1.msra.mxu0 0.0
      %850 = vmatprep.subr.mxu0 0.0
      %851 = vmatpush1.msra.mxu0 0.0
      %852 = vmatprep.subr.mxu0 0.0
      %853 = vmatpush1.msra.mxu0 %v803
      %854 = vmatprep.subr.mxu0 0.0
      %855 = vmatpush1.msra.mxu0 %v802
      %856 = vmatprep.subr.mxu0 0.0
      %857 = vmatpush1.msra.mxu0 %v801
      %858 = vmatprep.subr.mxu0 0.0
      %859 = vmatpush1.msra.mxu0 %v800
      %860 = vmatprep.subr.mxu0 0.0
      %861 = vmatpush1.msra.mxu0 %v799
      %862 = vmatprep.subr.mxu0 0.0
      %863 = vmatpush1.msra.mxu0 %v798
      %864 = vmatprep.subr.mxu0 0.0
      %865 = vmatpush1.msra.mxu0 %v797
      %866 = vmatprep.subr.mxu0 0.0
      %867 = vmatpush1.msra.mxu0 %v796
      %868 = vmatprep.subr.mxu0 0.0
      %869 = vmatpush2.msra.mxu0 0.0
      %870 = vmatprep.subr.mxu0 0.0
      %871 = vmatpush2.msra.mxu0 0.0
      %872 = vmatprep.subr.mxu0 0.0
      %873 = vmatpush2.msra.mxu0 0.0
      %874 = vmatprep.subr.mxu0 0.0
      %875 = vmatpush2.msra.mxu0 0.0
      %876 = vmatprep.subr.mxu0 0.0
      %877 = vmatpush2.msra.mxu0 0.0
      %878 = vmatprep.subr.mxu0 0.0
      %879 = vmatpush2.msra.mxu0 0.0
      %880 = vmatprep.subr.mxu0 0.0
      %881 = vmatpush2.msra.mxu0 0.0
      %882 = vmatprep.subr.mxu0 0.0
      %883 = vmatpush2.msra.mxu0 0.0
      %884 = vmatprep.subr.mxu0 0.0
      %885 = vmatpush2.msra.mxu0 0.0
      %886 = vmatprep.subr.mxu0 0.0
      %887 = vmatpush2.msra.mxu0 0.0
      %888 = vmatprep.subr.mxu0 0.0
      %889 = vmatpush2.msra.mxu0 0.0
      %890 = vmatprep.subr.mxu0 0.0
      %891 = vmatpush2.msra.mxu0 0.0
      %892 = vmatprep.subr.mxu0 0.0
      %893 = vmatpush2.msra.mxu0 0.0
      %894 = vmatprep.subr.mxu0 0.0
      %895 = vmatpush2.msra.mxu0 0.0
      %896 = vmatprep.subr.mxu0 0.0
      %897 = vmatpush2.msra.mxu0 0.0
      %898 = vmatprep.subr.mxu0 0.0
      %899 = vmatpush2.msra.mxu0 0.0
      %900 = vmatprep.mubr.f32.mxu0 0.0
      %901 = vmatmul.mubr.f32.gmra.mxu0 %v825
      %v902 = vpop.f32.mrf.mxu0
      %v903 = vadd.f32 0.0, %v902
      %v904 = vpop.f32.mrf.mxu0
      %905 = vmatprep.mubr.f32.mxu0 0.0
      %906 = vmatmul.mubr.f32.gmra.mxu0 %v828
      %v907 = vpop.f32.mrf.mxu0
      %v908 = vadd.f32 0.0, %v907
      %v909 = vpop.f32.mrf.mxu0
      %910 = vmatprep.mubr.f32.mxu0 0.0
      %911 = vmatmul.mubr.f32.gmra.mxu0 %v831
      %v912 = vpop.f32.mrf.mxu0
      %v913 = vadd.f32 0.0, %v912
      %v914 = vpop.f32.mrf.mxu0
      %915 = vmatprep.mubr.f32.mxu0 0.0
      %916 = vmatmul.mubr.f32.gmra.mxu0 %v834
      %v917 = vpop.f32.mrf.mxu0
      %v918 = vadd.f32 0.0, %v917
      %v919 = vpop.f32.mrf.mxu0
      %920 = vdwg.mxu0
      %v921 = vadd.s32 %v811, 1
      %v922 = vadd.s32 %v812, 1
      %v923 = vadd.s32 %v813, 1
      %v924 = vadd.s32 %v814, 1
      %vm925 = vcmp.eq.s32.totalorder %v810, %v921
      %vm926 = vcmp.eq.s32.totalorder %v810, %v922
      %vm927 = vcmp.eq.s32.totalorder %v810, %v923
      %vm928 = vcmp.eq.s32.totalorder %v810, %v924
      %v929 = vsel %vm925, 1.0, 0.0
      %v930 = vsel %vm926, 1.0, 0.0
      %v931 = vsel %vm927, 1.0, 0.0
      %v932 = vsel %vm928, 1.0, 0.0
      %v934 = vsel %vm823, %v929, 0
      %v937 = vsel %vm823, %v930, 0
      %v940 = vsel %vm823, %v931, 0
      %v943 = vsel %vm823, %v932, 0
      %945 = vmatprep.subr.mxu0 0.0
      %946 = vmatpush1.msra.mxu0 0.0
      %947 = vmatprep.subr.mxu0 0.0
      %948 = vmatpush1.msra.mxu0 0.0
      %949 = vmatprep.subr.mxu0 0.0
      %950 = vmatpush1.msra.mxu0 0.0
      %951 = vmatprep.subr.mxu0 0.0
      %952 = vmatpush1.msra.mxu0 0.0
      %953 = vmatprep.subr.mxu0 0.0
      %954 = vmatpush1.msra.mxu0 0.0
      %955 = vmatprep.subr.mxu0 0.0
      %956 = vmatpush1.msra.mxu0 0.0
      %957 = vmatprep.subr.mxu0 0.0
      %958 = vmatpush1.msra.mxu0 0.0
      %959 = vmatprep.subr.mxu0 0.0
      %960 = vmatpush1.msra.mxu0 0.0
      %961 = vmatprep.subr.mxu0 0.0
      %962 = vmatpush1.msra.mxu0 %v803
      %963 = vmatprep.subr.mxu0 0.0
      %964 = vmatpush1.msra.mxu0 %v802
      %965 = vmatprep.subr.mxu0 0.0
      %966 = vmatpush1.msra.mxu0 %v801
      %967 = vmatprep.subr.mxu0 0.0
      %968 = vmatpush1.msra.mxu0 %v800
      %969 = vmatprep.subr.mxu0 0.0
      %970 = vmatpush1.msra.mxu0 %v799
      %971 = vmatprep.subr.mxu0 0.0
      %972 = vmatpush1.msra.mxu0 %v798
      %973 = vmatprep.subr.mxu0 0.0
      %974 = vmatpush1.msra.mxu0 %v797
      %975 = vmatprep.subr.mxu0 0.0
      %976 = vmatpush1.msra.mxu0 %v796
      %977 = vmatprep.subr.mxu0 0.0
      %978 = vmatpush2.msra.mxu0 0.0
      %979 = vmatprep.subr.mxu0 0.0
      %980 = vmatpush2.msra.mxu0 0.0
      %981 = vmatprep.subr.mxu0 0.0
      %982 = vmatpush2.msra.mxu0 0.0
      %983 = vmatprep.subr.mxu0 0.0
      %984 = vmatpush2.msra.mxu0 0.0
      %985 = vmatprep.subr.mxu0 0.0
      %986 = vmatpush2.msra.mxu0 0.0
      %987 = vmatprep.subr.mxu0 0.0
      %988 = vmatpush2.msra.mxu0 0.0
      %989 = vmatprep.subr.mxu0 0.0
      %990 = vmatpush2.msra.mxu0 0.0
      %991 = vmatprep.subr.mxu0 0.0
      %992 = vmatpush2.msra.mxu0 0.0
      %993 = vmatprep.subr.mxu0 0.0
      %994 = vmatpush2.msra.mxu0 0.0
      %995 = vmatprep.subr.mxu0 0.0
      %996 = vmatpush2.msra.mxu0 0.0
      %997 = vmatprep.subr.mxu0 0.0
      %998 = vmatpush2.msra.mxu0 0.0
      %999 = vmatprep.subr.mxu0 0.0
      %1000 = vmatpush2.msra.mxu0 0.0
      %1001 = vmatprep.subr.mxu0 0.0
      %1002 = vmatpush2.msra.mxu0 0.0
      %1003 = vmatprep.subr.mxu0 0.0
      %1004 = vmatpush2.msra.mxu0 0.0
      %1005 = vmatprep.subr.mxu0 0.0
      %1006 = vmatpush2.msra.mxu0 0.0
      %1007 = vmatprep.subr.mxu0 0.0
      %1008 = vmatpush2.msra.mxu0 0.0
      %1009 = vmatprep.mubr.f32.mxu0 0.0
      %1010 = vmatmul.mubr.f32.gmra.mxu0 %v934
      %v1011 = vpop.f32.mrf.mxu0
      %v1012 = vadd.f32 0.0, %v1011
      %v1013 = vpop.f32.mrf.mxu0
      %1014 = vmatprep.mubr.f32.mxu0 0.0
      %1015 = vmatmul.mubr.f32.gmra.mxu0 %v937
      %v1016 = vpop.f32.mrf.mxu0
      %v1017 = vadd.f32 0.0, %v1016
      %v1018 = vpop.f32.mrf.mxu0
      %1019 = vmatprep.mubr.f32.mxu0 0.0
      %1020 = vmatmul.mubr.f32.gmra.mxu0 %v940
      %v1021 = vpop.f32.mrf.mxu0
      %v1022 = vadd.f32 0.0, %v1021
      %v1023 = vpop.f32.mrf.mxu0
      %1024 = vmatprep.mubr.f32.mxu0 0.0
      %1025 = vmatmul.mubr.f32.gmra.mxu0 %v943
      %v1026 = vpop.f32.mrf.mxu0
      %v1027 = vadd.f32 0.0, %v1026
      %v1028 = vpop.f32.mrf.mxu0
      %1029 = vdwg.mxu0
      %v1030 = vmax.f32 %v903, %v1012
      %v1031 = vmax.f32 %v908, %v1017
      %v1032 = vmax.f32 %v913, %v1022
      %v1033 = vmax.f32 %v918, %v1027
      %v1038 = vrot.slane %v1030, 7
      %v1039 = vrot.slane %v1031, 7
      %v1040 = vsel %vm217, %v1038, %v1039
      %v1041 = vrot.slane %v1032, 7
      %v1042 = vsel %vm217, %v1039, %v1041
      %v1043 = vrot.slane %v1033, 7
      %v1044 = vsel %vm217, %v1041, %v1043
      %v1050 = vsel %vm217, 0.0, %v1038
      %v1051 = vsel %vm217, %v1043, 0.0
      %v1054 = vrot.slane %v1050, 1
      %v1055 = vrot.slane %v1040, 1
      %v1056 = vsel %vm246, %v1054, %v1055
      %v1057 = vrot.slane %v1042, 1
      %v1058 = vsel %vm246, %v1055, %v1057
      %v1059 = vrot.slane %v1044, 1
      %v1060 = vsel %vm246, %v1057, %v1059
      %v1061 = vrot.slane %v1051, 1
      %v1062 = vsel %vm246, %v1059, %v1061
      %1063 = vrot.lane.b32.xlu0 %v1056, 8
      %v1064 = vpop.permute.xlu0 %1063
      %1065 = vrot.lane.b32.xlu0 %v1058, 8
      %v1066 = vpop.permute.xlu0 %1065
      %1067 = vrot.lane.b32.xlu0 %v1060, 8
      %v1068 = vpop.permute.xlu0 %1067
      %1069 = vrot.lane.b32.xlu0 %v1062, 8
      %v1070 = vpop.permute.xlu0 %1069
      %v1075 = vrot.slane %v1050, 2
      %v1076 = vrot.slane %v1040, 2
      %v1077 = vsel %vm288, %v1075, %v1076
      %v1078 = vrot.slane %v1042, 2
      %v1079 = vsel %vm288, %v1076, %v1078
      %v1080 = vrot.slane %v1044, 2
      %v1081 = vsel %vm288, %v1078, %v1080
      %v1082 = vrot.slane %v1051, 2
      %v1083 = vsel %vm288, %v1080, %v1082
      %1084 = vrot.lane.b32.xlu0 %v1077, 16
      %v1085 = vpop.permute.xlu0 %1084
      %1086 = vrot.lane.b32.xlu0 %v1079, 16
      %v1087 = vpop.permute.xlu0 %1086
      %1088 = vrot.lane.b32.xlu0 %v1081, 16
      %v1089 = vpop.permute.xlu0 %1088
      %1090 = vrot.lane.b32.xlu0 %v1083, 16
      %v1091 = vpop.permute.xlu0 %1090
      %v1096 = vsel %vm617, %v1050, %v1064
      %v1097 = vsel %vm617, %v1040, %v1066
      %v1098 = vsel %vm617, %v1042, %v1068
      %v1099 = vsel %vm617, %v1044, %v1070
      %v1100 = vsel %vm626, %v1096, %v1085
      %v1101 = vsel %vm626, %v1097, %v1087
      %v1102 = vsel %vm626, %v1098, %v1089
      %v1103 = vsel %vm626, %v1099, %v1091
      %s1104 = scalar_lea.vmem %s1, 96
      %v1105 = vld [vmem:[%s1104] sm:$0xff]
      %v1106 = vld [vmem:[%s1104 + $0x8] sm:$0xff]
      %v1107 = vld [vmem:[%s1104 + $0x10] sm:$0xff]
      %v1108 = vlaneseq
      %v1109 = vshrl.u32 %v1108, 7
      %v1110 = vsub.s32 2, %v1109
      %v1111 = vrot.slane %v198, %v1110
      %v1113 = vsel %vm339, %v1100, 0
      %v1116 = vsel %vm339, %v1101, 0
      %v1119 = vsel %vm339, %v1102, 0
      %v1122 = vsel %vm339, %v1103, 0
      %1124 = vmatprep.subr.mxu0 0.0
      %1125 = vmatpush1.msra.mxu0 0.0
      %1126 = vmatprep.subr.mxu0 0.0
      %1127 = vmatpush1.msra.mxu0 0.0
      %1128 = vmatprep.subr.mxu0 0.0
      %1129 = vmatpush1.msra.mxu0 0.0
      %1130 = vmatprep.subr.mxu0 0.0
      %1131 = vmatpush1.msra.mxu0 0.0
      %1132 = vmatprep.subr.mxu0 0.0
      %1133 = vmatpush1.msra.mxu0 0.0
      %1134 = vmatprep.subr.mxu0 0.0
      %1135 = vmatpush1.msra.mxu0 0.0
      %1136 = vmatprep.subr.mxu0 0.0
      %1137 = vmatpush1.msra.mxu0 0.0
      %1138 = vmatprep.subr.mxu0 0.0
      %1139 = vmatpush1.msra.mxu0 0.0
      %1140 = vmatprep.subr.mxu0 0.0
      %1141 = vmatpush1.msra.mxu0 0.0
      %1142 = vmatprep.subr.mxu0 0.0
      %1143 = vmatpush1.msra.mxu0 0.0
      %1144 = vmatprep.subr.mxu0 0.0
      %1145 = vmatpush1.msra.mxu0 0.0
      %1146 = vmatprep.subr.mxu0 0.0
      %1147 = vmatpush1.msra.mxu0 0.0
      %1148 = vmatprep.subr.mxu0 0.0
      %1149 = vmatpush1.msra.mxu0 0.0
      %1150 = vmatprep.subr.mxu0 0.0
      %1151 = vmatpush1.msra.mxu0 %v1107
      %1152 = vmatprep.subr.mxu0 0.0
      %1153 = vmatpush1.msra.mxu0 %v1106
      %1154 = vmatprep.subr.mxu0 0.0
      %1155 = vmatpush1.msra.mxu0 %v1105
      %1156 = vmatprep.subr.mxu0 0.0
      %1157 = vmatpush2.msra.mxu0 0.0
      %1158 = vmatprep.subr.mxu0 0.0
      %1159 = vmatpush2.msra.mxu0 0.0
      %1160 = vmatprep.subr.mxu0 0.0
      %1161 = vmatpush2.msra.mxu0 0.0
      %1162 = vmatprep.subr.mxu0 0.0
      %1163 = vmatpush2.msra.mxu0 0.0
      %1164 = vmatprep.subr.mxu0 0.0
      %1165 = vmatpush2.msra.mxu0 0.0
      %1166 = vmatprep.subr.mxu0 0.0
      %1167 = vmatpush2.msra.mxu0 0.0
      %1168 = vmatprep.subr.mxu0 0.0
      %1169 = vmatpush2.msra.mxu0 0.0
      %1170 = vmatprep.subr.mxu0 0.0
      %1171 = vmatpush2.msra.mxu0 0.0
      %1172 = vmatprep.subr.mxu0 0.0
      %1173 = vmatpush2.msra.mxu0 0.0
      %1174 = vmatprep.subr.mxu0 0.0
      %1175 = vmatpush2.msra.mxu0 0.0
      %1176 = vmatprep.subr.mxu0 0.0
      %1177 = vmatpush2.msra.mxu0 0.0
      %1178 = vmatprep.subr.mxu0 0.0
      %1179 = vmatpush2.msra.mxu0 0.0
      %1180 = vmatprep.subr.mxu0 0.0
      %1181 = vmatpush2.msra.mxu0 0.0
      %1182 = vmatprep.subr.mxu0 0.0
      %1183 = vmatpush2.msra.mxu0 0.0
      %1184 = vmatprep.subr.mxu0 0.0
      %1185 = vmatpush2.msra.mxu0 0.0
      %1186 = vmatprep.subr.mxu0 0.0
      %1187 = vmatpush2.msra.mxu0 0.0
      %1188 = vmatprep.mubr.f32.mxu0 0.0
      %1189 = vmatmul.mubr.f32.gmra.mxu0 %v1113
      %v1190 = vpop.f32.mrf.mxu0
      %v1191 = vadd.f32 %v1111, %v1190
      %v1192 = vpop.f32.mrf.mxu0
      %1193 = vmatprep.mubr.f32.mxu0 0.0
      %1194 = vmatmul.mubr.f32.gmra.mxu0 %v1116
      %v1195 = vpop.f32.mrf.mxu0
      %v1196 = vadd.f32 %v1111, %v1195
      %v1197 = vpop.f32.mrf.mxu0
      %1198 = vmatprep.mubr.f32.mxu0 0.0
      %1199 = vmatmul.mubr.f32.gmra.mxu0 %v1119
      %v1200 = vpop.f32.mrf.mxu0
      %v1201 = vadd.f32 %v1111, %v1200
      %v1202 = vpop.f32.mrf.mxu0
      %1203 = vmatprep.mubr.f32.mxu0 0.0
      %1204 = vmatmul.mubr.f32.gmra.mxu0 %v1122
      %v1205 = vpop.f32.mrf.mxu0
      %v1206 = vadd.f32 %v1111, %v1205
      %v1207 = vpop.f32.mrf.mxu0
      %1208 = vdwg.mxu0
      %v1209 = vmax.f32 %v1191, 0.0
      %v1210 = vmax.f32 %v1196, 0.0
      %v1211 = vmax.f32 %v1201, 0.0
      %v1212 = vmax.f32 %v1206, 0.0
      %v1217 = vrot.slane %v1209, 7
      %v1218 = vrot.slane %v1210, 7
      %v1219 = vsel %vm217, %v1217, %v1218
      %v1220 = vrot.slane %v1211, 7
      %v1221 = vsel %vm217, %v1218, %v1220
      %v1222 = vrot.slane %v1212, 7
      %v1223 = vsel %vm217, %v1220, %v1222
      %v1229 = vsel %vm217, 0.0, %v1217
      %v1230 = vsel %vm217, %v1222, 0.0
      %v1233 = vrot.slane %v1229, 1
      %v1234 = vrot.slane %v1219, 1
      %v1235 = vsel %vm246, %v1233, %v1234
      %v1236 = vrot.slane %v1221, 1
      %v1237 = vsel %vm246, %v1234, %v1236
      %v1238 = vrot.slane %v1223, 1
      %v1239 = vsel %vm246, %v1236, %v1238
      %v1240 = vrot.slane %v1230, 1
      %v1241 = vsel %vm246, %v1238, %v1240
      %1242 = vrot.lane.b32.xlu0 %v1235, 16
      %v1243 = vpop.permute.xlu0 %1242
      %1244 = vrot.lane.b32.xlu0 %v1237, 16
      %v1245 = vpop.permute.xlu0 %1244
      %1246 = vrot.lane.b32.xlu0 %v1239, 16
      %v1247 = vpop.permute.xlu0 %1246
      %1248 = vrot.lane.b32.xlu0 %v1241, 16
      %v1249 = vpop.permute.xlu0 %1248
      %v1254 = vrot.slane %v1229, 2
      %v1255 = vrot.slane %v1219, 2
      %v1256 = vsel %vm288, %v1254, %v1255
      %v1257 = vrot.slane %v1221, 2
      %v1258 = vsel %vm288, %v1255, %v1257
      %v1259 = vrot.slane %v1223, 2
      %v1260 = vsel %vm288, %v1257, %v1259
      %v1261 = vrot.slane %v1230, 2
      %v1262 = vsel %vm288, %v1259, %v1261
      %1263 = vrot.lane.b32.xlu0 %v1256, 32
      %v1264 = vpop.permute.xlu0 %1263
      %1265 = vrot.lane.b32.xlu0 %v1258, 32
      %v1266 = vpop.permute.xlu0 %1265
      %1267 = vrot.lane.b32.xlu0 %v1260, 32
      %v1268 = vpop.permute.xlu0 %1267
      %1269 = vrot.lane.b32.xlu0 %v1262, 32
      %v1270 = vpop.permute.xlu0 %1269
      %v1275 = vsel %vm626, %v1229, %v1243
      %v1276 = vsel %vm626, %v1219, %v1245
      %v1277 = vsel %vm626, %v1221, %v1247
      %v1278 = vsel %vm626, %v1223, %v1249
      %vm1279 = vcmask 261120
      %v1280 = vsel %vm1279, %v1275, %v1264
      %v1281 = vsel %vm1279, %v1276, %v1266
      %v1282 = vsel %vm1279, %v1277, %v1268
      %v1283 = vsel %vm1279, %v1278, %v1270
      %s1284 = scalar_lea.vmem %s1, 144
      %v1285 = vld [vmem:[%s1284] sm:$0xff]
      %v1286 = vld [vmem:[%s1284 + $0x8] sm:$0xff]
      %v1287 = vld [vmem:[%s1284 + $0x10] sm:$0xff]
      %v1288 = vld [vmem:[%s1284 + $0x18] sm:$0xff]
      %v1289 = vld [vmem:[%s1284 + $0x20] sm:$0xff]
      %v1290 = vld [vmem:[%s1284 + $0x28] sm:$0xff]
      %v1291 = vlaneseq
      %v1292 = vshrl.u32 %v1291, 7
      %v1293 = vsub.s32 3, %v1292
      %v1294 = vrot.slane %v198, %v1293
      %vm1295 = vcmask 392192
      %v1297 = vsel %vm1295, %v1280, 0
      %v1300 = vsel %vm1295, %v1281, 0
      %v1303 = vsel %vm1295, %v1282, 0
      %v1306 = vsel %vm1295, %v1283, 0
      %1308 = vmatprep.subr.mxu0 0.0
      %1309 = vmatpush1.msra.mxu0 0.0
      %1310 = vmatprep.subr.mxu0 0.0
      %1311 = vmatpush1.msra.mxu0 0.0
      %1312 = vmatprep.subr.mxu0 0.0
      %1313 = vmatpush1.msra.mxu0 0.0
      %1314 = vmatprep.subr.mxu0 0.0
      %1315 = vmatpush1.msra.mxu0 0.0
      %1316 = vmatprep.subr.mxu0 0.0
      %1317 = vmatpush1.msra.mxu0 0.0
      %1318 = vmatprep.subr.mxu0 0.0
      %1319 = vmatpush1.msra.mxu0 0.0
      %1320 = vmatprep.subr.mxu0 0.0
      %1321 = vmatpush1.msra.mxu0 0.0
      %1322 = vmatprep.subr.mxu0 0.0
      %1323 = vmatpush1.msra.mxu0 0.0
      %1324 = vmatprep.subr.mxu0 0.0
      %1325 = vmatpush1.msra.mxu0 0.0
      %1326 = vmatprep.subr.mxu0 0.0
      %1327 = vmatpush1.msra.mxu0 0.0
      %1328 = vmatprep.subr.mxu0 0.0
      %1329 = vmatpush1.msra.mxu0 %v1290
      %1330 = vmatprep.subr.mxu0 0.0
      %1331 = vmatpush1.msra.mxu0 %v1289
      %1332 = vmatprep.subr.mxu0 0.0
      %1333 = vmatpush1.msra.mxu0 %v1288
      %1334 = vmatprep.subr.mxu0 0.0
      %1335 = vmatpush1.msra.mxu0 %v1287
      %1336 = vmatprep.subr.mxu0 0.0
      %1337 = vmatpush1.msra.mxu0 %v1286
      %1338 = vmatprep.subr.mxu0 0.0
      %1339 = vmatpush1.msra.mxu0 %v1285
      %1340 = vmatprep.subr.mxu0 0.0
      %1341 = vmatpush2.msra.mxu0 0.0
      %1342 = vmatprep.subr.mxu0 0.0
      %1343 = vmatpush2.msra.mxu0 0.0
      %1344 = vmatprep.subr.mxu0 0.0
      %1345 = vmatpush2.msra.mxu0 0.0
      %1346 = vmatprep.subr.mxu0 0.0
      %1347 = vmatpush2.msra.mxu0 0.0
      %1348 = vmatprep.subr.mxu0 0.0
      %1349 = vmatpush2.msra.mxu0 0.0
      %1350 = vmatprep.subr.mxu0 0.0
      %1351 = vmatpush2.msra.mxu0 0.0
      %1352 = vmatprep.subr.mxu0 0.0
      %1353 = vmatpush2.msra.mxu0 0.0
      %1354 = vmatprep.subr.mxu0 0.0
      %1355 = vmatpush2.msra.mxu0 0.0
      %1356 = vmatprep.subr.mxu0 0.0
      %1357 = vmatpush2.msra.mxu0 0.0
      %1358 = vmatprep.subr.mxu0 0.0
      %1359 = vmatpush2.msra.mxu0 0.0
      %1360 = vmatprep.subr.mxu0 0.0
      %1361 = vmatpush2.msra.mxu0 0.0
      %1362 = vmatprep.subr.mxu0 0.0
      %1363 = vmatpush2.msra.mxu0 0.0
      %1364 = vmatprep.subr.mxu0 0.0
      %1365 = vmatpush2.msra.mxu0 0.0
      %1366 = vmatprep.subr.mxu0 0.0
      %1367 = vmatpush2.msra.mxu0 0.0
      %1368 = vmatprep.subr.mxu0 0.0
      %1369 = vmatpush2.msra.mxu0 0.0
      %1370 = vmatprep.subr.mxu0 0.0
      %1371 = vmatpush2.msra.mxu0 0.0
      %1372 = vmatprep.mubr.f32.mxu0 0.0
      %1373 = vmatmul.mubr.f32.gmra.mxu0 %v1297
      %v1374 = vpop.f32.mrf.mxu0
      %v1375 = vadd.f32 %v1294, %v1374
      %v1376 = vpop.f32.mrf.mxu0
      %1377 = vmatprep.mubr.f32.mxu0 0.0
      %1378 = vmatmul.mubr.f32.gmra.mxu0 %v1300
      %v1379 = vpop.f32.mrf.mxu0
      %v1380 = vadd.f32 %v1294, %v1379
      %v1381 = vpop.f32.mrf.mxu0
      %1382 = vmatprep.mubr.f32.mxu0 0.0
      %1383 = vmatmul.mubr.f32.gmra.mxu0 %v1303
      %v1384 = vpop.f32.mrf.mxu0
      %v1385 = vadd.f32 %v1294, %v1384
      %v1386 = vpop.f32.mrf.mxu0
      %1387 = vmatprep.mubr.f32.mxu0 0.0
      %1388 = vmatmul.mubr.f32.gmra.mxu0 %v1306
      %v1389 = vpop.f32.mrf.mxu0
      %v1390 = vadd.f32 %v1294, %v1389
      %v1391 = vpop.f32.mrf.mxu0
      %1392 = vdwg.mxu0
      %v1393 = vmax.f32 %v1375, 0.0
      %v1394 = vmax.f32 %v1380, 0.0
      %v1395 = vmax.f32 %v1385, 0.0
      %v1396 = vmax.f32 %v1390, 0.0
      %v1397 = vlaneseq
      %v1398 = vshrl.u32 %v1397, 7
      %v1399 = vsub.s32 1, %v1398
      %v1400 = vrot.slane %v199, %v1399
      %v1401 = vmul.f32 %v1393, %v1400
      %v1402 = vmul.f32 %v1394, %v1400
      %v1403 = vmul.f32 %v1395, %v1400
      %v1404 = vmul.f32 %v1396, %v1400
      %v1405 = vlaneseq
      %v1406 = vshrl.u32 %v1405, 7
      %v1407 = vsub.s32 5, %v1406
      %v1408 = vrot.slane %v199, %v1407
      %v1409 = vadd.f32 %v1401, %v1408
      %v1410 = vadd.f32 %v1402, %v1408
      %v1411 = vadd.f32 %v1403, %v1408
      %v1412 = vadd.f32 %v1404, %v1408
      %v1413 = vsel %vm1279, %v819, 0
      %v1415 = vsel %vm1279, %v820, 0
      %1417 = vmatprep.subr.mxu0 0.0
      %1418 = vmatpush1.msra.mxu0 0.0
      %1419 = vmatprep.subr.mxu0 0.0
      %1420 = vmatpush1.msra.mxu0 0.0
      %1421 = vmatprep.subr.mxu0 0.0
      %1422 = vmatpush1.msra.mxu0 0.0
      %1423 = vmatprep.subr.mxu0 0.0
      %1424 = vmatpush1.msra.mxu0 0.0
      %1425 = vmatprep.subr.mxu0 0.0
      %1426 = vmatpush1.msra.mxu0 0.0
      %1427 = vmatprep.subr.mxu0 0.0
      %1428 = vmatpush1.msra.mxu0 0.0
      %1429 = vmatprep.subr.mxu0 0.0
      %1430 = vmatpush1.msra.mxu0 0.0
      %1431 = vmatprep.subr.mxu0 0.0
      %1432 = vmatpush1.msra.mxu0 0.0
      %1433 = vmatprep.subr.mxu0 0.0
      %1434 = vmatpush1.msra.mxu0 0.0
      %1435 = vmatprep.subr.mxu0 0.0
      %1436 = vmatpush1.msra.mxu0 0.0
      %1437 = vmatprep.subr.mxu0 0.0
      %1438 = vmatpush1.msra.mxu0 0.0
      %1439 = vmatprep.subr.mxu0 0.0
      %1440 = vmatpush1.msra.mxu0 0.0
      %1441 = vmatprep.subr.mxu0 0.0
      %1442 = vmatpush1.msra.mxu0 %v1412
      %1443 = vmatprep.subr.mxu0 0.0
      %1444 = vmatpush1.msra.mxu0 %v1411
      %1445 = vmatprep.subr.mxu0 0.0
      %1446 = vmatpush1.msra.mxu0 %v1410
      %1447 = vmatprep.subr.mxu0 0.0
      %1448 = vmatpush1.msra.mxu0 %v1409
      %1449 = vmatprep.subr.mxu0 0.0
      %1450 = vmatpush2.msra.mxu0 0.0
      %1451 = vmatprep.subr.mxu0 0.0
      %1452 = vmatpush2.msra.mxu0 0.0
      %1453 = vmatprep.subr.mxu0 0.0
      %1454 = vmatpush2.msra.mxu0 0.0
      %1455 = vmatprep.subr.mxu0 0.0
      %1456 = vmatpush2.msra.mxu0 0.0
      %1457 = vmatprep.subr.mxu0 0.0
      %1458 = vmatpush2.msra.mxu0 0.0
      %1459 = vmatprep.subr.mxu0 0.0
      %1460 = vmatpush2.msra.mxu0 0.0
      %1461 = vmatprep.subr.mxu0 0.0
      %1462 = vmatpush2.msra.mxu0 0.0
      %1463 = vmatprep.subr.mxu0 0.0
      %1464 = vmatpush2.msra.mxu0 0.0
      %1465 = vmatprep.subr.mxu0 0.0
      %1466 = vmatpush2.msra.mxu0 0.0
      %1467 = vmatprep.subr.mxu0 0.0
      %1468 = vmatpush2.msra.mxu0 0.0
      %1469 = vmatprep.subr.mxu0 0.0
      %1470 = vmatpush2.msra.mxu0 0.0
      %1471 = vmatprep.subr.mxu0 0.0
      %1472 = vmatpush2.msra.mxu0 0.0
      %1473 = vmatprep.subr.mxu0 0.0
      %1474 = vmatpush2.msra.mxu0 0.0
      %1475 = vmatprep.subr.mxu0 0.0
      %1476 = vmatpush2.msra.mxu0 0.0
      %1477 = vmatprep.subr.mxu0 0.0
      %1478 = vmatpush2.msra.mxu0 0.0
      %1479 = vmatprep.subr.mxu0 0.0
      %1480 = vmatpush2.msra.mxu0 0.0
      %1481 = vmatprep.mubr.f32.mxu0 0.0
      %1482 = vmatmul.mubr.f32.gmra.mxu0 %v1413
      %v1483 = vpop.f32.mrf.mxu0
      %v1484 = vadd.f32 0.0, %v1483
      %v1485 = vpop.f32.mrf.mxu0
      %1486 = vmatprep.mubr.f32.mxu0 0.0
      %1487 = vmatmul.mubr.f32.gmra.mxu0 %v1415
      %v1488 = vpop.f32.mrf.mxu0
      %v1489 = vadd.f32 0.0, %v1488
      %v1490 = vpop.f32.mrf.mxu0
      %1491 = vdwg.mxu0
      %v1492 = vsel %vm1279, %v929, 0
      %v1494 = vsel %vm1279, %v930, 0
      %1496 = vmatprep.subr.mxu0 0.0
      %1497 = vmatpush1.msra.mxu0 0.0
      %1498 = vmatprep.subr.mxu0 0.0
      %1499 = vmatpush1.msra.mxu0 0.0
      %1500 = vmatprep.subr.mxu0 0.0
      %1501 = vmatpush1.msra.mxu0 0.0
      %1502 = vmatprep.subr.mxu0 0.0
      %1503 = vmatpush1.msra.mxu0 0.0
      %1504 = vmatprep.subr.mxu0 0.0
      %1505 = vmatpush1.msra.mxu0 0.0
      %1506 = vmatprep.subr.mxu0 0.0
      %1507 = vmatpush1.msra.mxu0 0.0
      %1508 = vmatprep.subr.mxu0 0.0
      %1509 = vmatpush1.msra.mxu0 0.0
      %1510 = vmatprep.subr.mxu0 0.0
      %1511 = vmatpush1.msra.mxu0 0.0
      %1512 = vmatprep.subr.mxu0 0.0
      %1513 = vmatpush1.msra.mxu0 0.0
      %1514 = vmatprep.subr.mxu0 0.0
      %1515 = vmatpush1.msra.mxu0 0.0
      %1516 = vmatprep.subr.mxu0 0.0
      %1517 = vmatpush1.msra.mxu0 0.0
      %1518 = vmatprep.subr.mxu0 0.0
      %1519 = vmatpush1.msra.mxu0 0.0
      %1520 = vmatprep.subr.mxu0 0.0
      %1521 = vmatpush1.msra.mxu0 %v1412
      %1522 = vmatprep.subr.mxu0 0.0
      %1523 = vmatpush1.msra.mxu0 %v1411
      %1524 = vmatprep.subr.mxu0 0.0
      %1525 = vmatpush1.msra.mxu0 %v1410
      %1526 = vmatprep.subr.mxu0 0.0
      %1527 = vmatpush1.msra.mxu0 %v1409
      %1528 = vmatprep.subr.mxu0 0.0
      %1529 = vmatpush2.msra.mxu0 0.0
      %1530 = vmatprep.subr.mxu0 0.0
      %1531 = vmatpush2.msra.mxu0 0.0
      %1532 = vmatprep.subr.mxu0 0.0
      %1533 = vmatpush2.msra.mxu0 0.0
      %1534 = vmatprep.subr.mxu0 0.0
      %1535 = vmatpush2.msra.mxu0 0.0
      %1536 = vmatprep.subr.mxu0 0.0
      %1537 = vmatpush2.msra.mxu0 0.0
      %1538 = vmatprep.subr.mxu0 0.0
      %1539 = vmatpush2.msra.mxu0 0.0
      %1540 = vmatprep.subr.mxu0 0.0
      %1541 = vmatpush2.msra.mxu0 0.0
      %1542 = vmatprep.subr.mxu0 0.0
      %1543 = vmatpush2.msra.mxu0 0.0
      %1544 = vmatprep.subr.mxu0 0.0
      %1545 = vmatpush2.msra.mxu0 0.0
      %1546 = vmatprep.subr.mxu0 0.0
      %1547 = vmatpush2.msra.mxu0 0.0
      %1548 = vmatprep.subr.mxu0 0.0
      %1549 = vmatpush2.msra.mxu0 0.0
      %1550 = vmatprep.subr.mxu0 0.0
      %1551 = vmatpush2.msra.mxu0 0.0
      %1552 = vmatprep.subr.mxu0 0.0
      %1553 = vmatpush2.msra.mxu0 0.0
      %1554 = vmatprep.subr.mxu0 0.0
      %1555 = vmatpush2.msra.mxu0 0.0
      %1556 = vmatprep.subr.mxu0 0.0
      %1557 = vmatpush2.msra.mxu0 0.0
      %1558 = vmatprep.subr.mxu0 0.0
      %1559 = vmatpush2.msra.mxu0 0.0
      %1560 = vmatprep.mubr.f32.mxu0 0.0
      %1561 = vmatmul.mubr.f32.gmra.mxu0 %v1492
      %v1562 = vpop.f32.mrf.mxu0
      %v1563 = vadd.f32 0.0, %v1562
      %v1564 = vpop.f32.mrf.mxu0
      %1565 = vmatprep.mubr.f32.mxu0 0.0
      %1566 = vmatmul.mubr.f32.gmra.mxu0 %v1494
      %v1567 = vpop.f32.mrf.mxu0
      %v1568 = vadd.f32 0.0, %v1567
      %v1569 = vpop.f32.mrf.mxu0
      %1570 = vdwg.mxu0
      %v1571 = vmax.f32 %v1484, %v1563
      %v1572 = vmax.f32 %v1489, %v1568
      %vm1573 = vcmask 1041408
      %v1574 = vrot.slane %v201, 6
      %v1575 = vrot.slane %v202, 6
      %v1576 = vsel %vm1573, %v1574, %v1575
      %v1577 = vrot.slane %v203, 6
      %v1578 = vsel %vm1573, %v1575, %v1577
      %v1579 = vrot.slane %v204, 6
      %v1580 = vsel %vm1573, %v1577, %v1579
      %v1581 = vrot.slane %v205, 6
      %v1582 = vsel %vm1573, %v1579, %v1581
      %v1583 = vrot.slane %v206, 6
      %v1584 = vsel %vm1573, %v1581, %v1583
      %v1585 = vrot.slane %v207, 6
      %v1586 = vsel %vm1573, %v1583, %v1585
      %v1587 = vrot.slane %v208, 6
      %v1588 = vsel %vm1573, %v1585, %v1587
      %v1598 = vsel %vm1573, 0.0, %v1574
      %v1599 = vsel %vm1573, %v1587, 0.0
      %v1602 = vrot.slane %v1598, 2
      %v1603 = vrot.slane %v1576, 2
      %v1604 = vsel %vm288, %v1602, %v1603
      %v1605 = vrot.slane %v1578, 2
      %v1606 = vsel %vm288, %v1603, %v1605
      %v1607 = vrot.slane %v1580, 2
      %v1608 = vsel %vm288, %v1605, %v1607
      %v1609 = vrot.slane %v1582, 2
      %v1610 = vsel %vm288, %v1607, %v1609
      %v1611 = vrot.slane %v1584, 2
      %v1612 = vsel %vm288, %v1609, %v1611
      %v1613 = vrot.slane %v1586, 2
      %v1614 = vsel %vm288, %v1611, %v1613
      %v1615 = vrot.slane %v1588, 2
      %v1616 = vsel %vm288, %v1613, %v1615
      %v1617 = vrot.slane %v1599, 2
      %v1618 = vsel %vm288, %v1615, %v1617
      %1619 = vrot.lane.b32.xlu0 %v1604, 12
      %v1620 = vpop.permute.xlu0 %1619
      %1621 = vrot.lane.b32.xlu0 %v1606, 12
      %v1622 = vpop.permute.xlu0 %1621
      %1623 = vrot.lane.b32.xlu0 %v1608, 12
      %v1624 = vpop.permute.xlu0 %1623
      %1625 = vrot.lane.b32.xlu0 %v1610, 12
      %v1626 = vpop.permute.xlu0 %1625
      %1627 = vrot.lane.b32.xlu0 %v1612, 12
      %v1628 = vpop.permute.xlu0 %1627
      %1629 = vrot.lane.b32.xlu0 %v1614, 12
      %v1630 = vpop.permute.xlu0 %1629
      %1631 = vrot.lane.b32.xlu0 %v1616, 12
      %v1632 = vpop.permute.xlu0 %1631
      %1633 = vrot.lane.b32.xlu0 %v1618, 12
      %v1634 = vpop.permute.xlu0 %1633
      %v1643 = vrot.slane %v1598, 4
      %v1644 = vrot.slane %v1576, 4
      %v1645 = vsel %vm382, %v1643, %v1644
      %v1646 = vrot.slane %v1578, 4
      %v1647 = vsel %vm382, %v1644, %v1646
      %v1648 = vrot.slane %v1580, 4
      %v1649 = vsel %vm382, %v1646, %v1648
      %v1650 = vrot.slane %v1582, 4
      %v1651 = vsel %vm382, %v1648, %v1650
      %v1652 = vrot.slane %v1584, 4
      %v1653 = vsel %vm382, %v1650, %v1652
      %v1654 = vrot.slane %v1586, 4
      %v1655 = vsel %vm382, %v1652, %v1654
      %v1656 = vrot.slane %v1588, 4
      %v1657 = vsel %vm382, %v1654, %v1656
      %v1658 = vrot.slane %v1599, 4
      %v1659 = vsel %vm382, %v1656, %v1658
      %1660 = vrot.lane.b32.xlu0 %v1645, 24
      %v1661 = vpop.permute.xlu0 %1660
      %1662 = vrot.lane.b32.xlu0 %v1647, 24
      %v1663 = vpop.permute.xlu0 %1662
      %1664 = vrot.lane.b32.xlu0 %v1649, 24
      %v1665 = vpop.permute.xlu0 %1664
      %1666 = vrot.lane.b32.xlu0 %v1651, 24
      %v1667 = vpop.permute.xlu0 %1666
      %1668 = vrot.lane.b32.xlu0 %v1653, 24
      %v1669 = vpop.permute.xlu0 %1668
      %1670 = vrot.lane.b32.xlu0 %v1655, 24
      %v1671 = vpop.permute.xlu0 %1670
      %1672 = vrot.lane.b32.xlu0 %v1657, 24
      %v1673 = vpop.permute.xlu0 %1672
      %1674 = vrot.lane.b32.xlu0 %v1659, 24
      %v1675 = vpop.permute.xlu0 %1674
      %v1684 = vsel %vm330, %v1598, %v1620
      %v1685 = vsel %vm330, %v1576, %v1622
      %v1686 = vsel %vm330, %v1578, %v1624
      %v1687 = vsel %vm330, %v1580, %v1626
      %v1688 = vsel %vm330, %v1582, %v1628
      %v1689 = vsel %vm330, %v1584, %v1630
      %v1690 = vsel %vm330, %v1586, %v1632
      %v1691 = vsel %vm330, %v1588, %v1634
      %v1692 = vsel %vm339, %v1684, %v1661
      %v1693 = vsel %vm339, %v1685, %v1663
      %v1694 = vsel %vm339, %v1686, %v1665
      %v1695 = vsel %vm339, %v1687, %v1667
      %v1696 = vsel %vm339, %v1688, %v1669
      %v1697 = vsel %vm339, %v1689, %v1671
      %v1698 = vsel %vm339, %v1690, %v1673
      %v1699 = vsel %vm339, %v1691, %v1675
      %s1700 = scalar_lea.vmem %s1, 192
      %v1701 = vld [vmem:[%s1700] sm:$0xff]
      %v1702 = vld [vmem:[%s1700 + $0x8] sm:$0xff]
      %v1703 = vld [vmem:[%s1700 + $0x10] sm:$0xff]
      %v1704 = vld [vmem:[%s1700 + $0x18] sm:$0xff]
      %v1705 = vld [vmem:[%s1700 + $0x20] sm:$0xff]
      %v1706 = vlaneseq
      %v1707 = vshrl.u32 %v1706, 7
      %v1708 = vsub.s32 4, %v1707
      %v1709 = vrot.slane %v198, %v1708
      %v1711 = vsel %vm357, %v1692, 0
      %v1714 = vsel %vm357, %v1693, 0
      %v1717 = vsel %vm357, %v1694, 0
      %v1720 = vsel %vm357, %v1695, 0
      %v1723 = vsel %vm357, %v1696, 0
      %v1726 = vsel %vm357, %v1697, 0
      %v1729 = vsel %vm357, %v1698, 0
      %v1732 = vsel %vm357, %v1699, 0
      %v1735 = vsel %vm382, %v1705, 0
      %1737 = vmatprep.subr.mxu0 0.0
      %1738 = vmatpush1.msra.mxu0 0.0
      %1739 = vmatprep.subr.mxu0 0.0
      %1740 = vmatpush1.msra.mxu0 0.0
      %1741 = vmatprep.subr.mxu0 0.0
      %1742 = vmatpush1.msra.mxu0 0.0
      %1743 = vmatprep.subr.mxu0 0.0
      %1744 = vmatpush1.msra.mxu0 0.0
      %1745 = vmatprep.subr.mxu0 0.0
      %1746 = vmatpush1.msra.mxu0 0.0
      %1747 = vmatprep.subr.mxu0 0.0
      %1748 = vmatpush1.msra.mxu0 0.0
      %1749 = vmatprep.subr.mxu0 0.0
      %1750 = vmatpush1.msra.mxu0 0.0
      %1751 = vmatprep.subr.mxu0 0.0
      %1752 = vmatpush1.msra.mxu0 0.0
      %1753 = vmatprep.subr.mxu0 0.0
      %1754 = vmatpush1.msra.mxu0 0.0
      %1755 = vmatprep.subr.mxu0 0.0
      %1756 = vmatpush1.msra.mxu0 0.0
      %1757 = vmatprep.subr.mxu0 0.0
      %1758 = vmatpush1.msra.mxu0 0.0
      %1759 = vmatprep.subr.mxu0 0.0
      %1760 = vmatpush1.msra.mxu0 %v1735
      %1761 = vmatprep.subr.mxu0 0.0
      %1762 = vmatpush1.msra.mxu0 %v1704
      %1763 = vmatprep.subr.mxu0 0.0
      %1764 = vmatpush1.msra.mxu0 %v1703
      %1765 = vmatprep.subr.mxu0 0.0
      %1766 = vmatpush1.msra.mxu0 %v1702
      %1767 = vmatprep.subr.mxu0 0.0
      %1768 = vmatpush1.msra.mxu0 %v1701
      %1769 = vmatprep.subr.mxu0 0.0
      %1770 = vmatpush2.msra.mxu0 0.0
      %1771 = vmatprep.subr.mxu0 0.0
      %1772 = vmatpush2.msra.mxu0 0.0
      %1773 = vmatprep.subr.mxu0 0.0
      %1774 = vmatpush2.msra.mxu0 0.0
      %1775 = vmatprep.subr.mxu0 0.0
      %1776 = vmatpush2.msra.mxu0 0.0
      %1777 = vmatprep.subr.mxu0 0.0
      %1778 = vmatpush2.msra.mxu0 0.0
      %1779 = vmatprep.subr.mxu0 0.0
      %1780 = vmatpush2.msra.mxu0 0.0
      %1781 = vmatprep.subr.mxu0 0.0
      %1782 = vmatpush2.msra.mxu0 0.0
      %1783 = vmatprep.subr.mxu0 0.0
      %1784 = vmatpush2.msra.mxu0 0.0
      %1785 = vmatprep.subr.mxu0 0.0
      %1786 = vmatpush2.msra.mxu0 0.0
      %1787 = vmatprep.subr.mxu0 0.0
      %1788 = vmatpush2.msra.mxu0 0.0
      %1789 = vmatprep.subr.mxu0 0.0
      %1790 = vmatpush2.msra.mxu0 0.0
      %1791 = vmatprep.subr.mxu0 0.0
      %1792 = vmatpush2.msra.mxu0 0.0
      %1793 = vmatprep.subr.mxu0 0.0
      %1794 = vmatpush2.msra.mxu0 0.0
      %1795 = vmatprep.subr.mxu0 0.0
      %1796 = vmatpush2.msra.mxu0 0.0
      %1797 = vmatprep.subr.mxu0 0.0
      %1798 = vmatpush2.msra.mxu0 0.0
      %1799 = vmatprep.subr.mxu0 0.0
      %1800 = vmatpush2.msra.mxu0 0.0
      %1801 = vmatprep.mubr.f32.mxu0 0.0
      %1802 = vmatmul.mubr.f32.gmra.mxu0 %v1711
      %v1803 = vpop.f32.mrf.mxu0
      %v1804 = vadd.f32 %v1709, %v1803
      %v1805 = vpop.f32.mrf.mxu0
      %1806 = vmatprep.mubr.f32.mxu0 0.0
      %1807 = vmatmul.mubr.f32.gmra.mxu0 %v1714
      %v1808 = vpop.f32.mrf.mxu0
      %v1809 = vadd.f32 %v1709, %v1808
      %v1810 = vpop.f32.mrf.mxu0
      %1811 = vmatprep.mubr.f32.mxu0 0.0
      %1812 = vmatmul.mubr.f32.gmra.mxu0 %v1717
      %v1813 = vpop.f32.mrf.mxu0
      %v1814 = vadd.f32 %v1709, %v1813
      %v1815 = vpop.f32.mrf.mxu0
      %1816 = vmatprep.mubr.f32.mxu0 0.0
      %1817 = vmatmul.mubr.f32.gmra.mxu0 %v1720
      %v1818 = vpop.f32.mrf.mxu0
      %v1819 = vadd.f32 %v1709, %v1818
      %v1820 = vpop.f32.mrf.mxu0
      %1821 = vmatprep.mubr.f32.mxu0 0.0
      %1822 = vmatmul.mubr.f32.gmra.mxu0 %v1723
      %v1823 = vpop.f32.mrf.mxu0
      %v1824 = vadd.f32 %v1709, %v1823
      %v1825 = vpop.f32.mrf.mxu0
      %1826 = vmatprep.mubr.f32.mxu0 0.0
      %1827 = vmatmul.mubr.f32.gmra.mxu0 %v1726
      %v1828 = vpop.f32.mrf.mxu0
      %v1829 = vadd.f32 %v1709, %v1828
      %v1830 = vpop.f32.mrf.mxu0
      %1831 = vmatprep.mubr.f32.mxu0 0.0
      %1832 = vmatmul.mubr.f32.gmra.mxu0 %v1729
      %v1833 = vpop.f32.mrf.mxu0
      %v1834 = vadd.f32 %v1709, %v1833
      %v1835 = vpop.f32.mrf.mxu0
      %1836 = vmatprep.mubr.f32.mxu0 0.0
      %1837 = vmatmul.mubr.f32.gmra.mxu0 %v1732
      %v1838 = vpop.f32.mrf.mxu0
      %v1839 = vadd.f32 %v1709, %v1838
      %v1840 = vpop.f32.mrf.mxu0
      %1841 = vdwg.mxu0
      %v1842 = vmax.f32 %v1804, 0.0
      %v1843 = vmax.f32 %v1809, 0.0
      %v1844 = vmax.f32 %v1814, 0.0
      %v1845 = vmax.f32 %v1819, 0.0
      %v1846 = vmax.f32 %v1824, 0.0
      %v1847 = vmax.f32 %v1829, 0.0
      %v1848 = vmax.f32 %v1834, 0.0
      %v1849 = vmax.f32 %v1839, 0.0
      %v1858 = vrot.slane %v1842, 6
      %v1859 = vrot.slane %v1843, 6
      %v1860 = vsel %vm1573, %v1858, %v1859
      %v1861 = vrot.slane %v1844, 6
      %v1862 = vsel %vm1573, %v1859, %v1861
      %v1863 = vrot.slane %v1845, 6
      %v1864 = vsel %vm1573, %v1861, %v1863
      %v1865 = vrot.slane %v1846, 6
      %v1866 = vsel %vm1573, %v1863, %v1865
      %v1867 = vrot.slane %v1847, 6
      %v1868 = vsel %vm1573, %v1865, %v1867
      %v1869 = vrot.slane %v1848, 6
      %v1870 = vsel %vm1573, %v1867, %v1869
      %v1871 = vrot.slane %v1849, 6
      %v1872 = vsel %vm1573, %v1869, %v1871
      %v1882 = vsel %vm1573, 0.0, %v1858
      %v1883 = vsel %vm1573, %v1871, 0.0
      %v1886 = vrot.slane %v1882, 2
      %v1887 = vrot.slane %v1860, 2
      %v1888 = vsel %vm288, %v1886, %v1887
      %v1889 = vrot.slane %v1862, 2
      %v1890 = vsel %vm288, %v1887, %v1889
      %v1891 = vrot.slane %v1864, 2
      %v1892 = vsel %vm288, %v1889, %v1891
      %v1893 = vrot.slane %v1866, 2
      %v1894 = vsel %vm288, %v1891, %v1893
      %v1895 = vrot.slane %v1868, 2
      %v1896 = vsel %vm288, %v1893, %v1895
      %v1897 = vrot.slane %v1870, 2
      %v1898 = vsel %vm288, %v1895, %v1897
      %v1899 = vrot.slane %v1872, 2
      %v1900 = vsel %vm288, %v1897, %v1899
      %v1901 = vrot.slane %v1883, 2
      %v1902 = vsel %vm288, %v1899, %v1901
      %1903 = vrot.lane.b32.xlu0 %v1888, 8
      %v1904 = vpop.permute.xlu0 %1903
      %1905 = vrot.lane.b32.xlu0 %v1890, 8
      %v1906 = vpop.permute.xlu0 %1905
      %1907 = vrot.lane.b32.xlu0 %v1892, 8
      %v1908 = vpop.permute.xlu0 %1907
      %1909 = vrot.lane.b32.xlu0 %v1894, 8
      %v1910 = vpop.permute.xlu0 %1909
      %1911 = vrot.lane.b32.xlu0 %v1896, 8
      %v1912 = vpop.permute.xlu0 %1911
      %1913 = vrot.lane.b32.xlu0 %v1898, 8
      %v1914 = vpop.permute.xlu0 %1913
      %1915 = vrot.lane.b32.xlu0 %v1900, 8
      %v1916 = vpop.permute.xlu0 %1915
      %1917 = vrot.lane.b32.xlu0 %v1902, 8
      %v1918 = vpop.permute.xlu0 %1917
      %v1927 = vrot.slane %v1882, 4
      %v1928 = vrot.slane %v1860, 4
      %v1929 = vsel %vm382, %v1927, %v1928
      %v1930 = vrot.slane %v1862, 4
      %v1931 = vsel %vm382, %v1928, %v1930
      %v1932 = vrot.slane %v1864, 4
      %v1933 = vsel %vm382, %v1930, %v1932
      %v1934 = vrot.slane %v1866, 4
      %v1935 = vsel %vm382, %v1932, %v1934
      %v1936 = vrot.slane %v1868, 4
      %v1937 = vsel %vm382, %v1934, %v1936
      %v1938 = vrot.slane %v1870, 4
      %v1939 = vsel %vm382, %v1936, %v1938
      %v1940 = vrot.slane %v1872, 4
      %v1941 = vsel %vm382, %v1938, %v1940
      %v1942 = vrot.slane %v1883, 4
      %v1943 = vsel %vm382, %v1940, %v1942
      %1944 = vrot.lane.b32.xlu0 %v1929, 16
      %v1945 = vpop.permute.xlu0 %1944
      %1946 = vrot.lane.b32.xlu0 %v1931, 16
      %v1947 = vpop.permute.xlu0 %1946
      %1948 = vrot.lane.b32.xlu0 %v1933, 16
      %v1949 = vpop.permute.xlu0 %1948
      %1950 = vrot.lane.b32.xlu0 %v1935, 16
      %v1951 = vpop.permute.xlu0 %1950
      %1952 = vrot.lane.b32.xlu0 %v1937, 16
      %v1953 = vpop.permute.xlu0 %1952
      %1954 = vrot.lane.b32.xlu0 %v1939, 16
      %v1955 = vpop.permute.xlu0 %1954
      %1956 = vrot.lane.b32.xlu0 %v1941, 16
      %v1957 = vpop.permute.xlu0 %1956
      %1958 = vrot.lane.b32.xlu0 %v1943, 16
      %v1959 = vpop.permute.xlu0 %1958
      %v1968 = vsel %vm617, %v1882, %v1904
      %v1969 = vsel %vm617, %v1860, %v1906
      %v1970 = vsel %vm617, %v1862, %v1908
      %v1971 = vsel %vm617, %v1864, %v1910
      %v1972 = vsel %vm617, %v1866, %v1912
      %v1973 = vsel %vm617, %v1868, %v1914
      %v1974 = vsel %vm617, %v1870, %v1916
      %v1975 = vsel %vm617, %v1872, %v1918
      %v1976 = vsel %vm626, %v1968, %v1945
      %v1977 = vsel %vm626, %v1969, %v1947
      %v1978 = vsel %vm626, %v1970, %v1949
      %v1979 = vsel %vm626, %v1971, %v1951
      %v1980 = vsel %vm626, %v1972, %v1953
      %v1981 = vsel %vm626, %v1973, %v1955
      %v1982 = vsel %vm626, %v1974, %v1957
      %v1983 = vsel %vm626, %v1975, %v1959
      %s1984 = scalar_lea.vmem %s1, 240
      %v1985 = vld [vmem:[%s1984] sm:$0xff]
      %v1986 = vld [vmem:[%s1984 + $0x8] sm:$0xff]
      %v1987 = vld [vmem:[%s1984 + $0x10] sm:$0xff]
      %v1988 = vlaneseq
      %v1989 = vshrl.u32 %v1988, 7
      %v1990 = vsub.s32 5, %v1989
      %v1991 = vrot.slane %v198, %v1990
      %v1993 = vsel %vm339, %v1976, 0
      %v1996 = vsel %vm339, %v1977, 0
      %v1999 = vsel %vm339, %v1978, 0
      %v2002 = vsel %vm339, %v1979, 0
      %v2005 = vsel %vm339, %v1980, 0
      %v2008 = vsel %vm339, %v1981, 0
      %v2011 = vsel %vm339, %v1982, 0
      %v2014 = vsel %vm339, %v1983, 0
      %2016 = vmatprep.subr.mxu0 0.0
      %2017 = vmatpush1.msra.mxu0 0.0
      %2018 = vmatprep.subr.mxu0 0.0
      %2019 = vmatpush1.msra.mxu0 0.0
      %2020 = vmatprep.subr.mxu0 0.0
      %2021 = vmatpush1.msra.mxu0 0.0
      %2022 = vmatprep.subr.mxu0 0.0
      %2023 = vmatpush1.msra.mxu0 0.0
      %2024 = vmatprep.subr.mxu0 0.0
      %2025 = vmatpush1.msra.mxu0 0.0
      %2026 = vmatprep.subr.mxu0 0.0
      %2027 = vmatpush1.msra.mxu0 0.0
      %2028 = vmatprep.subr.mxu0 0.0
      %2029 = vmatpush1.msra.mxu0 0.0
      %2030 = vmatprep.subr.mxu0 0.0
      %2031 = vmatpush1.msra.mxu0 0.0
      %2032 = vmatprep.subr.mxu0 0.0
      %2033 = vmatpush1.msra.mxu0 0.0
      %2034 = vmatprep.subr.mxu0 0.0
      %2035 = vmatpush1.msra.mxu0 0.0
      %2036 = vmatprep.subr.mxu0 0.0
      %2037 = vmatpush1.msra.mxu0 0.0
      %2038 = vmatprep.subr.mxu0 0.0
      %2039 = vmatpush1.msra.mxu0 0.0
      %2040 = vmatprep.subr.mxu0 0.0
      %2041 = vmatpush1.msra.mxu0 0.0
      %2042 = vmatprep.subr.mxu0 0.0
      %2043 = vmatpush1.msra.mxu0 %v1987
      %2044 = vmatprep.subr.mxu0 0.0
      %2045 = vmatpush1.msra.mxu0 %v1986
      %2046 = vmatprep.subr.mxu0 0.0
      %2047 = vmatpush1.msra.mxu0 %v1985
      %2048 = vmatprep.subr.mxu0 0.0
      %2049 = vmatpush2.msra.mxu0 0.0
      %2050 = vmatprep.subr.mxu0 0.0
      %2051 = vmatpush2.msra.mxu0 0.0
      %2052 = vmatprep.subr.mxu0 0.0
      %2053 = vmatpush2.msra.mxu0 0.0
      %2054 = vmatprep.subr.mxu0 0.0
      %2055 = vmatpush2.msra.mxu0 0.0
      %2056 = vmatprep.subr.mxu0 0.0
      %2057 = vmatpush2.msra.mxu0 0.0
      %2058 = vmatprep.subr.mxu0 0.0
      %2059 = vmatpush2.msra.mxu0 0.0
      %2060 = vmatprep.subr.mxu0 0.0
      %2061 = vmatpush2.msra.mxu0 0.0
      %2062 = vmatprep.subr.mxu0 0.0
      %2063 = vmatpush2.msra.mxu0 0.0
      %2064 = vmatprep.subr.mxu0 0.0
      %2065 = vmatpush2.msra.mxu0 0.0
      %2066 = vmatprep.subr.mxu0 0.0
      %2067 = vmatpush2.msra.mxu0 0.0
      %2068 = vmatprep.subr.mxu0 0.0
      %2069 = vmatpush2.msra.mxu0 0.0
      %2070 = vmatprep.subr.mxu0 0.0
      %2071 = vmatpush2.msra.mxu0 0.0
      %2072 = vmatprep.subr.mxu0 0.0
      %2073 = vmatpush2.msra.mxu0 0.0
      %2074 = vmatprep.subr.mxu0 0.0
      %2075 = vmatpush2.msra.mxu0 0.0
      %2076 = vmatprep.subr.mxu0 0.0
      %2077 = vmatpush2.msra.mxu0 0.0
      %2078 = vmatprep.subr.mxu0 0.0
      %2079 = vmatpush2.msra.mxu0 0.0
      %2080 = vmatprep.mubr.f32.mxu0 0.0
      %2081 = vmatmul.mubr.f32.gmra.mxu0 %v1993
      %v2082 = vpop.f32.mrf.mxu0
      %v2083 = vadd.f32 %v1991, %v2082
      %v2084 = vpop.f32.mrf.mxu0
      %2085 = vmatprep.mubr.f32.mxu0 0.0
      %2086 = vmatmul.mubr.f32.gmra.mxu0 %v1996
      %v2087 = vpop.f32.mrf.mxu0
      %v2088 = vadd.f32 %v1991, %v2087
      %v2089 = vpop.f32.mrf.mxu0
      %2090 = vmatprep.mubr.f32.mxu0 0.0
      %2091 = vmatmul.mubr.f32.gmra.mxu0 %v1999
      %v2092 = vpop.f32.mrf.mxu0
      %v2093 = vadd.f32 %v1991, %v2092
      %v2094 = vpop.f32.mrf.mxu0
      %2095 = vmatprep.mubr.f32.mxu0 0.0
      %2096 = vmatmul.mubr.f32.gmra.mxu0 %v2002
      %v2097 = vpop.f32.mrf.mxu0
      %v2098 = vadd.f32 %v1991, %v2097
      %v2099 = vpop.f32.mrf.mxu0
      %2100 = vmatprep.mubr.f32.mxu0 0.0
      %2101 = vmatmul.mubr.f32.gmra.mxu0 %v2005
      %v2102 = vpop.f32.mrf.mxu0
      %v2103 = vadd.f32 %v1991, %v2102
      %v2104 = vpop.f32.mrf.mxu0
      %2105 = vmatprep.mubr.f32.mxu0 0.0
      %2106 = vmatmul.mubr.f32.gmra.mxu0 %v2008
      %v2107 = vpop.f32.mrf.mxu0
      %v2108 = vadd.f32 %v1991, %v2107
      %v2109 = vpop.f32.mrf.mxu0
      %2110 = vmatprep.mubr.f32.mxu0 0.0
      %2111 = vmatmul.mubr.f32.gmra.mxu0 %v2011
      %v2112 = vpop.f32.mrf.mxu0
      %v2113 = vadd.f32 %v1991, %v2112
      %v2114 = vpop.f32.mrf.mxu0
      %2115 = vmatprep.mubr.f32.mxu0 0.0
      %2116 = vmatmul.mubr.f32.gmra.mxu0 %v2014
      %v2117 = vpop.f32.mrf.mxu0
      %v2118 = vadd.f32 %v1991, %v2117
      %v2119 = vpop.f32.mrf.mxu0
      %2120 = vdwg.mxu0
      %v2121 = vmax.f32 %v2083, 0.0
      %v2122 = vmax.f32 %v2088, 0.0
      %v2123 = vmax.f32 %v2093, 0.0
      %v2124 = vmax.f32 %v2098, 0.0
      %v2125 = vmax.f32 %v2103, 0.0
      %v2126 = vmax.f32 %v2108, 0.0
      %v2127 = vmax.f32 %v2113, 0.0
      %v2128 = vmax.f32 %v2118, 0.0
      %v2129 = vlaneseq
      %v2130 = vshrl.u32 %v2129, 7
      %v2131 = vsub.s32 2, %v2130
      %v2132 = vrot.slane %v199, %v2131
      %v2133 = vmul.f32 %v2121, %v2132
      %v2134 = vmul.f32 %v2122, %v2132
      %v2135 = vmul.f32 %v2123, %v2132
      %v2136 = vmul.f32 %v2124, %v2132
      %v2137 = vmul.f32 %v2125, %v2132
      %v2138 = vmul.f32 %v2126, %v2132
      %v2139 = vmul.f32 %v2127, %v2132
      %v2140 = vmul.f32 %v2128, %v2132
      %v2141 = vlaneseq
      %v2142 = vshrl.u32 %v2141, 7
      %v2143 = vsub.s32 6, %v2142
      %v2144 = vrot.slane %v199, %v2143
      %v2145 = vadd.f32 %v2133, %v2144
      %v2146 = vadd.f32 %v2134, %v2144
      %v2147 = vadd.f32 %v2135, %v2144
      %v2148 = vadd.f32 %v2136, %v2144
      %v2149 = vadd.f32 %v2137, %v2144
      %v2150 = vadd.f32 %v2138, %v2144
      %v2151 = vadd.f32 %v2139, %v2144
      %v2152 = vadd.f32 %v2140, %v2144
      %2153 = vmatprep.subr.mxu0 0.0
      %2154 = vmatpush1.msra.mxu0 0.0
      %2155 = vmatprep.subr.mxu0 0.0
      %2156 = vmatpush1.msra.mxu0 0.0
      %2157 = vmatprep.subr.mxu0 0.0
      %2158 = vmatpush1.msra.mxu0 0.0
      %2159 = vmatprep.subr.mxu0 0.0
      %2160 = vmatpush1.msra.mxu0 0.0
      %2161 = vmatprep.subr.mxu0 0.0
      %2162 = vmatpush1.msra.mxu0 0.0
      %2163 = vmatprep.subr.mxu0 0.0
      %2164 = vmatpush1.msra.mxu0 0.0
      %2165 = vmatprep.subr.mxu0 0.0
      %2166 = vmatpush1.msra.mxu0 0.0
      %2167 = vmatprep.subr.mxu0 0.0
      %2168 = vmatpush1.msra.mxu0 0.0
      %2169 = vmatprep.subr.mxu0 0.0
      %2170 = vmatpush1.msra.mxu0 %v2152
      %2171 = vmatprep.subr.mxu0 0.0
      %2172 = vmatpush1.msra.mxu0 %v2151
      %2173 = vmatprep.subr.mxu0 0.0
      %2174 = vmatpush1.msra.mxu0 %v2150
      %2175 = vmatprep.subr.mxu0 0.0
      %2176 = vmatpush1.msra.mxu0 %v2149
      %2177 = vmatprep.subr.mxu0 0.0
      %2178 = vmatpush1.msra.mxu0 %v2148
      %2179 = vmatprep.subr.mxu0 0.0
      %2180 = vmatpush1.msra.mxu0 %v2147
      %2181 = vmatprep.subr.mxu0 0.0
      %2182 = vmatpush1.msra.mxu0 %v2146
      %2183 = vmatprep.subr.mxu0 0.0
      %2184 = vmatpush1.msra.mxu0 %v2145
      %2185 = vmatprep.subr.mxu0 0.0
      %2186 = vmatpush2.msra.mxu0 0.0
      %2187 = vmatprep.subr.mxu0 0.0
      %2188 = vmatpush2.msra.mxu0 0.0
      %2189 = vmatprep.subr.mxu0 0.0
      %2190 = vmatpush2.msra.mxu0 0.0
      %2191 = vmatprep.subr.mxu0 0.0
      %2192 = vmatpush2.msra.mxu0 0.0
      %2193 = vmatprep.subr.mxu0 0.0
      %2194 = vmatpush2.msra.mxu0 0.0
      %2195 = vmatprep.subr.mxu0 0.0
      %2196 = vmatpush2.msra.mxu0 0.0
      %2197 = vmatprep.subr.mxu0 0.0
      %2198 = vmatpush2.msra.mxu0 0.0
      %2199 = vmatprep.subr.mxu0 0.0
      %2200 = vmatpush2.msra.mxu0 0.0
      %2201 = vmatprep.subr.mxu0 0.0
      %2202 = vmatpush2.msra.mxu0 0.0
      %2203 = vmatprep.subr.mxu0 0.0
      %2204 = vmatpush2.msra.mxu0 0.0
      %2205 = vmatprep.subr.mxu0 0.0
      %2206 = vmatpush2.msra.mxu0 0.0
      %2207 = vmatprep.subr.mxu0 0.0
      %2208 = vmatpush2.msra.mxu0 0.0
      %2209 = vmatprep.subr.mxu0 0.0
      %2210 = vmatpush2.msra.mxu0 0.0
      %2211 = vmatprep.subr.mxu0 0.0
      %2212 = vmatpush2.msra.mxu0 0.0
      %2213 = vmatprep.subr.mxu0 0.0
      %2214 = vmatpush2.msra.mxu0 0.0
      %2215 = vmatprep.subr.mxu0 0.0
      %2216 = vmatpush2.msra.mxu0 0.0
      %2217 = vmatprep.mubr.f32.mxu0 0.0
      %2218 = vmatmul.mubr.f32.gmra.mxu0 %v825
      %v2219 = vpop.f32.mrf.mxu0
      %v2220 = vadd.f32 0.0, %v2219
      %v2221 = vpop.f32.mrf.mxu0
      %2222 = vmatprep.mubr.f32.mxu0 0.0
      %2223 = vmatmul.mubr.f32.gmra.mxu0 %v828
      %v2224 = vpop.f32.mrf.mxu0
      %v2225 = vadd.f32 0.0, %v2224
      %v2226 = vpop.f32.mrf.mxu0
      %2227 = vmatprep.mubr.f32.mxu0 0.0
      %2228 = vmatmul.mubr.f32.gmra.mxu0 %v831
      %v2229 = vpop.f32.mrf.mxu0
      %v2230 = vadd.f32 0.0, %v2229
      %v2231 = vpop.f32.mrf.mxu0
      %2232 = vmatprep.mubr.f32.mxu0 0.0
      %2233 = vmatmul.mubr.f32.gmra.mxu0 %v834
      %v2234 = vpop.f32.mrf.mxu0
      %v2235 = vadd.f32 0.0, %v2234
      %v2236 = vpop.f32.mrf.mxu0
      %2237 = vdwg.mxu0
      %2238 = vmatprep.subr.mxu0 0.0
      %2239 = vmatpush1.msra.mxu0 0.0
      %2240 = vmatprep.subr.mxu0 0.0
      %2241 = vmatpush1.msra.mxu0 0.0
      %2242 = vmatprep.subr.mxu0 0.0
      %2243 = vmatpush1.msra.mxu0 0.0
      %2244 = vmatprep.subr.mxu0 0.0
      %2245 = vmatpush1.msra.mxu0 0.0
      %2246 = vmatprep.subr.mxu0 0.0
      %2247 = vmatpush1.msra.mxu0 0.0
      %2248 = vmatprep.subr.mxu0 0.0
      %2249 = vmatpush1.msra.mxu0 0.0
      %2250 = vmatprep.subr.mxu0 0.0
      %2251 = vmatpush1.msra.mxu0 0.0
      %2252 = vmatprep.subr.mxu0 0.0
      %2253 = vmatpush1.msra.mxu0 0.0
      %2254 = vmatprep.subr.mxu0 0.0
      %2255 = vmatpush1.msra.mxu0 %v2152
      %2256 = vmatprep.subr.mxu0 0.0
      %2257 = vmatpush1.msra.mxu0 %v2151
      %2258 = vmatprep.subr.mxu0 0.0
      %2259 = vmatpush1.msra.mxu0 %v2150
      %2260 = vmatprep.subr.mxu0 0.0
      %2261 = vmatpush1.msra.mxu0 %v2149
      %2262 = vmatprep.subr.mxu0 0.0
      %2263 = vmatpush1.msra.mxu0 %v2148
      %2264 = vmatprep.subr.mxu0 0.0
      %2265 = vmatpush1.msra.mxu0 %v2147
      %2266 = vmatprep.subr.mxu0 0.0
      %2267 = vmatpush1.msra.mxu0 %v2146
      %2268 = vmatprep.subr.mxu0 0.0
      %2269 = vmatpush1.msra.mxu0 %v2145
      %2270 = vmatprep.subr.mxu0 0.0
      %2271 = vmatpush2.msra.mxu0 0.0
      %2272 = vmatprep.subr.mxu0 0.0
      %2273 = vmatpush2.msra.mxu0 0.0
      %2274 = vmatprep.subr.mxu0 0.0
      %2275 = vmatpush2.msra.mxu0 0.0
      %2276 = vmatprep.subr.mxu0 0.0
      %2277 = vmatpush2.msra.mxu0 0.0
      %2278 = vmatprep.subr.mxu0 0.0
      %2279 = vmatpush2.msra.mxu0 0.0
      %2280 = vmatprep.subr.mxu0 0.0
      %2281 = vmatpush2.msra.mxu0 0.0
      %2282 = vmatprep.subr.mxu0 0.0
      %2283 = vmatpush2.msra.mxu0 0.0
      %2284 = vmatprep.subr.mxu0 0.0
      %2285 = vmatpush2.msra.mxu0 0.0
      %2286 = vmatprep.subr.mxu0 0.0
      %2287 = vmatpush2.msra.mxu0 0.0
      %2288 = vmatprep.subr.mxu0 0.0
      %2289 = vmatpush2.msra.mxu0 0.0
      %2290 = vmatprep.subr.mxu0 0.0
      %2291 = vmatpush2.msra.mxu0 0.0
      %2292 = vmatprep.subr.mxu0 0.0
      %2293 = vmatpush2.msra.mxu0 0.0
      %2294 = vmatprep.subr.mxu0 0.0
      %2295 = vmatpush2.msra.mxu0 0.0
      %2296 = vmatprep.subr.mxu0 0.0
      %2297 = vmatpush2.msra.mxu0 0.0
      %2298 = vmatprep.subr.mxu0 0.0
      %2299 = vmatpush2.msra.mxu0 0.0
      %2300 = vmatprep.subr.mxu0 0.0
      %2301 = vmatpush2.msra.mxu0 0.0
      %2302 = vmatprep.mubr.f32.mxu0 0.0
      %2303 = vmatmul.mubr.f32.gmra.mxu0 %v934
      %v2304 = vpop.f32.mrf.mxu0
      %v2305 = vadd.f32 0.0, %v2304
      %v2306 = vpop.f32.mrf.mxu0
      %2307 = vmatprep.mubr.f32.mxu0 0.0
      %2308 = vmatmul.mubr.f32.gmra.mxu0 %v937
      %v2309 = vpop.f32.mrf.mxu0
      %v2310 = vadd.f32 0.0, %v2309
      %v2311 = vpop.f32.mrf.mxu0
      %2312 = vmatprep.mubr.f32.mxu0 0.0
      %2313 = vmatmul.mubr.f32.gmra.mxu0 %v940
      %v2314 = vpop.f32.mrf.mxu0
      %v2315 = vadd.f32 0.0, %v2314
      %v2316 = vpop.f32.mrf.mxu0
      %2317 = vmatprep.mubr.f32.mxu0 0.0
      %2318 = vmatmul.mubr.f32.gmra.mxu0 %v943
      %v2319 = vpop.f32.mrf.mxu0
      %v2320 = vadd.f32 0.0, %v2319
      %v2321 = vpop.f32.mrf.mxu0
      %2322 = vdwg.mxu0
      %v2323 = vmax.f32 %v2220, %v2305
      %v2324 = vmax.f32 %v2225, %v2310
      %v2325 = vmax.f32 %v2230, %v2315
      %v2326 = vmax.f32 %v2235, %v2320
      %v2331 = vrot.slane %v2323, 4
      %v2332 = vrot.slane %v2324, 4
      %v2333 = vsel %vm382, %v2331, %v2332
      %v2334 = vrot.slane %v2325, 4
      %v2335 = vsel %vm382, %v2332, %v2334
      %v2336 = vrot.slane %v2326, 4
      %v2337 = vsel %vm382, %v2334, %v2336
      %v2343 = vsel %vm382, 0.0, %v2331
      %v2344 = vsel %vm382, %v2336, 0.0
      %v2347 = vrot.slane %v2343, 4
      %v2348 = vrot.slane %v2333, 4
      %v2349 = vsel %vm382, %v2347, %v2348
      %v2350 = vrot.slane %v2335, 4
      %v2351 = vsel %vm382, %v2348, %v2350
      %v2352 = vrot.slane %v2337, 4
      %v2353 = vsel %vm382, %v2350, %v2352
      %v2354 = vrot.slane %v2344, 4
      %v2355 = vsel %vm382, %v2352, %v2354
      %2356 = vrot.lane.b32.xlu0 %v2349, 8
      %v2357 = vpop.permute.xlu0 %2356
      %2358 = vrot.lane.b32.xlu0 %v2351, 8
      %v2359 = vpop.permute.xlu0 %2358
      %2360 = vrot.lane.b32.xlu0 %v2353, 8
      %v2361 = vpop.permute.xlu0 %2360
      %2362 = vrot.lane.b32.xlu0 %v2355, 8
      %v2363 = vpop.permute.xlu0 %2362
      %2368 = vrot.lane.b32.xlu0 %v2333, 16
      %v2369 = vpop.permute.xlu0 %2368
      %2370 = vrot.lane.b32.xlu0 %v2335, 16
      %v2371 = vpop.permute.xlu0 %2370
      %2372 = vrot.lane.b32.xlu0 %v2337, 16
      %v2373 = vpop.permute.xlu0 %2372
      %2374 = vrot.lane.b32.xlu0 %v2344, 16
      %v2375 = vpop.permute.xlu0 %2374
      %v2380 = vsel %vm617, %v2343, %v2357
      %v2381 = vsel %vm617, %v2333, %v2359
      %v2382 = vsel %vm617, %v2335, %v2361
      %v2383 = vsel %vm617, %v2337, %v2363
      %v2384 = vsel %vm626, %v2380, %v2369
      %v2385 = vsel %vm626, %v2381, %v2371
      %v2386 = vsel %vm626, %v2382, %v2373
      %v2387 = vsel %vm626, %v2383, %v2375
      %s2388 = scalar_lea.vmem %s1, 288
      %v2389 = vld [vmem:[%s2388] sm:$0xff]
      %v2390 = vld [vmem:[%s2388 + $0x8] sm:$0xff]
      %v2391 = vld [vmem:[%s2388 + $0x10] sm:$0xff]
      %v2392 = vlaneseq
      %v2393 = vshrl.u32 %v2392, 7
      %v2394 = vsub.s32 6, %v2393
      %v2395 = vrot.slane %v198, %v2394
      %v2397 = vsel %vm339, %v2384, 0
      %v2400 = vsel %vm339, %v2385, 0
      %v2403 = vsel %vm339, %v2386, 0
      %v2406 = vsel %vm339, %v2387, 0
      %2408 = vmatprep.subr.mxu0 0.0
      %2409 = vmatpush1.msra.mxu0 0.0
      %2410 = vmatprep.subr.mxu0 0.0
      %2411 = vmatpush1.msra.mxu0 0.0
      %2412 = vmatprep.subr.mxu0 0.0
      %2413 = vmatpush1.msra.mxu0 0.0
      %2414 = vmatprep.subr.mxu0 0.0
      %2415 = vmatpush1.msra.mxu0 0.0
      %2416 = vmatprep.subr.mxu0 0.0
      %2417 = vmatpush1.msra.mxu0 0.0
      %2418 = vmatprep.subr.mxu0 0.0
      %2419 = vmatpush1.msra.mxu0 0.0
      %2420 = vmatprep.subr.mxu0 0.0
      %2421 = vmatpush1.msra.mxu0 0.0
      %2422 = vmatprep.subr.mxu0 0.0
      %2423 = vmatpush1.msra.mxu0 0.0
      %2424 = vmatprep.subr.mxu0 0.0
      %2425 = vmatpush1.msra.mxu0 0.0
      %2426 = vmatprep.subr.mxu0 0.0
      %2427 = vmatpush1.msra.mxu0 0.0
      %2428 = vmatprep.subr.mxu0 0.0
      %2429 = vmatpush1.msra.mxu0 0.0
      %2430 = vmatprep.subr.mxu0 0.0
      %2431 = vmatpush1.msra.mxu0 0.0
      %2432 = vmatprep.subr.mxu0 0.0
      %2433 = vmatpush1.msra.mxu0 0.0
      %2434 = vmatprep.subr.mxu0 0.0
      %2435 = vmatpush1.msra.mxu0 %v2391
      %2436 = vmatprep.subr.mxu0 0.0
      %2437 = vmatpush1.msra.mxu0 %v2390
      %2438 = vmatprep.subr.mxu0 0.0
      %2439 = vmatpush1.msra.mxu0 %v2389
      %2440 = vmatprep.subr.mxu0 0.0
      %2441 = vmatpush2.msra.mxu0 0.0
      %2442 = vmatprep.subr.mxu0 0.0
      %2443 = vmatpush2.msra.mxu0 0.0
      %2444 = vmatprep.subr.mxu0 0.0
      %2445 = vmatpush2.msra.mxu0 0.0
      %2446 = vmatprep.subr.mxu0 0.0
      %2447 = vmatpush2.msra.mxu0 0.0
      %2448 = vmatprep.subr.mxu0 0.0
      %2449 = vmatpush2.msra.mxu0 0.0
      %2450 = vmatprep.subr.mxu0 0.0
      %2451 = vmatpush2.msra.mxu0 0.0
      %2452 = vmatprep.subr.mxu0 0.0
      %2453 = vmatpush2.msra.mxu0 0.0
      %2454 = vmatprep.subr.mxu0 0.0
      %2455 = vmatpush2.msra.mxu0 0.0
      %2456 = vmatprep.subr.mxu0 0.0
      %2457 = vmatpush2.msra.mxu0 0.0
      %2458 = vmatprep.subr.mxu0 0.0
      %2459 = vmatpush2.msra.mxu0 0.0
      %2460 = vmatprep.subr.mxu0 0.0
      %2461 = vmatpush2.msra.mxu0 0.0
      %2462 = vmatprep.subr.mxu0 0.0
      %2463 = vmatpush2.msra.mxu0 0.0
      %2464 = vmatprep.subr.mxu0 0.0
      %2465 = vmatpush2.msra.mxu0 0.0
      %2466 = vmatprep.subr.mxu0 0.0
      %2467 = vmatpush2.msra.mxu0 0.0
      %2468 = vmatprep.subr.mxu0 0.0
      %2469 = vmatpush2.msra.mxu0 0.0
      %2470 = vmatprep.subr.mxu0 0.0
      %2471 = vmatpush2.msra.mxu0 0.0
      %2472 = vmatprep.mubr.f32.mxu0 0.0
      %2473 = vmatmul.mubr.f32.gmra.mxu0 %v2397
      %v2474 = vpop.f32.mrf.mxu0
      %v2475 = vadd.f32 %v2395, %v2474
      %v2476 = vpop.f32.mrf.mxu0
      %2477 = vmatprep.mubr.f32.mxu0 0.0
      %2478 = vmatmul.mubr.f32.gmra.mxu0 %v2400
      %v2479 = vpop.f32.mrf.mxu0
      %v2480 = vadd.f32 %v2395, %v2479
      %v2481 = vpop.f32.mrf.mxu0
      %2482 = vmatprep.mubr.f32.mxu0 0.0
      %2483 = vmatmul.mubr.f32.gmra.mxu0 %v2403
      %v2484 = vpop.f32.mrf.mxu0
      %v2485 = vadd.f32 %v2395, %v2484
      %v2486 = vpop.f32.mrf.mxu0
      %2487 = vmatprep.mubr.f32.mxu0 0.0
      %2488 = vmatmul.mubr.f32.gmra.mxu0 %v2406
      %v2489 = vpop.f32.mrf.mxu0
      %v2490 = vadd.f32 %v2395, %v2489
      %v2491 = vpop.f32.mrf.mxu0
      %2492 = vdwg.mxu0
      %v2493 = vmax.f32 %v2475, 0.0
      %v2494 = vmax.f32 %v2480, 0.0
      %v2495 = vmax.f32 %v2485, 0.0
      %v2496 = vmax.f32 %v2490, 0.0
      %v2501 = vrot.slane %v2493, 4
      %v2502 = vrot.slane %v2494, 4
      %v2503 = vsel %vm382, %v2501, %v2502
      %v2504 = vrot.slane %v2495, 4
      %v2505 = vsel %vm382, %v2502, %v2504
      %v2506 = vrot.slane %v2496, 4
      %v2507 = vsel %vm382, %v2504, %v2506
      %v2513 = vsel %vm382, 0.0, %v2501
      %v2514 = vsel %vm382, %v2506, 0.0
      %v2517 = vrot.slane %v2513, 4
      %v2518 = vrot.slane %v2503, 4
      %v2519 = vsel %vm382, %v2517, %v2518
      %v2520 = vrot.slane %v2505, 4
      %v2521 = vsel %vm382, %v2518, %v2520
      %v2522 = vrot.slane %v2507, 4
      %v2523 = vsel %vm382, %v2520, %v2522
      %v2524 = vrot.slane %v2514, 4
      %v2525 = vsel %vm382, %v2522, %v2524
      %2526 = vrot.lane.b32.xlu0 %v2519, 16
      %v2527 = vpop.permute.xlu0 %2526
      %2528 = vrot.lane.b32.xlu0 %v2521, 16
      %v2529 = vpop.permute.xlu0 %2528
      %2530 = vrot.lane.b32.xlu0 %v2523, 16
      %v2531 = vpop.permute.xlu0 %2530
      %2532 = vrot.lane.b32.xlu0 %v2525, 16
      %v2533 = vpop.permute.xlu0 %2532
      %2538 = vrot.lane.b32.xlu0 %v2503, 32
      %v2539 = vpop.permute.xlu0 %2538
      %2540 = vrot.lane.b32.xlu0 %v2505, 32
      %v2541 = vpop.permute.xlu0 %2540
      %2542 = vrot.lane.b32.xlu0 %v2507, 32
      %v2543 = vpop.permute.xlu0 %2542
      %2544 = vrot.lane.b32.xlu0 %v2514, 32
      %v2545 = vpop.permute.xlu0 %2544
      %v2550 = vsel %vm626, %v2513, %v2527
      %v2551 = vsel %vm626, %v2503, %v2529
      %v2552 = vsel %vm626, %v2505, %v2531
      %v2553 = vsel %vm626, %v2507, %v2533
      %v2554 = vsel %vm1279, %v2550, %v2539
      %v2555 = vsel %vm1279, %v2551, %v2541
      %v2556 = vsel %vm1279, %v2552, %v2543
      %v2557 = vsel %vm1279, %v2553, %v2545
      %s2558 = scalar_lea.vmem %s1, 336
      %v2559 = vld [vmem:[%s2558] sm:$0xff]
      %v2560 = vld [vmem:[%s2558 + $0x8] sm:$0xff]
      %v2561 = vld [vmem:[%s2558 + $0x10] sm:$0xff]
      %v2562 = vld [vmem:[%s2558 + $0x18] sm:$0xff]
      %v2563 = vld [vmem:[%s2558 + $0x20] sm:$0xff]
      %v2564 = vld [vmem:[%s2558 + $0x28] sm:$0xff]
      %v2565 = vlaneseq
      %v2566 = vshrl.u32 %v2565, 7
      %v2567 = vsub.s32 7, %v2566
      %v2568 = vrot.slane %v198, %v2567
      %v2570 = vsel %vm1295, %v2554, 0
      %v2573 = vsel %vm1295, %v2555, 0
      %v2576 = vsel %vm1295, %v2556, 0
      %v2579 = vsel %vm1295, %v2557, 0
      %2581 = vmatprep.subr.mxu0 0.0
      %2582 = vmatpush1.msra.mxu0 0.0
      %2583 = vmatprep.subr.mxu0 0.0
      %2584 = vmatpush1.msra.mxu0 0.0
      %2585 = vmatprep.subr.mxu0 0.0
      %2586 = vmatpush1.msra.mxu0 0.0
      %2587 = vmatprep.subr.mxu0 0.0
      %2588 = vmatpush1.msra.mxu0 0.0
      %2589 = vmatprep.subr.mxu0 0.0
      %2590 = vmatpush1.msra.mxu0 0.0
      %2591 = vmatprep.subr.mxu0 0.0
      %2592 = vmatpush1.msra.mxu0 0.0
      %2593 = vmatprep.subr.mxu0 0.0
      %2594 = vmatpush1.msra.mxu0 0.0
      %2595 = vmatprep.subr.mxu0 0.0
      %2596 = vmatpush1.msra.mxu0 0.0
      %2597 = vmatprep.subr.mxu0 0.0
      %2598 = vmatpush1.msra.mxu0 0.0
      %2599 = vmatprep.subr.mxu0 0.0
      %2600 = vmatpush1.msra.mxu0 0.0
      %2601 = vmatprep.subr.mxu0 0.0
      %2602 = vmatpush1.msra.mxu0 %v2564
      %2603 = vmatprep.subr.mxu0 0.0
      %2604 = vmatpush1.msra.mxu0 %v2563
      %2605 = vmatprep.subr.mxu0 0.0
      %2606 = vmatpush1.msra.mxu0 %v2562
      %2607 = vmatprep.subr.mxu0 0.0
      %2608 = vmatpush1.msra.mxu0 %v2561
      %2609 = vmatprep.subr.mxu0 0.0
      %2610 = vmatpush1.msra.mxu0 %v2560
      %2611 = vmatprep.subr.mxu0 0.0
      %2612 = vmatpush1.msra.mxu0 %v2559
      %2613 = vmatprep.subr.mxu0 0.0
      %2614 = vmatpush2.msra.mxu0 0.0
      %2615 = vmatprep.subr.mxu0 0.0
      %2616 = vmatpush2.msra.mxu0 0.0
      %2617 = vmatprep.subr.mxu0 0.0
      %2618 = vmatpush2.msra.mxu0 0.0
      %2619 = vmatprep.subr.mxu0 0.0
      %2620 = vmatpush2.msra.mxu0 0.0
      %2621 = vmatprep.subr.mxu0 0.0
      %2622 = vmatpush2.msra.mxu0 0.0
      %2623 = vmatprep.subr.mxu0 0.0
      %2624 = vmatpush2.msra.mxu0 0.0
      %2625 = vmatprep.subr.mxu0 0.0
      %2626 = vmatpush2.msra.mxu0 0.0
      %2627 = vmatprep.subr.mxu0 0.0
      %2628 = vmatpush2.msra.mxu0 0.0
      %2629 = vmatprep.subr.mxu0 0.0
      %2630 = vmatpush2.msra.mxu0 0.0
      %2631 = vmatprep.subr.mxu0 0.0
      %2632 = vmatpush2.msra.mxu0 0.0
      %2633 = vmatprep.subr.mxu0 0.0
      %2634 = vmatpush2.msra.mxu0 0.0
      %2635 = vmatprep.subr.mxu0 0.0
      %2636 = vmatpush2.msra.mxu0 0.0
      %2637 = vmatprep.subr.mxu0 0.0
      %2638 = vmatpush2.msra.mxu0 0.0
      %2639 = vmatprep.subr.mxu0 0.0
      %2640 = vmatpush2.msra.mxu0 0.0
      %2641 = vmatprep.subr.mxu0 0.0
      %2642 = vmatpush2.msra.mxu0 0.0
      %2643 = vmatprep.subr.mxu0 0.0
      %2644 = vmatpush2.msra.mxu0 0.0
      %2645 = vmatprep.mubr.f32.mxu0 0.0
      %2646 = vmatmul.mubr.f32.gmra.mxu0 %v2570
      %v2647 = vpop.f32.mrf.mxu0
      %v2648 = vadd.f32 %v2568, %v2647
      %v2649 = vpop.f32.mrf.mxu0
      %2650 = vmatprep.mubr.f32.mxu0 0.0
      %2651 = vmatmul.mubr.f32.gmra.mxu0 %v2573
      %v2652 = vpop.f32.mrf.mxu0
      %v2653 = vadd.f32 %v2568, %v2652
      %v2654 = vpop.f32.mrf.mxu0
      %2655 = vmatprep.mubr.f32.mxu0 0.0
      %2656 = vmatmul.mubr.f32.gmra.mxu0 %v2576
      %v2657 = vpop.f32.mrf.mxu0
      %v2658 = vadd.f32 %v2568, %v2657
      %v2659 = vpop.f32.mrf.mxu0
      %2660 = vmatprep.mubr.f32.mxu0 0.0
      %2661 = vmatmul.mubr.f32.gmra.mxu0 %v2579
      %v2662 = vpop.f32.mrf.mxu0
      %v2663 = vadd.f32 %v2568, %v2662
      %v2664 = vpop.f32.mrf.mxu0
      %2665 = vdwg.mxu0
      %v2666 = vmax.f32 %v2648, 0.0
      %v2667 = vmax.f32 %v2653, 0.0
      %v2668 = vmax.f32 %v2658, 0.0
      %v2669 = vmax.f32 %v2663, 0.0
      %v2670 = vlaneseq
      %v2671 = vshrl.u32 %v2670, 7
      %v2672 = vsub.s32 3, %v2671
      %v2673 = vrot.slane %v199, %v2672
      %v2674 = vmul.f32 %v2666, %v2673
      %v2675 = vmul.f32 %v2667, %v2673
      %v2676 = vmul.f32 %v2668, %v2673
      %v2677 = vmul.f32 %v2669, %v2673
      %v2678 = vlaneseq
      %v2679 = vshrl.u32 %v2678, 7
      %v2680 = vsub.s32 7, %v2679
      %v2681 = vrot.slane %v199, %v2680
      %v2682 = vadd.f32 %v2674, %v2681
      %v2683 = vadd.f32 %v2675, %v2681
      %v2684 = vadd.f32 %v2676, %v2681
      %v2685 = vadd.f32 %v2677, %v2681
      %2686 = vmatprep.subr.mxu0 0.0
      %2687 = vmatpush1.msra.mxu0 0.0
      %2688 = vmatprep.subr.mxu0 0.0
      %2689 = vmatpush1.msra.mxu0 0.0
      %2690 = vmatprep.subr.mxu0 0.0
      %2691 = vmatpush1.msra.mxu0 0.0
      %2692 = vmatprep.subr.mxu0 0.0
      %2693 = vmatpush1.msra.mxu0 0.0
      %2694 = vmatprep.subr.mxu0 0.0
      %2695 = vmatpush1.msra.mxu0 0.0
      %2696 = vmatprep.subr.mxu0 0.0
      %2697 = vmatpush1.msra.mxu0 0.0
      %2698 = vmatprep.subr.mxu0 0.0
      %2699 = vmatpush1.msra.mxu0 0.0
      %2700 = vmatprep.subr.mxu0 0.0
      %2701 = vmatpush1.msra.mxu0 0.0
      %2702 = vmatprep.subr.mxu0 0.0
      %2703 = vmatpush1.msra.mxu0 0.0
      %2704 = vmatprep.subr.mxu0 0.0
      %2705 = vmatpush1.msra.mxu0 0.0
      %2706 = vmatprep.subr.mxu0 0.0
      %2707 = vmatpush1.msra.mxu0 0.0
      %2708 = vmatprep.subr.mxu0 0.0
      %2709 = vmatpush1.msra.mxu0 0.0
      %2710 = vmatprep.subr.mxu0 0.0
      %2711 = vmatpush1.msra.mxu0 %v2685
      %2712 = vmatprep.subr.mxu0 0.0
      %2713 = vmatpush1.msra.mxu0 %v2684
      %2714 = vmatprep.subr.mxu0 0.0
      %2715 = vmatpush1.msra.mxu0 %v2683
      %2716 = vmatprep.subr.mxu0 0.0
      %2717 = vmatpush1.msra.mxu0 %v2682
      %2718 = vmatprep.subr.mxu0 0.0
      %2719 = vmatpush2.msra.mxu0 0.0
      %2720 = vmatprep.subr.mxu0 0.0
      %2721 = vmatpush2.msra.mxu0 0.0
      %2722 = vmatprep.subr.mxu0 0.0
      %2723 = vmatpush2.msra.mxu0 0.0
      %2724 = vmatprep.subr.mxu0 0.0
      %2725 = vmatpush2.msra.mxu0 0.0
      %2726 = vmatprep.subr.mxu0 0.0
      %2727 = vmatpush2.msra.mxu0 0.0
      %2728 = vmatprep.subr.mxu0 0.0
      %2729 = vmatpush2.msra.mxu0 0.0
      %2730 = vmatprep.subr.mxu0 0.0
      %2731 = vmatpush2.msra.mxu0 0.0
      %2732 = vmatprep.subr.mxu0 0.0
      %2733 = vmatpush2.msra.mxu0 0.0
      %2734 = vmatprep.subr.mxu0 0.0
      %2735 = vmatpush2.msra.mxu0 0.0
      %2736 = vmatprep.subr.mxu0 0.0
      %2737 = vmatpush2.msra.mxu0 0.0
      %2738 = vmatprep.subr.mxu0 0.0
      %2739 = vmatpush2.msra.mxu0 0.0
      %2740 = vmatprep.subr.mxu0 0.0
      %2741 = vmatpush2.msra.mxu0 0.0
      %2742 = vmatprep.subr.mxu0 0.0
      %2743 = vmatpush2.msra.mxu0 0.0
      %2744 = vmatprep.subr.mxu0 0.0
      %2745 = vmatpush2.msra.mxu0 0.0
      %2746 = vmatprep.subr.mxu0 0.0
      %2747 = vmatpush2.msra.mxu0 0.0
      %2748 = vmatprep.subr.mxu0 0.0
      %2749 = vmatpush2.msra.mxu0 0.0
      %2750 = vmatprep.mubr.f32.mxu0 0.0
      %2751 = vmatmul.mubr.f32.gmra.mxu0 %v1413
      %v2752 = vpop.f32.mrf.mxu0
      %v2753 = vadd.f32 0.0, %v2752
      %v2754 = vpop.f32.mrf.mxu0
      %2755 = vmatprep.mubr.f32.mxu0 0.0
      %2756 = vmatmul.mubr.f32.gmra.mxu0 %v1415
      %v2757 = vpop.f32.mrf.mxu0
      %v2758 = vadd.f32 0.0, %v2757
      %v2759 = vpop.f32.mrf.mxu0
      %2760 = vdwg.mxu0
      %2761 = vmatprep.subr.mxu0 0.0
      %2762 = vmatpush1.msra.mxu0 0.0
      %2763 = vmatprep.subr.mxu0 0.0
      %2764 = vmatpush1.msra.mxu0 0.0
      %2765 = vmatprep.subr.mxu0 0.0
      %2766 = vmatpush1.msra.mxu0 0.0
      %2767 = vmatprep.subr.mxu0 0.0
      %2768 = vmatpush1.msra.mxu0 0.0
      %2769 = vmatprep.subr.mxu0 0.0
      %2770 = vmatpush1.msra.mxu0 0.0
      %2771 = vmatprep.subr.mxu0 0.0
      %2772 = vmatpush1.msra.mxu0 0.0
      %2773 = vmatprep.subr.mxu0 0.0
      %2774 = vmatpush1.msra.mxu0 0.0
      %2775 = vmatprep.subr.mxu0 0.0
      %2776 = vmatpush1.msra.mxu0 0.0
      %2777 = vmatprep.subr.mxu0 0.0
      %2778 = vmatpush1.msra.mxu0 0.0
      %2779 = vmatprep.subr.mxu0 0.0
      %2780 = vmatpush1.msra.mxu0 0.0
      %2781 = vmatprep.subr.mxu0 0.0
      %2782 = vmatpush1.msra.mxu0 0.0
      %2783 = vmatprep.subr.mxu0 0.0
      %2784 = vmatpush1.msra.mxu0 0.0
      %2785 = vmatprep.subr.mxu0 0.0
      %2786 = vmatpush1.msra.mxu0 %v2685
      %2787 = vmatprep.subr.mxu0 0.0
      %2788 = vmatpush1.msra.mxu0 %v2684
      %2789 = vmatprep.subr.mxu0 0.0
      %2790 = vmatpush1.msra.mxu0 %v2683
      %2791 = vmatprep.subr.mxu0 0.0
      %2792 = vmatpush1.msra.mxu0 %v2682
      %2793 = vmatprep.subr.mxu0 0.0
      %2794 = vmatpush2.msra.mxu0 0.0
      %2795 = vmatprep.subr.mxu0 0.0
      %2796 = vmatpush2.msra.mxu0 0.0
      %2797 = vmatprep.subr.mxu0 0.0
      %2798 = vmatpush2.msra.mxu0 0.0
      %2799 = vmatprep.subr.mxu0 0.0
      %2800 = vmatpush2.msra.mxu0 0.0
      %2801 = vmatprep.subr.mxu0 0.0
      %2802 = vmatpush2.msra.mxu0 0.0
      %2803 = vmatprep.subr.mxu0 0.0
      %2804 = vmatpush2.msra.mxu0 0.0
      %2805 = vmatprep.subr.mxu0 0.0
      %2806 = vmatpush2.msra.mxu0 0.0
      %2807 = vmatprep.subr.mxu0 0.0
      %2808 = vmatpush2.msra.mxu0 0.0
      %2809 = vmatprep.subr.mxu0 0.0
      %2810 = vmatpush2.msra.mxu0 0.0
      %2811 = vmatprep.subr.mxu0 0.0
      %2812 = vmatpush2.msra.mxu0 0.0
      %2813 = vmatprep.subr.mxu0 0.0
      %2814 = vmatpush2.msra.mxu0 0.0
      %2815 = vmatprep.subr.mxu0 0.0
      %2816 = vmatpush2.msra.mxu0 0.0
      %2817 = vmatprep.subr.mxu0 0.0
      %2818 = vmatpush2.msra.mxu0 0.0
      %2819 = vmatprep.subr.mxu0 0.0
      %2820 = vmatpush2.msra.mxu0 0.0
      %2821 = vmatprep.subr.mxu0 0.0
      %2822 = vmatpush2.msra.mxu0 0.0
      %2823 = vmatprep.subr.mxu0 0.0
      %2824 = vmatpush2.msra.mxu0 0.0
      %2825 = vmatprep.mubr.f32.mxu0 0.0
      %2826 = vmatmul.mubr.f32.gmra.mxu0 %v1492
      %v2827 = vpop.f32.mrf.mxu0
      %v2828 = vadd.f32 0.0, %v2827
      %v2829 = vpop.f32.mrf.mxu0
      %2830 = vmatprep.mubr.f32.mxu0 0.0
      %2831 = vmatmul.mubr.f32.gmra.mxu0 %v1494
      %v2832 = vpop.f32.mrf.mxu0
      %v2833 = vadd.f32 0.0, %v2832
      %v2834 = vpop.f32.mrf.mxu0
      %2835 = vdwg.mxu0
      %v2836 = vmax.f32 %v2753, %v2828
      %v2837 = vmax.f32 %v2758, %v2833
      %2840 = vrot.lane.b32.xlu0 %v2836, 16
      %v2841 = vpop.permute.xlu0 %2840
      %2842 = vrot.lane.b32.xlu0 %v2837, 16
      %v2843 = vpop.permute.xlu0 %2842
      %v2846 = vsel %vm626, %v1571, %v2841
      %v2847 = vsel %vm626, %v1572, %v2843
      %v2848 = vsel %vm1279, %v2846, 0.0
      %v2849 = vsel %vm1279, %v2847, 0.0
      %v2850 = vadd.f32 %v2848, %v2849
      %v2851 = vrot.slane %v2850, 4
      %v2852 = vadd.f32 %v2850, %v2851
      %v2853 = vrot.slane %v2852, 2
      %v2854 = vadd.f32 %v2852, %v2853
      %v2855 = vrot.slane %v2854, 1
      %v2856 = vadd.f32 %v2854, %v2855
      %v2857 = vrcp.pop 16.0
      %v2858 = vmul.f32 %v2856, %v2857
      %v2859 = vld [vmem:[%s2] sm:$0xff]
      %v2860 = vld [vmem:[%s2 + $0x8] sm:$0xff]
      %v2861 = vld [vmem:[%s2 + $0x10] sm:$0xff]
      %v2862 = vld [vmem:[%s2 + $0x18] sm:$0xff]
      %v2864 = vsel %vm1279, %v2858, 0
      %2866 = vmatprep.subr.mxu0 0.0
      %2867 = vmatpush1.msra.mxu0 0.0
      %2868 = vmatprep.subr.mxu0 0.0
      %2869 = vmatpush1.msra.mxu0 0.0
      %2870 = vmatprep.subr.mxu0 0.0
      %2871 = vmatpush1.msra.mxu0 0.0
      %2872 = vmatprep.subr.mxu0 0.0
      %2873 = vmatpush1.msra.mxu0 0.0
      %2874 = vmatprep.subr.mxu0 0.0
      %2875 = vmatpush1.msra.mxu0 0.0
      %2876 = vmatprep.subr.mxu0 0.0
      %2877 = vmatpush1.msra.mxu0 0.0
      %2878 = vmatprep.subr.mxu0 0.0
      %2879 = vmatpush1.msra.mxu0 0.0
      %2880 = vmatprep.subr.mxu0 0.0
      %2881 = vmatpush1.msra.mxu0 0.0
      %2882 = vmatprep.subr.mxu0 0.0
      %2883 = vmatpush1.msra.mxu0 0.0
      %2884 = vmatprep.subr.mxu0 0.0
      %2885 = vmatpush1.msra.mxu0 0.0
      %2886 = vmatprep.subr.mxu0 0.0
      %2887 = vmatpush1.msra.mxu0 0.0
      %2888 = vmatprep.subr.mxu0 0.0
      %2889 = vmatpush1.msra.mxu0 0.0
      %2890 = vmatprep.subr.mxu0 0.0
      %2891 = vmatpush1.msra.mxu0 %v2862
      %2892 = vmatprep.subr.mxu0 0.0
      %2893 = vmatpush1.msra.mxu0 %v2861
      %2894 = vmatprep.subr.mxu0 0.0
      %2895 = vmatpush1.msra.mxu0 %v2860
      %2896 = vmatprep.subr.mxu0 0.0
      %2897 = vmatpush1.msra.mxu0 %v2859
      %2898 = vmatprep.subr.mxu0 0.0
      %2899 = vmatpush2.msra.mxu0 0.0
      %2900 = vmatprep.subr.mxu0 0.0
      %2901 = vmatpush2.msra.mxu0 0.0
      %2902 = vmatprep.subr.mxu0 0.0
      %2903 = vmatpush2.msra.mxu0 0.0
      %2904 = vmatprep.subr.mxu0 0.0
      %2905 = vmatpush2.msra.mxu0 0.0
      %2906 = vmatprep.subr.mxu0 0.0
      %2907 = vmatpush2.msra.mxu0 0.0
      %2908 = vmatprep.subr.mxu0 0.0
      %2909 = vmatpush2.msra.mxu0 0.0
      %2910 = vmatprep.subr.mxu0 0.0
      %2911 = vmatpush2.msra.mxu0 0.0
      %2912 = vmatprep.subr.mxu0 0.0
      %2913 = vmatpush2.msra.mxu0 0.0
      %2914 = vmatprep.subr.mxu0 0.0
      %2915 = vmatpush2.msra.mxu0 0.0
      %2916 = vmatprep.subr.mxu0 0.0
      %2917 = vmatpush2.msra.mxu0 0.0
      %2918 = vmatprep.subr.mxu0 0.0
      %2919 = vmatpush2.msra.mxu0 0.0
      %2920 = vmatprep.subr.mxu0 0.0
      %2921 = vmatpush2.msra.mxu0 0.0
      %2922 = vmatprep.subr.mxu0 0.0
      %2923 = vmatpush2.msra.mxu0 0.0
      %2924 = vmatprep.subr.mxu0 0.0
      %2925 = vmatpush2.msra.mxu0 0.0
      %2926 = vmatprep.subr.mxu0 0.0
      %2927 = vmatpush2.msra.mxu0 0.0
      %2928 = vmatprep.subr.mxu0 0.0
      %2929 = vmatpush2.msra.mxu0 0.0
      %2930 = vmatprep.mubr.f32.mxu0 0.0
      %2931 = vmatmul.mubr.f32.gmra.mxu0 %v2864
      %v2932 = vpop.f32.mrf.mxu0
      %v2933 = vadd.f32 %v200, %v2932
      %v2934 = vpop.f32.mrf.mxu0
      %2935 = vdwg.mxu0
      %v2936 = vmax.f32 %v2933, 0.0
      %s2937 = scalar_lea.vmem %s2, 32
      %v2938 = vld [vmem:[%s2937] sm:$0xff]
      %v2939 = vld [vmem:[%s2937 + $0x8] sm:$0xff]
      %v2940 = vld [vmem:[%s2937 + $0x10] sm:$0xff]
      %v2941 = vld [vmem:[%s2937 + $0x18] sm:$0xff]
      %v2943 = vrot.slane %v200, 1
      %v2946 = vsel %vm1279, %v2936, 0
      %2948 = vmatprep.subr.mxu0 0.0
      %2949 = vmatpush1.msra.mxu0 0.0
      %2950 = vmatprep.subr.mxu0 0.0
      %2951 = vmatpush1.msra.mxu0 0.0
      %2952 = vmatprep.subr.mxu0 0.0
      %2953 = vmatpush1.msra.mxu0 0.0
      %2954 = vmatprep.subr.mxu0 0.0
      %2955 = vmatpush1.msra.mxu0 0.0
      %2956 = vmatprep.subr.mxu0 0.0
      %2957 = vmatpush1.msra.mxu0 0.0
      %2958 = vmatprep.subr.mxu0 0.0
      %2959 = vmatpush1.msra.mxu0 0.0
      %2960 = vmatprep.subr.mxu0 0.0
      %2961 = vmatpush1.msra.mxu0 0.0
      %2962 = vmatprep.subr.mxu0 0.0
      %2963 = vmatpush1.msra.mxu0 0.0
      %2964 = vmatprep.subr.mxu0 0.0
      %2965 = vmatpush1.msra.mxu0 0.0
      %2966 = vmatprep.subr.mxu0 0.0
      %2967 = vmatpush1.msra.mxu0 0.0
      %2968 = vmatprep.subr.mxu0 0.0
      %2969 = vmatpush1.msra.mxu0 0.0
      %2970 = vmatprep.subr.mxu0 0.0
      %2971 = vmatpush1.msra.mxu0 0.0
      %2972 = vmatprep.subr.mxu0 0.0
      %2973 = vmatpush1.msra.mxu0 %v2941
      %2974 = vmatprep.subr.mxu0 0.0
      %2975 = vmatpush1.msra.mxu0 %v2940
      %2976 = vmatprep.subr.mxu0 0.0
      %2977 = vmatpush1.msra.mxu0 %v2939
      %2978 = vmatprep.subr.mxu0 0.0
      %2979 = vmatpush1.msra.mxu0 %v2938
      %2980 = vmatprep.subr.mxu0 0.0
      %2981 = vmatpush2.msra.mxu0 0.0
      %2982 = vmatprep.subr.mxu0 0.0
      %2983 = vmatpush2.msra.mxu0 0.0
      %2984 = vmatprep.subr.mxu0 0.0
      %2985 = vmatpush2.msra.mxu0 0.0
      %2986 = vmatprep.subr.mxu0 0.0
      %2987 = vmatpush2.msra.mxu0 0.0
      %2988 = vmatprep.subr.mxu0 0.0
      %2989 = vmatpush2.msra.mxu0 0.0
      %2990 = vmatprep.subr.mxu0 0.0
      %2991 = vmatpush2.msra.mxu0 0.0
      %2992 = vmatprep.subr.mxu0 0.0
      %2993 = vmatpush2.msra.mxu0 0.0
      %2994 = vmatprep.subr.mxu0 0.0
      %2995 = vmatpush2.msra.mxu0 0.0
      %2996 = vmatprep.subr.mxu0 0.0
      %2997 = vmatpush2.msra.mxu0 0.0
      %2998 = vmatprep.subr.mxu0 0.0
      %2999 = vmatpush2.msra.mxu0 0.0
      %3000 = vmatprep.subr.mxu0 0.0
      %3001 = vmatpush2.msra.mxu0 0.0
      %3002 = vmatprep.subr.mxu0 0.0
      %3003 = vmatpush2.msra.mxu0 0.0
      %3004 = vmatprep.subr.mxu0 0.0
      %3005 = vmatpush2.msra.mxu0 0.0
      %3006 = vmatprep.subr.mxu0 0.0
      %3007 = vmatpush2.msra.mxu0 0.0
      %3008 = vmatprep.subr.mxu0 0.0
      %3009 = vmatpush2.msra.mxu0 0.0
      %3010 = vmatprep.subr.mxu0 0.0
      %3011 = vmatpush2.msra.mxu0 0.0
      %3012 = vmatprep.mubr.f32.mxu0 0.0
      %3013 = vmatmul.mubr.f32.gmra.mxu0 %v2946
      %v3014 = vpop.f32.mrf.mxu0
      %v3015 = vadd.f32 %v2943, %v3014
      %v3016 = vpop.f32.mrf.mxu0
      %3017 = vdwg.mxu0
      %v3018 = vmax.f32 %v3015, 0.0
      %vm3019 = vcmask 253952
      %v3020 = vsel %vm3019, %v3018, -inf
      %3021 = vmax.xlane.f32.xlu0 %v3020
      %v3022 = vpop.xlane.xlu0 %3021
      %v3023 = vsub.f32 %v3018, %v3022
      %v3024 = vmul.f32 %v3023, 1.442695
      %v3025 = vpow.pop %v3024
      %v3026 = vsel %vm3019, %v3025, 0.0
      %3027 = vadd.xlane.f32.xlu0 %v3026
      %v3028 = vpop.xlane.xlu0 %3027
      %v3029 = vrcp.pop %v3028
      %v3030 = vmul.f32 %v3025, %v3029
      %v3031 = vlaneseq
      %v3032 = vshrl.u32 %v3031, 7
      %v3033 = vsub.s32 0, %v3032
      %v3034 = vrot.slane %v3030, %v3033
      %v3035 = vmul.f32 %v2846, %v3034
      %v3036 = vmul.f32 %v2847, %v3034
      %s3037 = scalar_lea.vmem %s2, 64
      %v3038 = vld [vmem:[%s3037] sm:$0xff]
      %v3039 = vld [vmem:[%s3037 + $0x8] sm:$0xff]
      %v3040 = vld [vmem:[%s3037 + $0x10] sm:$0xff]
      %v3041 = vld [vmem:[%s3037 + $0x18] sm:$0xff]
      %v3042 = vlaneseq
      %v3043 = vshrl.u32 %v3042, 7
      %v3044 = vsub.s32 2, %v3043
      %v3045 = vrot.slane %v200, %v3044
      %v3047 = vsel %vm1279, %v3035, 0
      %v3050 = vsel %vm1279, %v3036, 0
      %3052 = vmatprep.subr.mxu0 0.0
      %3053 = vmatpush1.msra.mxu0 0.0
      %3054 = vmatprep.subr.mxu0 0.0
      %3055 = vmatpush1.msra.mxu0 0.0
      %3056 = vmatprep.subr.mxu0 0.0
      %3057 = vmatpush1.msra.mxu0 0.0
      %3058 = vmatprep.subr.mxu0 0.0
      %3059 = vmatpush1.msra.mxu0 0.0
      %3060 = vmatprep.subr.mxu0 0.0
      %3061 = vmatpush1.msra.mxu0 0.0
      %3062 = vmatprep.subr.mxu0 0.0
      %3063 = vmatpush1.msra.mxu0 0.0
      %3064 = vmatprep.subr.mxu0 0.0
      %3065 = vmatpush1.msra.mxu0 0.0
      %3066 = vmatprep.subr.mxu0 0.0
      %3067 = vmatpush1.msra.mxu0 0.0
      %3068 = vmatprep.subr.mxu0 0.0
      %3069 = vmatpush1.msra.mxu0 0.0
      %3070 = vmatprep.subr.mxu0 0.0
      %3071 = vmatpush1.msra.mxu0 0.0
      %3072 = vmatprep.subr.mxu0 0.0
      %3073 = vmatpush1.msra.mxu0 0.0
      %3074 = vmatprep.subr.mxu0 0.0
      %3075 = vmatpush1.msra.mxu0 0.0
      %3076 = vmatprep.subr.mxu0 0.0
      %3077 = vmatpush1.msra.mxu0 %v3041
      %3078 = vmatprep.subr.mxu0 0.0
      %3079 = vmatpush1.msra.mxu0 %v3040
      %3080 = vmatprep.subr.mxu0 0.0
      %3081 = vmatpush1.msra.mxu0 %v3039
      %3082 = vmatprep.subr.mxu0 0.0
      %3083 = vmatpush1.msra.mxu0 %v3038
      %3084 = vmatprep.subr.mxu0 0.0
      %3085 = vmatpush2.msra.mxu0 0.0
      %3086 = vmatprep.subr.mxu0 0.0
      %3087 = vmatpush2.msra.mxu0 0.0
      %3088 = vmatprep.subr.mxu0 0.0
      %3089 = vmatpush2.msra.mxu0 0.0
      %3090 = vmatprep.subr.mxu0 0.0
      %3091 = vmatpush2.msra.mxu0 0.0
      %3092 = vmatprep.subr.mxu0 0.0
      %3093 = vmatpush2.msra.mxu0 0.0
      %3094 = vmatprep.subr.mxu0 0.0
      %3095 = vmatpush2.msra.mxu0 0.0
      %3096 = vmatprep.subr.mxu0 0.0
      %3097 = vmatpush2.msra.mxu0 0.0
      %3098 = vmatprep.subr.mxu0 0.0
      %3099 = vmatpush2.msra.mxu0 0.0
      %3100 = vmatprep.subr.mxu0 0.0
      %3101 = vmatpush2.msra.mxu0 0.0
      %3102 = vmatprep.subr.mxu0 0.0
      %3103 = vmatpush2.msra.mxu0 0.0
      %3104 = vmatprep.subr.mxu0 0.0
      %3105 = vmatpush2.msra.mxu0 0.0
      %3106 = vmatprep.subr.mxu0 0.0
      %3107 = vmatpush2.msra.mxu0 0.0
      %3108 = vmatprep.subr.mxu0 0.0
      %3109 = vmatpush2.msra.mxu0 0.0
      %3110 = vmatprep.subr.mxu0 0.0
      %3111 = vmatpush2.msra.mxu0 0.0
      %3112 = vmatprep.subr.mxu0 0.0
      %3113 = vmatpush2.msra.mxu0 0.0
      %3114 = vmatprep.subr.mxu0 0.0
      %3115 = vmatpush2.msra.mxu0 0.0
      %3116 = vmatprep.mubr.f32.mxu0 0.0
      %3117 = vmatmul.mubr.f32.gmra.mxu0 %v3047
      %v3118 = vpop.f32.mrf.mxu0
      %v3119 = vadd.f32 %v3045, %v3118
      %v3120 = vpop.f32.mrf.mxu0
      %3121 = vmatprep.mubr.f32.mxu0 0.0
      %3122 = vmatmul.mubr.f32.gmra.mxu0 %v3050
      %v3123 = vpop.f32.mrf.mxu0
      %v3124 = vadd.f32 %v3045, %v3123
      %v3125 = vpop.f32.mrf.mxu0
      %3126 = vdwg.mxu0
      %v3127 = vmax.f32 %v3119, 0.0
      %v3128 = vmax.f32 %v3124, 0.0
      %s3129 = scalar_lea.vmem %s2, 96
      %v3130 = vld [vmem:[%s3129] sm:$0xff]
      %v3131 = vld [vmem:[%s3129 + $0x8] sm:$0xff]
      %v3132 = vlaneseq
      %v3133 = vshrl.u32 %v3132, 7
      %v3134 = vsub.s32 3, %v3133
      %v3135 = vrot.slane %v200, %v3134
      %v3137 = vsel %vm626, %v3127, 0
      %v3140 = vsel %vm626, %v3128, 0
      %3142 = vmatprep.subr.mxu0 0.0
      %3143 = vmatpush1.msra.mxu0 0.0
      %3144 = vmatprep.subr.mxu0 0.0
      %3145 = vmatpush1.msra.mxu0 0.0
      %3146 = vmatprep.subr.mxu0 0.0
      %3147 = vmatpush1.msra.mxu0 0.0
      %3148 = vmatprep.subr.mxu0 0.0
      %3149 = vmatpush1.msra.mxu0 0.0
      %3150 = vmatprep.subr.mxu0 0.0
      %3151 = vmatpush1.msra.mxu0 0.0
      %3152 = vmatprep.subr.mxu0 0.0
      %3153 = vmatpush1.msra.mxu0 0.0
      %3154 = vmatprep.subr.mxu0 0.0
      %3155 = vmatpush1.msra.mxu0 0.0
      %3156 = vmatprep.subr.mxu0 0.0
      %3157 = vmatpush1.msra.mxu0 0.0
      %3158 = vmatprep.subr.mxu0 0.0
      %3159 = vmatpush1.msra.mxu0 0.0
      %3160 = vmatprep.subr.mxu0 0.0
      %3161 = vmatpush1.msra.mxu0 0.0
      %3162 = vmatprep.subr.mxu0 0.0
      %3163 = vmatpush1.msra.mxu0 0.0
      %3164 = vmatprep.subr.mxu0 0.0
      %3165 = vmatpush1.msra.mxu0 0.0
      %3166 = vmatprep.subr.mxu0 0.0
      %3167 = vmatpush1.msra.mxu0 0.0
      %3168 = vmatprep.subr.mxu0 0.0
      %3169 = vmatpush1.msra.mxu0 0.0
      %3170 = vmatprep.subr.mxu0 0.0
      %3171 = vmatpush1.msra.mxu0 %v3131
      %3172 = vmatprep.subr.mxu0 0.0
      %3173 = vmatpush1.msra.mxu0 %v3130
      %3174 = vmatprep.subr.mxu0 0.0
      %3175 = vmatpush2.msra.mxu0 0.0
      %3176 = vmatprep.subr.mxu0 0.0
      %3177 = vmatpush2.msra.mxu0 0.0
      %3178 = vmatprep.subr.mxu0 0.0
      %3179 = vmatpush2.msra.mxu0 0.0
      %3180 = vmatprep.subr.mxu0 0.0
      %3181 = vmatpush2.msra.mxu0 0.0
      %3182 = vmatprep.subr.mxu0 0.0
      %3183 = vmatpush2.msra.mxu0 0.0
      %3184 = vmatprep.subr.mxu0 0.0
      %3185 = vmatpush2.msra.mxu0 0.0
      %3186 = vmatprep.subr.mxu0 0.0
      %3187 = vmatpush2.msra.mxu0 0.0
      %3188 = vmatprep.subr.mxu0 0.0
      %3189 = vmatpush2.msra.mxu0 0.0
      %3190 = vmatprep.subr.mxu0 0.0
      %3191 = vmatpush2.msra.mxu0 0.0
      %3192 = vmatprep.subr.mxu0 0.0
      %3193 = vmatpush2.msra.mxu0 0.0
      %3194 = vmatprep.subr.mxu0 0.0
      %3195 = vmatpush2.msra.mxu0 0.0
      %3196 = vmatprep.subr.mxu0 0.0
      %3197 = vmatpush2.msra.mxu0 0.0
      %3198 = vmatprep.subr.mxu0 0.0
      %3199 = vmatpush2.msra.mxu0 0.0
      %3200 = vmatprep.subr.mxu0 0.0
      %3201 = vmatpush2.msra.mxu0 0.0
      %3202 = vmatprep.subr.mxu0 0.0
      %3203 = vmatpush2.msra.mxu0 0.0
      %3204 = vmatprep.subr.mxu0 0.0
      %3205 = vmatpush2.msra.mxu0 0.0
      %3206 = vmatprep.mubr.f32.mxu0 0.0
      %3207 = vmatmul.mubr.f32.gmra.mxu0 %v3137
      %v3208 = vpop.f32.mrf.mxu0
      %v3209 = vadd.f32 %v3135, %v3208
      %v3210 = vpop.f32.mrf.mxu0
      %3211 = vmatprep.mubr.f32.mxu0 0.0
      %3212 = vmatmul.mubr.f32.gmra.mxu0 %v3140
      %v3213 = vpop.f32.mrf.mxu0
      %v3214 = vadd.f32 %v3135, %v3213
      %v3215 = vpop.f32.mrf.mxu0
      %3216 = vdwg.mxu0
      %vm3217 = vcmask 23552
      %3218 = vst.msk [vmem:[%s197] sm:$0xff] %vm3217, %v3209
      %3219 = vst.msk [vmem:[%s197 + $0x8] sm:$0xff] %vm3217, %v3214
      %p3220 = scmp.lt.s32.totalorder %s15, 1
      %s3221 = scalar_select %p3220, %s15, 1
      %s3222 = smul.addr %s3221, 2
      %s3223 = smul.addr %s3222, 8
      %s3224 = scalar_lea.vmem %s4, %s3223
      // Predicated region
      $region37: #{ecg_seq_lab_net_forward.1} parent=35 // pred_check
        %p3225 = pneg %p122
      $region38: #{ecg_seq_lab_net_forward.1} parent=35 // pred_check_branch
        %3227 = sbr.rel (%p3225) target = $region40
      $region39: #{ecg_seq_lab_net_forward.1} parent=35 // pred_region
        _
      $region40: #{ecg_seq_lab_net_forward.1} parent=35 // pred_fallthru
        _
    $region36: #{ecg_seq_lab_net_forward.1} parent=5 // pred_fallthru
      _
    %p3228 = scmp.le.s32.totalorder 2, %s10
    // Predicated region
    $region41: #{ecg_seq_lab_net_forward.1} parent=5 // pred_check
      %p3229 = pneg %p3228
    $region42: #{ecg_seq_lab_net_forward.1} parent=5 // pred_check_branch
      %3231 = sbr.rel (%p3229) target = $region44
    $region43: #{ecg_seq_lab_net_forward.1} parent=5 // pred_region
      %s3232 = ssub.s32 %s10, 2
      // Predicated region
      $region45: #{ecg_seq_lab_net_forward.1} parent=43 // pred_check
        %p3233 = pneg %p128
      $region46: #{ecg_seq_lab_net_forward.1} parent=43 // pred_check_branch
        %3235 = sbr.rel (%p3233) target = $region48
      $region47: #{ecg_seq_lab_net_forward.1} parent=43 // pred_region
        %p3236 = scmp.lt.s32.totalorder %s16, 1
        %s3237 = scalar_select %p3236, %s16, 1
        %s3238 = smul.addr %s3237, 2
        %s3239 = smul.addr %s3238, 8
        %s3240 = scalar_lea.vmem %s4, %s3239
      $region48: #{ecg_seq_lab_net_forward.1} parent=43 // pred_fallthru
        _
    $region44: #{ecg_seq_lab_net_forward.1} parent=5 // pred_fallthru
      _
  $region6: #{ecg_seq_lab_net_forward.1} parent=0 // loop_footer
    %s14 = sadd.s32 1, %s10
  $region7: #{ecg_seq_lab_net_forward.1} parent=0 // loop_footer_branch
    %9 = sbr.rel target = $region3
  $region8: #{ecg_seq_lab_net_forward.1} parent=0 // loop_exit
    _

</llo_original>
